<compile_context>
chip_gen: v7x
topology: tpu7x:2x2x1
jax: 0.10.0
libtpu: 0.0.40
codegen_flags: <defaults>
</compile_context>

<pallas_src>
import functools

import jax
import jax.numpy as jnp
from jax.experimental import pallas as pl
from jax.experimental.pallas import tpu as pltpu


def _cnn_lstm_kernel(x_ref, w1_ref, s1_ref, sh1_ref, w2_ref, s2_ref, sh2_ref,
                     wih0_ref, whh0_ref, b0_ref, wih1_ref, whh1_ref, b1_ref,
                     fcw_ref, fcb_ref,
                     out_ref, feat_ref,
                     c1_ref, c2_ref,
                     *, K1, K2, PAD):
    B, L, C = x_ref.shape
    C1 = w1_ref.shape[1]                  # 32
    H = whh0_ref.shape[0]                 # 128
    Lp1 = L + 2 * PAD
    Lout1 = Lp1 - K1 + 1                  # conv1 output length
    Lpool1 = Lout1 // 2                   # after pool1 (floor)
    Lp2 = Lpool1 + 2 * PAD
    Lout2 = Lp2 - K2 + 1                  # conv2 output length
    T = Lout2 // 2                        # LSTM sequence length

    # ---------------- conv1: channel-last im2col -> one MXU matmul -----------
    zpad1 = jnp.zeros((PAD, C), jnp.float32)
    patches1 = []
    for b in range(B):
        xb = jnp.concatenate([zpad1, x_ref[b], zpad1], axis=0)          # (Lp1, C)
        patches1.append(
            jnp.concatenate([xb[k:k + Lout1, :] for k in range(K1)], axis=1))
    p1 = jnp.concatenate(patches1, axis=0)                              # (B*Lout1, K1*C)
    y1 = jnp.dot(p1, w1_ref[...], preferred_element_type=jnp.float32)   # (B*Lout1, C1)
    c1_ref[...] = jnp.maximum(y1 * s1_ref[...] + sh1_ref[...], 0.0)     # folded BN + ReLU

    # ---------------- pool1 (strided reads) + conv2 im2col matmul ------------
    zpad2 = jnp.zeros((PAD, C1), jnp.float32)
    patches2 = []
    for b in range(B):
        ev = c1_ref[pl.ds(b * Lout1, Lpool1, stride=2), :]
        od = c1_ref[pl.ds(b * Lout1 + 1, Lpool1, stride=2), :]
        pb = jnp.maximum(ev, od)                                        # (Lpool1, C1)
        xb2 = jnp.concatenate([zpad2, pb, zpad2], axis=0)               # (Lp2, C1)
        patches2.append(
            jnp.concatenate([xb2[k:k + Lout2, :] for k in range(K2)], axis=1))
    p2 = jnp.concatenate(patches2, axis=0)                              # (B*Lout2, K2*C1)
    y2 = jnp.dot(p2, w2_ref[...], preferred_element_type=jnp.float32)   # (B*Lout2, C2)
    c2_ref[...] = jnp.maximum(y2 * s2_ref[...] + sh2_ref[...], 0.0)     # folded BN + ReLU

    # ---------------- pool2 -> LSTM input, t-major rows (row = t*B + b) ------
    pooled = []
    for b in range(B):
        ev = c2_ref[pl.ds(b * Lout2, T, stride=2), :]
        od = c2_ref[pl.ds(b * Lout2 + 1, T, stride=2), :]
        pooled.append(jnp.maximum(ev, od))                              # (T, C2)
    xin = jnp.concatenate(
        [pooled[b][t:t + 1, :] for t in range(T) for b in range(B)], axis=0)  # (T*B, C2)

    # dropout1: identity (eval)

    # ---------------- LSTM: hoisted layer-0 input projection -----------------
    xp0 = (jnp.dot(xin, wih0_ref[...], preferred_element_type=jnp.float32)
           + b0_ref[...])                                               # (T*B, 4H)

    whh0 = whh0_ref[...]
    wih1 = wih1_ref[...]
    whh1 = whh1_ref[...]
    b1 = b1_ref[...]

    def cell(gates, c_prev):                # PyTorch gate order: i, f, g, o
        i = jax.nn.sigmoid(gates[:, 0:H])
        f = jax.nn.sigmoid(gates[:, H:2 * H])
        g = jnp.tanh(gates[:, 2 * H:3 * H])
        o = jax.nn.sigmoid(gates[:, 3 * H:4 * H])
        c_new = f * c_prev + i * g
        return o * jnp.tanh(c_new), c_new

    zh = jnp.zeros((B, H), jnp.float32)
    h0, c0, h1, c1 = zh, zh, zh, zh
    for t in range(T):                      # T is tiny -> fully unrolled
        g0 = xp0[t * B:(t + 1) * B, :] + jnp.dot(
            h0, whh0, preferred_element_type=jnp.float32)
        h0, c0 = cell(g0, c0)
        g1 = (jnp.dot(h0, wih1, preferred_element_type=jnp.float32)
              + jnp.dot(h1, whh1, preferred_element_type=jnp.float32) + b1)
        h1, c1 = cell(g1, c1)

    feat_ref[...] = h1                                                  # == lstm out[:, -1, :]
    out_ref[...] = (jnp.dot(h1, fcw_ref[...], preferred_element_type=jnp.float32)
                    + fcb_ref[...])                                     # fc1


def cnn_lstm_forward(x, params):
    # x: (B, L, n_channels) float32 -- the raw module input (pre-permute layout)
    B, L, _ = x.shape
    K1, K2, PAD = params["K1"], params["K2"], params["PAD"]
    C1 = params["w1"].shape[1]
    C2 = params["w2"].shape[1]
    H = params["whh0"].shape[0]
    Lout1 = L + 2 * PAD - K1 + 1
    Lpool1 = Lout1 // 2
    Lout2 = Lpool1 + 2 * PAD - K2 + 1
    assert Lout1 >= 2 and Lout2 >= 2, "sequence too short for this config"

    kernel = functools.partial(_cnn_lstm_kernel, K1=K1, K2=K2, PAD=PAD)
    vmem = pl.BlockSpec(memory_space=pltpu.MemorySpace.VMEM)
    out, feat = pl.pallas_call(
        kernel,
        out_shape=(jax.ShapeDtypeStruct((B, 1), jnp.float32),
                   jax.ShapeDtypeStruct((B, H), jnp.float32)),
        in_specs=[vmem] * 15,
        out_specs=(vmem, vmem),
        scratch_shapes=[pltpu.VMEM((B * Lout1, C1), jnp.float32),   # conv1+bn+relu out
                        pltpu.VMEM((B * Lout2, C2), jnp.float32)],  # conv2+bn+relu out
    )(x,
      params["w1"], params["scale1"], params["shift1"],
      params["w2"], params["scale2"], params["shift2"],
      params["wih0"], params["whh0"], params["b0"],
      params["wih1"], params["whh1"], params["b1"],
      params["fcw"], params["fcb"])
    return out, feat


def init_params(key, n_channels):
    ks = iter(jax.random.split(key, 32))

    def u(shape, lo=-0.1, hi=0.1):
        return jax.random.uniform(next(ks), shape, jnp.float32, lo, hi)

    PAD = 2

    def conv_block(cin, cout, k):
        w = u((cout, cin, k))          # Conv1d weight (Cout, Cin, K)
        b = u((cout,))                 # Conv1d bias
        gamma = u((cout,), 0.9, 1.1)   # BN weight
        beta = u((cout,))              # BN bias
        mean = u((cout,))              # BN running_mean
        var = u((cout,), 0.5, 1.5)     # BN running_var (positive)
        scale = gamma / jnp.sqrt(var + 1e-5)
        shift = beta + scale * (b - mean)
        # channel-last im2col packing: w_packed[k*Cin + c, co] = w[co, c, k]
        w_packed = jnp.transpose(w, (2, 1, 0)).reshape(k * cin, cout)
        return w_packed, scale.reshape(1, cout), shift.reshape(1, cout)

    H = 128
    w1, scale1, shift1 = conv_block(n_channels, 32, 32)
    w2, scale2, shift2 = conv_block(32, 64, 16)

    def lstm_layer(in_dim):
        wih = u((4 * H, in_dim))       # torch weight_ih (4H, in), gates i,f,g,o
        whh = u((4 * H, H))            # torch weight_hh (4H, H)
        bih = u((4 * H,))
        bhh = u((4 * H,))
        return wih.T, whh.T, (bih + bhh).reshape(1, 4 * H)

    wih0, whh0, b0 = lstm_layer(64)
    wih1, whh1, b1 = lstm_layer(H)
    fcw = u((1, H))                    # fc1 weight (1, 128)
    fcb = u((1,))                      # fc1 bias
    return {
        "K1": 32, "K2": 16, "PAD": PAD,
        "w1": w1, "scale1": scale1, "shift1": shift1,
        "w2": w2, "scale2": scale2, "shift2": shift2,
        "wih0": wih0, "whh0": whh0, "b0": b0,
        "wih1": wih1, "whh1": whh1, "b1": b1,
        "fcw": fcw.T, "fcb": fcb.reshape(1, 1),
    }


if __name__ == "__main__":
    key = jax.random.PRNGKey(0)
    kx, kp = jax.random.split(key)
    B, L, C = 2, 64, 4          # L=64 -> conv1 out 37 -> pool 18 -> conv2 out 7 -> pool 3 (=T)
    x = jax.random.normal(kx, (B, L, C), jnp.float32)
    params = init_params(kp, C)

    out, feat = cnn_lstm_forward(x, params)
    jax.block_until_ready(out)
    jax.block_until_ready(feat)
    assert out.shape == (B, 1), out.shape
    assert feat.shape == (B, 128), feat.shape
    assert bool(jnp.all(jnp.isfinite(out))) and bool(jnp.all(jnp.isfinite(feat)))
    print("KERNEL_OK")
</pallas_src>

<mosaic_0001>
module attributes {stable_mosaic.version = 11 : i64} {
  func.func @_cnn_lstm_kernel(%arg0: memref<2x64x4xf32, #tpu.memory_space<vmem>>, %arg1: memref<128x32xf32, #tpu.memory_space<vmem>>, %arg2: memref<1x32xf32, #tpu.memory_space<vmem>>, %arg3: memref<1x32xf32, #tpu.memory_space<vmem>>, %arg4: memref<512x64xf32, #tpu.memory_space<vmem>>, %arg5: memref<1x64xf32, #tpu.memory_space<vmem>>, %arg6: memref<1x64xf32, #tpu.memory_space<vmem>>, %arg7: memref<64x512xf32, #tpu.memory_space<vmem>>, %arg8: memref<128x512xf32, #tpu.memory_space<vmem>>, %arg9: memref<1x512xf32, #tpu.memory_space<vmem>>, %arg10: memref<128x512xf32, #tpu.memory_space<vmem>>, %arg11: memref<128x512xf32, #tpu.memory_space<vmem>>, %arg12: memref<1x512xf32, #tpu.memory_space<vmem>>, %arg13: memref<128x1xf32, #tpu.memory_space<vmem>>, %arg14: memref<1x1xf32, #tpu.memory_space<vmem>>, %arg15: memref<2x1xf32, #tpu.memory_space<vmem>>, %arg16: memref<2x128xf32, #tpu.memory_space<vmem>>, %arg17: memref<74x32xf32, #tpu.memory_space<vmem>>, %arg18: memref<14x64xf32, #tpu.memory_space<vmem>>) attributes {dimension_semantics = [], scalar_prefetch = 0 : i64, scratch_operands = 2 : i64, tpu.core_type = #tpu.core_type<tc>} {
    %cst = arith.constant 0.000000e+00 : f32
    %0 = vector.broadcast %cst : f32 to vector<2x4xf32>
    %c0 = arith.constant 0 : index
    %c0_0 = arith.constant 0 : index
    %c0_1 = arith.constant 0 : index
    %1 = vector.load %arg0[%c0, %c0_0, %c0_1] : memref<2x64x4xf32, #tpu.memory_space<vmem>>, vector<1x64x4xf32>
    %2 = vector.shape_cast %1 : vector<1x64x4xf32> to vector<64x4xf32>
    %3 = tpu.concatenate %0, %2, %0 in 0 : vector<2x4xf32>, vector<64x4xf32>, vector<2x4xf32> -> vector<68x4xf32>
    %4 = vector.extract_strided_slice %3 {offsets = [0, 0], sizes = [37, 4], strides = [1, 1]} : vector<68x4xf32> to vector<37x4xf32>
    %5 = vector.extract_strided_slice %3 {offsets = [1, 0], sizes = [37, 4], strides = [1, 1]} : vector<68x4xf32> to vector<37x4xf32>
    %6 = vector.extract_strided_slice %3 {offsets = [2, 0], sizes = [37, 4], strides = [1, 1]} : vector<68x4xf32> to vector<37x4xf32>
    %7 = vector.extract_strided_slice %3 {offsets = [3, 0], sizes = [37, 4], strides = [1, 1]} : vector<68x4xf32> to vector<37x4xf32>
    %8 = vector.extract_strided_slice %3 {offsets = [4, 0], sizes = [37, 4], strides = [1, 1]} : vector<68x4xf32> to vector<37x4xf32>
    %9 = vector.extract_strided_slice %3 {offsets = [5, 0], sizes = [37, 4], strides = [1, 1]} : vector<68x4xf32> to vector<37x4xf32>
    %10 = vector.extract_strided_slice %3 {offsets = [6, 0], sizes = [37, 4], strides = [1, 1]} : vector<68x4xf32> to vector<37x4xf32>
    %11 = vector.extract_strided_slice %3 {offsets = [7, 0], sizes = [37, 4], strides = [1, 1]} : vector<68x4xf32> to vector<37x4xf32>
    %12 = vector.extract_strided_slice %3 {offsets = [8, 0], sizes = [37, 4], strides = [1, 1]} : vector<68x4xf32> to vector<37x4xf32>
    %13 = vector.extract_strided_slice %3 {offsets = [9, 0], sizes = [37, 4], strides = [1, 1]} : vector<68x4xf32> to vector<37x4xf32>
    %14 = vector.extract_strided_slice %3 {offsets = [10, 0], sizes = [37, 4], strides = [1, 1]} : vector<68x4xf32> to vector<37x4xf32>
    %15 = vector.extract_strided_slice %3 {offsets = [11, 0], sizes = [37, 4], strides = [1, 1]} : vector<68x4xf32> to vector<37x4xf32>
    %16 = vector.extract_strided_slice %3 {offsets = [12, 0], sizes = [37, 4], strides = [1, 1]} : vector<68x4xf32> to vector<37x4xf32>
    %17 = vector.extract_strided_slice %3 {offsets = [13, 0], sizes = [37, 4], strides = [1, 1]} : vector<68x4xf32> to vector<37x4xf32>
    %18 = vector.extract_strided_slice %3 {offsets = [14, 0], sizes = [37, 4], strides = [1, 1]} : vector<68x4xf32> to vector<37x4xf32>
    %19 = vector.extract_strided_slice %3 {offsets = [15, 0], sizes = [37, 4], strides = [1, 1]} : vector<68x4xf32> to vector<37x4xf32>
    %20 = vector.extract_strided_slice %3 {offsets = [16, 0], sizes = [37, 4], strides = [1, 1]} : vector<68x4xf32> to vector<37x4xf32>
    %21 = vector.extract_strided_slice %3 {offsets = [17, 0], sizes = [37, 4], strides = [1, 1]} : vector<68x4xf32> to vector<37x4xf32>
    %22 = vector.extract_strided_slice %3 {offsets = [18, 0], sizes = [37, 4], strides = [1, 1]} : vector<68x4xf32> to vector<37x4xf32>
    %23 = vector.extract_strided_slice %3 {offsets = [19, 0], sizes = [37, 4], strides = [1, 1]} : vector<68x4xf32> to vector<37x4xf32>
    %24 = vector.extract_strided_slice %3 {offsets = [20, 0], sizes = [37, 4], strides = [1, 1]} : vector<68x4xf32> to vector<37x4xf32>
    %25 = vector.extract_strided_slice %3 {offsets = [21, 0], sizes = [37, 4], strides = [1, 1]} : vector<68x4xf32> to vector<37x4xf32>
    %26 = vector.extract_strided_slice %3 {offsets = [22, 0], sizes = [37, 4], strides = [1, 1]} : vector<68x4xf32> to vector<37x4xf32>
    %27 = vector.extract_strided_slice %3 {offsets = [23, 0], sizes = [37, 4], strides = [1, 1]} : vector<68x4xf32> to vector<37x4xf32>
    %28 = vector.extract_strided_slice %3 {offsets = [24, 0], sizes = [37, 4], strides = [1, 1]} : vector<68x4xf32> to vector<37x4xf32>
    %29 = vector.extract_strided_slice %3 {offsets = [25, 0], sizes = [37, 4], strides = [1, 1]} : vector<68x4xf32> to vector<37x4xf32>
    %30 = vector.extract_strided_slice %3 {offsets = [26, 0], sizes = [37, 4], strides = [1, 1]} : vector<68x4xf32> to vector<37x4xf32>
    %31 = vector.extract_strided_slice %3 {offsets = [27, 0], sizes = [37, 4], strides = [1, 1]} : vector<68x4xf32> to vector<37x4xf32>
    %32 = vector.extract_strided_slice %3 {offsets = [28, 0], sizes = [37, 4], strides = [1, 1]} : vector<68x4xf32> to vector<37x4xf32>
    %33 = vector.extract_strided_slice %3 {offsets = [29, 0], sizes = [37, 4], strides = [1, 1]} : vector<68x4xf32> to vector<37x4xf32>
    %34 = vector.extract_strided_slice %3 {offsets = [30, 0], sizes = [37, 4], strides = [1, 1]} : vector<68x4xf32> to vector<37x4xf32>
    %35 = vector.extract_strided_slice %3 {offsets = [31, 0], sizes = [37, 4], strides = [1, 1]} : vector<68x4xf32> to vector<37x4xf32>
    %36 = tpu.concatenate %4, %5, %6, %7, %8, %9, %10, %11, %12, %13, %14, %15, %16, %17, %18, %19 in 1 : vector<37x4xf32>, vector<37x4xf32>, vector<37x4xf32>, vector<37x4xf32>, vector<37x4xf32>, vector<37x4xf32>, vector<37x4xf32>, vector<37x4xf32>, vector<37x4xf32>, vector<37x4xf32>, vector<37x4xf32>, vector<37x4xf32>, vector<37x4xf32>, vector<37x4xf32>, vector<37x4xf32>, vector<37x4xf32> -> vector<37x64xf32>
    %37 = tpu.concatenate %20, %21, %22, %23, %24, %25, %26, %27, %28, %29, %30, %31, %32, %33, %34, %35 in 1 : vector<37x4xf32>, vector<37x4xf32>, vector<37x4xf32>, vector<37x4xf32>, vector<37x4xf32>, vector<37x4xf32>, vector<37x4xf32>, vector<37x4xf32>, vector<37x4xf32>, vector<37x4xf32>, vector<37x4xf32>, vector<37x4xf32>, vector<37x4xf32>, vector<37x4xf32>, vector<37x4xf32>, vector<37x4xf32> -> vector<37x64xf32>
    %38 = tpu.concatenate %36, %37 in 1 : vector<37x64xf32>, vector<37x64xf32> -> vector<37x128xf32>
    %c1 = arith.constant 1 : index
    %c0_2 = arith.constant 0 : index
    %c0_3 = arith.constant 0 : index
    %39 = vector.load %arg0[%c1, %c0_2, %c0_3] : memref<2x64x4xf32, #tpu.memory_space<vmem>>, vector<1x64x4xf32>
    %40 = vector.shape_cast %39 : vector<1x64x4xf32> to vector<64x4xf32>
    %41 = tpu.concatenate %0, %40, %0 in 0 : vector<2x4xf32>, vector<64x4xf32>, vector<2x4xf32> -> vector<68x4xf32>
    %42 = vector.extract_strided_slice %41 {offsets = [0, 0], sizes = [37, 4], strides = [1, 1]} : vector<68x4xf32> to vector<37x4xf32>
    %43 = vector.extract_strided_slice %41 {offsets = [1, 0], sizes = [37, 4], strides = [1, 1]} : vector<68x4xf32> to vector<37x4xf32>
    %44 = vector.extract_strided_slice %41 {offsets = [2, 0], sizes = [37, 4], strides = [1, 1]} : vector<68x4xf32> to vector<37x4xf32>
    %45 = vector.extract_strided_slice %41 {offsets = [3, 0], sizes = [37, 4], strides = [1, 1]} : vector<68x4xf32> to vector<37x4xf32>
    %46 = vector.extract_strided_slice %41 {offsets = [4, 0], sizes = [37, 4], strides = [1, 1]} : vector<68x4xf32> to vector<37x4xf32>
    %47 = vector.extract_strided_slice %41 {offsets = [5, 0], sizes = [37, 4], strides = [1, 1]} : vector<68x4xf32> to vector<37x4xf32>
    %48 = vector.extract_strided_slice %41 {offsets = [6, 0], sizes = [37, 4], strides = [1, 1]} : vector<68x4xf32> to vector<37x4xf32>
    %49 = vector.extract_strided_slice %41 {offsets = [7, 0], sizes = [37, 4], strides = [1, 1]} : vector<68x4xf32> to vector<37x4xf32>
    %50 = vector.extract_strided_slice %41 {offsets = [8, 0], sizes = [37, 4], strides = [1, 1]} : vector<68x4xf32> to vector<37x4xf32>
    %51 = vector.extract_strided_slice %41 {offsets = [9, 0], sizes = [37, 4], strides = [1, 1]} : vector<68x4xf32> to vector<37x4xf32>
    %52 = vector.extract_strided_slice %41 {offsets = [10, 0], sizes = [37, 4], strides = [1, 1]} : vector<68x4xf32> to vector<37x4xf32>
    %53 = vector.extract_strided_slice %41 {offsets = [11, 0], sizes = [37, 4], strides = [1, 1]} : vector<68x4xf32> to vector<37x4xf32>
    %54 = vector.extract_strided_slice %41 {offsets = [12, 0], sizes = [37, 4], strides = [1, 1]} : vector<68x4xf32> to vector<37x4xf32>
    %55 = vector.extract_strided_slice %41 {offsets = [13, 0], sizes = [37, 4], strides = [1, 1]} : vector<68x4xf32> to vector<37x4xf32>
    %56 = vector.extract_strided_slice %41 {offsets = [14, 0], sizes = [37, 4], strides = [1, 1]} : vector<68x4xf32> to vector<37x4xf32>
    %57 = vector.extract_strided_slice %41 {offsets = [15, 0], sizes = [37, 4], strides = [1, 1]} : vector<68x4xf32> to vector<37x4xf32>
    %58 = vector.extract_strided_slice %41 {offsets = [16, 0], sizes = [37, 4], strides = [1, 1]} : vector<68x4xf32> to vector<37x4xf32>
    %59 = vector.extract_strided_slice %41 {offsets = [17, 0], sizes = [37, 4], strides = [1, 1]} : vector<68x4xf32> to vector<37x4xf32>
    %60 = vector.extract_strided_slice %41 {offsets = [18, 0], sizes = [37, 4], strides = [1, 1]} : vector<68x4xf32> to vector<37x4xf32>
    %61 = vector.extract_strided_slice %41 {offsets = [19, 0], sizes = [37, 4], strides = [1, 1]} : vector<68x4xf32> to vector<37x4xf32>
    %62 = vector.extract_strided_slice %41 {offsets = [20, 0], sizes = [37, 4], strides = [1, 1]} : vector<68x4xf32> to vector<37x4xf32>
    %63 = vector.extract_strided_slice %41 {offsets = [21, 0], sizes = [37, 4], strides = [1, 1]} : vector<68x4xf32> to vector<37x4xf32>
    %64 = vector.extract_strided_slice %41 {offsets = [22, 0], sizes = [37, 4], strides = [1, 1]} : vector<68x4xf32> to vector<37x4xf32>
    %65 = vector.extract_strided_slice %41 {offsets = [23, 0], sizes = [37, 4], strides = [1, 1]} : vector<68x4xf32> to vector<37x4xf32>
    %66 = vector.extract_strided_slice %41 {offsets = [24, 0], sizes = [37, 4], strides = [1, 1]} : vector<68x4xf32> to vector<37x4xf32>
    %67 = vector.extract_strided_slice %41 {offsets = [25, 0], sizes = [37, 4], strides = [1, 1]} : vector<68x4xf32> to vector<37x4xf32>
    %68 = vector.extract_strided_slice %41 {offsets = [26, 0], sizes = [37, 4], strides = [1, 1]} : vector<68x4xf32> to vector<37x4xf32>
    %69 = vector.extract_strided_slice %41 {offsets = [27, 0], sizes = [37, 4], strides = [1, 1]} : vector<68x4xf32> to vector<37x4xf32>
    %70 = vector.extract_strided_slice %41 {offsets = [28, 0], sizes = [37, 4], strides = [1, 1]} : vector<68x4xf32> to vector<37x4xf32>
    %71 = vector.extract_strided_slice %41 {offsets = [29, 0], sizes = [37, 4], strides = [1, 1]} : vector<68x4xf32> to vector<37x4xf32>
    %72 = vector.extract_strided_slice %41 {offsets = [30, 0], sizes = [37, 4], strides = [1, 1]} : vector<68x4xf32> to vector<37x4xf32>
    %73 = vector.extract_strided_slice %41 {offsets = [31, 0], sizes = [37, 4], strides = [1, 1]} : vector<68x4xf32> to vector<37x4xf32>
    %74 = tpu.concatenate %42, %43, %44, %45, %46, %47, %48, %49, %50, %51, %52, %53, %54, %55, %56, %57 in 1 : vector<37x4xf32>, vector<37x4xf32>, vector<37x4xf32>, vector<37x4xf32>, vector<37x4xf32>, vector<37x4xf32>, vector<37x4xf32>, vector<37x4xf32>, vector<37x4xf32>, vector<37x4xf32>, vector<37x4xf32>, vector<37x4xf32>, vector<37x4xf32>, vector<37x4xf32>, vector<37x4xf32>, vector<37x4xf32> -> vector<37x64xf32>
    %75 = tpu.concatenate %58, %59, %60, %61, %62, %63, %64, %65, %66, %67, %68, %69, %70, %71, %72, %73 in 1 : vector<37x4xf32>, vector<37x4xf32>, vector<37x4xf32>, vector<37x4xf32>, vector<37x4xf32>, vector<37x4xf32>, vector<37x4xf32>, vector<37x4xf32>, vector<37x4xf32>, vector<37x4xf32>, vector<37x4xf32>, vector<37x4xf32>, vector<37x4xf32>, vector<37x4xf32>, vector<37x4xf32>, vector<37x4xf32> -> vector<37x64xf32>
    %76 = tpu.concatenate %74, %75 in 1 : vector<37x64xf32>, vector<37x64xf32> -> vector<37x128xf32>
    %77 = tpu.concatenate %38, %76 in 0 : vector<37x128xf32>, vector<37x128xf32> -> vector<74x128xf32>
    %c0_4 = arith.constant 0 : index
    %c0_5 = arith.constant 0 : index
    %78 = vector.load %arg1[%c0_4, %c0_5] : memref<128x32xf32, #tpu.memory_space<vmem>>, vector<128x32xf32>
    %cst_6 = arith.constant dense<0.000000e+00> : vector<74x32xf32>
    %79 = tpu.matmul %77, %78, %cst_6 {dimension_numbers = #tpu.dot_dimension_numbers<[1], [0], [0], [1], [0, 0, 1, 1], [], []>} : vector<74x128xf32>, vector<128x32xf32>, vector<74x32xf32> -> vector<74x32xf32>
    %c0_7 = arith.constant 0 : index
    %c0_8 = arith.constant 0 : index
    %80 = vector.load %arg2[%c0_7, %c0_8] : memref<1x32xf32, #tpu.memory_space<vmem>>, vector<1x32xf32>
    %81 = vector.broadcast %80 : vector<1x32xf32> to vector<74x32xf32>
    %82 = arith.mulf %79, %81 : vector<74x32xf32>
    %c0_9 = arith.constant 0 : index
    %c0_10 = arith.constant 0 : index
    %83 = vector.load %arg3[%c0_9, %c0_10] : memref<1x32xf32, #tpu.memory_space<vmem>>, vector<1x32xf32>
    %84 = vector.broadcast %83 : vector<1x32xf32> to vector<74x32xf32>
    %85 = arith.addf %82, %84 : vector<74x32xf32>
    %cst_11 = arith.constant 0.000000e+00 : f32
    %86 = vector.broadcast %cst_11 : f32 to vector<74x32xf32>
    %87 = arith.maximumf %85, %86 : vector<74x32xf32>
    %c0_12 = arith.constant 0 : index
    %c0_13 = arith.constant 0 : index
    %88 = vector.load %arg17[%c0_12, %c0_13] : memref<74x32xf32, #tpu.memory_space<vmem>>, vector<74x32xf32>
    tpu.vector_store %arg17[%c0_12, %c0_13], %87 {strides = array<i32>} : memref<74x32xf32, #tpu.memory_space<vmem>>, vector<74x32xf32>,
    %cst_14 = arith.constant 0.000000e+00 : f32
    %89 = vector.broadcast %cst_14 : f32 to vector<2x32xf32>
    %c0_15 = arith.constant 0 : index
    %c0_16 = arith.constant 0 : index
    %90 = tpu.strided_load %arg17[%c0_15, %c0_16] {strides = array<i32: 2, 1>} : memref<74x32xf32, #tpu.memory_space<vmem>>, vector<18x32xf32>
    %c1_17 = arith.constant 1 : index
    %c0_18 = arith.constant 0 : index
    %91 = tpu.strided_load %arg17[%c1_17, %c0_18] {strides = array<i32: 2, 1>} : memref<74x32xf32, #tpu.memory_space<vmem>>, vector<18x32xf32>
    %92 = arith.maximumf %90, %91 : vector<18x32xf32>
    %93 = tpu.concatenate %89, %92, %89 in 0 : vector<2x32xf32>, vector<18x32xf32>, vector<2x32xf32> -> vector<22x32xf32>
    %94 = vector.extract_strided_slice %93 {offsets = [0, 0], sizes = [7, 32], strides = [1, 1]} : vector<22x32xf32> to vector<7x32xf32>
    %95 = vector.extract_strided_slice %93 {offsets = [1, 0], sizes = [7, 32], strides = [1, 1]} : vector<22x32xf32> to vector<7x32xf32>
    %96 = vector.extract_strided_slice %93 {offsets = [2, 0], sizes = [7, 32], strides = [1, 1]} : vector<22x32xf32> to vector<7x32xf32>
    %97 = vector.extract_strided_slice %93 {offsets = [3, 0], sizes = [7, 32], strides = [1, 1]} : vector<22x32xf32> to vector<7x32xf32>
    %98 = vector.extract_strided_slice %93 {offsets = [4, 0], sizes = [7, 32], strides = [1, 1]} : vector<22x32xf32> to vector<7x32xf32>
    %99 = vector.extract_strided_slice %93 {offsets = [5, 0], sizes = [7, 32], strides = [1, 1]} : vector<22x32xf32> to vector<7x32xf32>
    %100 = vector.extract_strided_slice %93 {offsets = [6, 0], sizes = [7, 32], strides = [1, 1]} : vector<22x32xf32> to vector<7x32xf32>
    %101 = vector.extract_strided_slice %93 {offsets = [7, 0], sizes = [7, 32], strides = [1, 1]} : vector<22x32xf32> to vector<7x32xf32>
    %102 = vector.extract_strided_slice %93 {offsets = [8, 0], sizes = [7, 32], strides = [1, 1]} : vector<22x32xf32> to vector<7x32xf32>
    %103 = vector.extract_strided_slice %93 {offsets = [9, 0], sizes = [7, 32], strides = [1, 1]} : vector<22x32xf32> to vector<7x32xf32>
    %104 = vector.extract_strided_slice %93 {offsets = [10, 0], sizes = [7, 32], strides = [1, 1]} : vector<22x32xf32> to vector<7x32xf32>
    %105 = vector.extract_strided_slice %93 {offsets = [11, 0], sizes = [7, 32], strides = [1, 1]} : vector<22x32xf32> to vector<7x32xf32>
    %106 = vector.extract_strided_slice %93 {offsets = [12, 0], sizes = [7, 32], strides = [1, 1]} : vector<22x32xf32> to vector<7x32xf32>
    %107 = vector.extract_strided_slice %93 {offsets = [13, 0], sizes = [7, 32], strides = [1, 1]} : vector<22x32xf32> to vector<7x32xf32>
    %108 = vector.extract_strided_slice %93 {offsets = [14, 0], sizes = [7, 32], strides = [1, 1]} : vector<22x32xf32> to vector<7x32xf32>
    %109 = vector.extract_strided_slice %93 {offsets = [15, 0], sizes = [7, 32], strides = [1, 1]} : vector<22x32xf32> to vector<7x32xf32>
    %110 = tpu.concatenate %94, %95, %96, %97, %98, %99, %100, %101, %102, %103, %104, %105, %106, %107, %108, %109 in 1 : vector<7x32xf32>, vector<7x32xf32>, vector<7x32xf32>, vector<7x32xf32>, vector<7x32xf32>, vector<7x32xf32>, vector<7x32xf32>, vector<7x32xf32>, vector<7x32xf32>, vector<7x32xf32>, vector<7x32xf32>, vector<7x32xf32>, vector<7x32xf32>, vector<7x32xf32>, vector<7x32xf32>, vector<7x32xf32> -> vector<7x512xf32>
    %c37 = arith.constant 37 : index
    %c0_19 = arith.constant 0 : index
    %111 = tpu.strided_load %arg17[%c37, %c0_19] {strides = array<i32: 2, 1>} : memref<74x32xf32, #tpu.memory_space<vmem>>, vector<18x32xf32>
    %c38 = arith.constant 38 : index
    %c0_20 = arith.constant 0 : index
    %112 = tpu.strided_load %arg17[%c38, %c0_20] {strides = array<i32: 2, 1>} : memref<74x32xf32, #tpu.memory_space<vmem>>, vector<18x32xf32>
    %113 = arith.maximumf %111, %112 : vector<18x32xf32>
    %114 = tpu.concatenate %89, %113, %89 in 0 : vector<2x32xf32>, vector<18x32xf32>, vector<2x32xf32> -> vector<22x32xf32>
    %115 = vector.extract_strided_slice %114 {offsets = [0, 0], sizes = [7, 32], strides = [1, 1]} : vector<22x32xf32> to vector<7x32xf32>
    %116 = vector.extract_strided_slice %114 {offsets = [1, 0], sizes = [7, 32], strides = [1, 1]} : vector<22x32xf32> to vector<7x32xf32>
    %117 = vector.extract_strided_slice %114 {offsets = [2, 0], sizes = [7, 32], strides = [1, 1]} : vector<22x32xf32> to vector<7x32xf32>
    %118 = vector.extract_strided_slice %114 {offsets = [3, 0], sizes = [7, 32], strides = [1, 1]} : vector<22x32xf32> to vector<7x32xf32>
    %119 = vector.extract_strided_slice %114 {offsets = [4, 0], sizes = [7, 32], strides = [1, 1]} : vector<22x32xf32> to vector<7x32xf32>
    %120 = vector.extract_strided_slice %114 {offsets = [5, 0], sizes = [7, 32], strides = [1, 1]} : vector<22x32xf32> to vector<7x32xf32>
    %121 = vector.extract_strided_slice %114 {offsets = [6, 0], sizes = [7, 32], strides = [1, 1]} : vector<22x32xf32> to vector<7x32xf32>
    %122 = vector.extract_strided_slice %114 {offsets = [7, 0], sizes = [7, 32], strides = [1, 1]} : vector<22x32xf32> to vector<7x32xf32>
    %123 = vector.extract_strided_slice %114 {offsets = [8, 0], sizes = [7, 32], strides = [1, 1]} : vector<22x32xf32> to vector<7x32xf32>
    %124 = vector.extract_strided_slice %114 {offsets = [9, 0], sizes = [7, 32], strides = [1, 1]} : vector<22x32xf32> to vector<7x32xf32>
    %125 = vector.extract_strided_slice %114 {offsets = [10, 0], sizes = [7, 32], strides = [1, 1]} : vector<22x32xf32> to vector<7x32xf32>
    %126 = vector.extract_strided_slice %114 {offsets = [11, 0], sizes = [7, 32], strides = [1, 1]} : vector<22x32xf32> to vector<7x32xf32>
    %127 = vector.extract_strided_slice %114 {offsets = [12, 0], sizes = [7, 32], strides = [1, 1]} : vector<22x32xf32> to vector<7x32xf32>
    %128 = vector.extract_strided_slice %114 {offsets = [13, 0], sizes = [7, 32], strides = [1, 1]} : vector<22x32xf32> to vector<7x32xf32>
    %129 = vector.extract_strided_slice %114 {offsets = [14, 0], sizes = [7, 32], strides = [1, 1]} : vector<22x32xf32> to vector<7x32xf32>
    %130 = vector.extract_strided_slice %114 {offsets = [15, 0], sizes = [7, 32], strides = [1, 1]} : vector<22x32xf32> to vector<7x32xf32>
    %131 = tpu.concatenate %115, %116, %117, %118, %119, %120, %121, %122, %123, %124, %125, %126, %127, %128, %129, %130 in 1 : vector<7x32xf32>, vector<7x32xf32>, vector<7x32xf32>, vector<7x32xf32>, vector<7x32xf32>, vector<7x32xf32>, vector<7x32xf32>, vector<7x32xf32>, vector<7x32xf32>, vector<7x32xf32>, vector<7x32xf32>, vector<7x32xf32>, vector<7x32xf32>, vector<7x32xf32>, vector<7x32xf32>, vector<7x32xf32> -> vector<7x512xf32>
    %132 = tpu.concatenate %110, %131 in 0 : vector<7x512xf32>, vector<7x512xf32> -> vector<14x512xf32>
    %c0_21 = arith.constant 0 : index
    %c0_22 = arith.constant 0 : index
    %133 = vector.load %arg4[%c0_21, %c0_22] : memref<512x64xf32, #tpu.memory_space<vmem>>, vector<512x64xf32>
    %cst_23 = arith.constant dense<0.000000e+00> : vector<14x64xf32>
    %134 = tpu.matmul %132, %133, %cst_23 {dimension_numbers = #tpu.dot_dimension_numbers<[1], [0], [0], [1], [0, 0, 1, 1], [], []>} : vector<14x512xf32>, vector<512x64xf32>, vector<14x64xf32> -> vector<14x64xf32>
    %c0_24 = arith.constant 0 : index
    %c0_25 = arith.constant 0 : index
    %135 = vector.load %arg5[%c0_24, %c0_25] : memref<1x64xf32, #tpu.memory_space<vmem>>, vector<1x64xf32>
    %136 = vector.broadcast %135 : vector<1x64xf32> to vector<14x64xf32>
    %137 = arith.mulf %134, %136 : vector<14x64xf32>
    %c0_26 = arith.constant 0 : index
    %c0_27 = arith.constant 0 : index
    %138 = vector.load %arg6[%c0_26, %c0_27] : memref<1x64xf32, #tpu.memory_space<vmem>>, vector<1x64xf32>
    %139 = vector.broadcast %138 : vector<1x64xf32> to vector<14x64xf32>
    %140 = arith.addf %137, %139 : vector<14x64xf32>
    %cst_28 = arith.constant 0.000000e+00 : f32
    %141 = vector.broadcast %cst_28 : f32 to vector<14x64xf32>
    %142 = arith.maximumf %140, %141 : vector<14x64xf32>
    %c0_29 = arith.constant 0 : index
    %c0_30 = arith.constant 0 : index
    %143 = vector.load %arg18[%c0_29, %c0_30] : memref<14x64xf32, #tpu.memory_space<vmem>>, vector<14x64xf32>
    tpu.vector_store %arg18[%c0_29, %c0_30], %142 {strides = array<i32>} : memref<14x64xf32, #tpu.memory_space<vmem>>, vector<14x64xf32>,
    %c0_31 = arith.constant 0 : index
    %c0_32 = arith.constant 0 : index
    %144 = tpu.strided_load %arg18[%c0_31, %c0_32] {strides = array<i32: 2, 1>} : memref<14x64xf32, #tpu.memory_space<vmem>>, vector<3x64xf32>
    %c1_33 = arith.constant 1 : index
    %c0_34 = arith.constant 0 : index
    %145 = tpu.strided_load %arg18[%c1_33, %c0_34] {strides = array<i32: 2, 1>} : memref<14x64xf32, #tpu.memory_space<vmem>>, vector<3x64xf32>
    %146 = arith.maximumf %144, %145 : vector<3x64xf32>
    %c7 = arith.constant 7 : index
    %c0_35 = arith.constant 0 : index
    %147 = tpu.strided_load %arg18[%c7, %c0_35] {strides = array<i32: 2, 1>} : memref<14x64xf32, #tpu.memory_space<vmem>>, vector<3x64xf32>
    %c8 = arith.constant 8 : index
    %c0_36 = arith.constant 0 : index
    %148 = tpu.strided_load %arg18[%c8, %c0_36] {strides = array<i32: 2, 1>} : memref<14x64xf32, #tpu.memory_space<vmem>>, vector<3x64xf32>
    %149 = arith.maximumf %147, %148 : vector<3x64xf32>
    %150 = vector.extract_strided_slice %146 {offsets = [0, 0], sizes = [1, 64], strides = [1, 1]} : vector<3x64xf32> to vector<1x64xf32>
    %151 = vector.extract_strided_slice %149 {offsets = [0, 0], sizes = [1, 64], strides = [1, 1]} : vector<3x64xf32> to vector<1x64xf32>
    %152 = vector.extract_strided_slice %146 {offsets = [1, 0], sizes = [1, 64], strides = [1, 1]} : vector<3x64xf32> to vector<1x64xf32>
    %153 = vector.extract_strided_slice %149 {offsets = [1, 0], sizes = [1, 64], strides = [1, 1]} : vector<3x64xf32> to vector<1x64xf32>
    %154 = vector.extract_strided_slice %146 {offsets = [2, 0], sizes = [1, 64], strides = [1, 1]} : vector<3x64xf32> to vector<1x64xf32>
    %155 = vector.extract_strided_slice %149 {offsets = [2, 0], sizes = [1, 64], strides = [1, 1]} : vector<3x64xf32> to vector<1x64xf32>
    %156 = tpu.concatenate %150, %151, %152, %153, %154, %155 in 0 : vector<1x64xf32>, vector<1x64xf32>, vector<1x64xf32>, vector<1x64xf32>, vector<1x64xf32>, vector<1x64xf32> -> vector<6x64xf32>
    %c0_37 = arith.constant 0 : index
    %c0_38 = arith.constant 0 : index
    %157 = vector.load %arg7[%c0_37, %c0_38] : memref<64x512xf32, #tpu.memory_space<vmem>>, vector<64x512xf32>
    %cst_39 = arith.constant dense<0.000000e+00> : vector<6x512xf32>
    %158 = tpu.matmul %156, %157, %cst_39 {dimension_numbers = #tpu.dot_dimension_numbers<[1], [0], [0], [1], [0, 0, 1, 1], [], []>} : vector<6x64xf32>, vector<64x512xf32>, vector<6x512xf32> -> vector<6x512xf32>
    %c0_40 = arith.constant 0 : index
    %c0_41 = arith.constant 0 : index
    %159 = vector.load %arg9[%c0_40, %c0_41] : memref<1x512xf32, #tpu.memory_space<vmem>>, vector<1x512xf32>
    %160 = vector.broadcast %159 : vector<1x512xf32> to vector<6x512xf32>
    %161 = arith.addf %158, %160 : vector<6x512xf32>
    %c0_42 = arith.constant 0 : index
    %c0_43 = arith.constant 0 : index
    %162 = vector.load %arg8[%c0_42, %c0_43] : memref<128x512xf32, #tpu.memory_space<vmem>>, vector<128x512xf32>
    %c0_44 = arith.constant 0 : index
    %c0_45 = arith.constant 0 : index
    %163 = vector.load %arg10[%c0_44, %c0_45] : memref<128x512xf32, #tpu.memory_space<vmem>>, vector<128x512xf32>
    %c0_46 = arith.constant 0 : index
    %c0_47 = arith.constant 0 : index
    %164 = vector.load %arg11[%c0_46, %c0_47] : memref<128x512xf32, #tpu.memory_space<vmem>>, vector<128x512xf32>
    %c0_48 = arith.constant 0 : index
    %c0_49 = arith.constant 0 : index
    %165 = vector.load %arg12[%c0_48, %c0_49] : memref<1x512xf32, #tpu.memory_space<vmem>>, vector<1x512xf32>
    %cst_50 = arith.constant 0.000000e+00 : f32
    %166 = vector.broadcast %cst_50 : f32 to vector<2x128xf32>
    %167 = vector.extract_strided_slice %161 {offsets = [0, 0], sizes = [2, 512], strides = [1, 1]} : vector<6x512xf32> to vector<2x512xf32>
    %cst_51 = arith.constant dense<0.000000e+00> : vector<2x512xf32>
    %168 = tpu.matmul %166, %162, %cst_51 {dimension_numbers = #tpu.dot_dimension_numbers<[1], [0], [0], [1], [0, 0, 1, 1], [], []>} : vector<2x128xf32>, vector<128x512xf32>, vector<2x512xf32> -> vector<2x512xf32>
    %169 = arith.addf %167, %168 : vector<2x512xf32>
    %170 = vector.extract_strided_slice %169 {offsets = [0, 0], sizes = [2, 128], strides = [1, 1]} : vector<2x512xf32> to vector<2x128xf32>
    %171 = arith.negf %170 : vector<2x128xf32>
    %172 = math.exp %171 : vector<2x128xf32>
    %cst_52 = arith.constant 1.000000e+00 : f32
    %173 = vector.broadcast %cst_52 : f32 to vector<2x128xf32>
    %174 = arith.addf %173, %172 : vector<2x128xf32>
    %175 = arith.divf %173, %174 : vector<2x128xf32>
    %176 = vector.extract_strided_slice %169 {offsets = [0, 128], sizes = [2, 128], strides = [1, 1]} : vector<2x512xf32> to vector<2x128xf32>
    %177 = arith.negf %176 : vector<2x128xf32>
    %178 = math.exp %177 : vector<2x128xf32>
    %cst_53 = arith.constant 1.000000e+00 : f32
    %179 = vector.broadcast %cst_53 : f32 to vector<2x128xf32>
    %180 = arith.addf %179, %178 : vector<2x128xf32>
    %181 = arith.divf %179, %180 : vector<2x128xf32>
    %182 = vector.extract_strided_slice %169 {offsets = [0, 256], sizes = [2, 128], strides = [1, 1]} : vector<2x512xf32> to vector<2x128xf32>
    %183 = math.tanh %182 : vector<2x128xf32>
    %184 = vector.extract_strided_slice %169 {offsets = [0, 384], sizes = [2, 128], strides = [1, 1]} : vector<2x512xf32> to vector<2x128xf32>
    %185 = arith.negf %184 : vector<2x128xf32>
    %186 = math.exp %185 : vector<2x128xf32>
    %cst_54 = arith.constant 1.000000e+00 : f32
    %187 = vector.broadcast %cst_54 : f32 to vector<2x128xf32>
    %188 = arith.addf %187, %186 : vector<2x128xf32>
    %189 = arith.divf %187, %188 : vector<2x128xf32>
    %190 = arith.mulf %181, %166 : vector<2x128xf32>
    %191 = arith.mulf %175, %183 : vector<2x128xf32>
    %192 = arith.addf %190, %191 : vector<2x128xf32>
    %193 = math.tanh %192 : vector<2x128xf32>
    %194 = arith.mulf %189, %193 : vector<2x128xf32>
    %cst_55 = arith.constant dense<0.000000e+00> : vector<2x512xf32>
    %195 = tpu.matmul %194, %163, %cst_55 {dimension_numbers = #tpu.dot_dimension_numbers<[1], [0], [0], [1], [0, 0, 1, 1], [], []>} : vector<2x128xf32>, vector<128x512xf32>, vector<2x512xf32> -> vector<2x512xf32>
    %cst_56 = arith.constant dense<0.000000e+00> : vector<2x512xf32>
    %196 = tpu.matmul %166, %164, %cst_56 {dimension_numbers = #tpu.dot_dimension_numbers<[1], [0], [0], [1], [0, 0, 1, 1], [], []>} : vector<2x128xf32>, vector<128x512xf32>, vector<2x512xf32> -> vector<2x512xf32>
    %197 = arith.addf %195, %196 : vector<2x512xf32>
    %198 = vector.broadcast %165 : vector<1x512xf32> to vector<2x512xf32>
    %199 = arith.addf %197, %198 : vector<2x512xf32>
    %200 = vector.extract_strided_slice %199 {offsets = [0, 0], sizes = [2, 128], strides = [1, 1]} : vector<2x512xf32> to vector<2x128xf32>
    %201 = arith.negf %200 : vector<2x128xf32>
    %202 = math.exp %201 : vector<2x128xf32>
    %cst_57 = arith.constant 1.000000e+00 : f32
    %203 = vector.broadcast %cst_57 : f32 to vector<2x128xf32>
    %204 = arith.addf %203, %202 : vector<2x128xf32>
    %205 = arith.divf %203, %204 : vector<2x128xf32>
    %206 = vector.extract_strided_slice %199 {offsets = [0, 128], sizes = [2, 128], strides = [1, 1]} : vector<2x512xf32> to vector<2x128xf32>
    %207 = arith.negf %206 : vector<2x128xf32>
    %208 = math.exp %207 : vector<2x128xf32>
    %cst_58 = arith.constant 1.000000e+00 : f32
    %209 = vector.broadcast %cst_58 : f32 to vector<2x128xf32>
    %210 = arith.addf %209, %208 : vector<2x128xf32>
    %211 = arith.divf %209, %210 : vector<2x128xf32>
    %212 = vector.extract_strided_slice %199 {offsets = [0, 256], sizes = [2, 128], strides = [1, 1]} : vector<2x512xf32> to vector<2x128xf32>
    %213 = math.tanh %212 : vector<2x128xf32>
    %214 = vector.extract_strided_slice %199 {offsets = [0, 384], sizes = [2, 128], strides = [1, 1]} : vector<2x512xf32> to vector<2x128xf32>
    %215 = arith.negf %214 : vector<2x128xf32>
    %216 = math.exp %215 : vector<2x128xf32>
    %cst_59 = arith.constant 1.000000e+00 : f32
    %217 = vector.broadcast %cst_59 : f32 to vector<2x128xf32>
    %218 = arith.addf %217, %216 : vector<2x128xf32>
    %219 = arith.divf %217, %218 : vector<2x128xf32>
    %220 = arith.mulf %211, %166 : vector<2x128xf32>
    %221 = arith.mulf %205, %213 : vector<2x128xf32>
    %222 = arith.addf %220, %221 : vector<2x128xf32>
    %223 = math.tanh %222 : vector<2x128xf32>
    %224 = arith.mulf %219, %223 : vector<2x128xf32>
    %225 = vector.extract_strided_slice %161 {offsets = [2, 0], sizes = [2, 512], strides = [1, 1]} : vector<6x512xf32> to vector<2x512xf32>
    %cst_60 = arith.constant dense<0.000000e+00> : vector<2x512xf32>
    %226 = tpu.matmul %194, %162, %cst_60 {dimension_numbers = #tpu.dot_dimension_numbers<[1], [0], [0], [1], [0, 0, 1, 1], [], []>} : vector<2x128xf32>, vector<128x512xf32>, vector<2x512xf32> -> vector<2x512xf32>
    %227 = arith.addf %225, %226 : vector<2x512xf32>
    %228 = vector.extract_strided_slice %227 {offsets = [0, 0], sizes = [2, 128], strides = [1, 1]} : vector<2x512xf32> to vector<2x128xf32>
    %229 = arith.negf %228 : vector<2x128xf32>
    %230 = math.exp %229 : vector<2x128xf32>
    %cst_61 = arith.constant 1.000000e+00 : f32
    %231 = vector.broadcast %cst_61 : f32 to vector<2x128xf32>
    %232 = arith.addf %231, %230 : vector<2x128xf32>
    %233 = arith.divf %231, %232 : vector<2x128xf32>
    %234 = vector.extract_strided_slice %227 {offsets = [0, 128], sizes = [2, 128], strides = [1, 1]} : vector<2x512xf32> to vector<2x128xf32>
    %235 = arith.negf %234 : vector<2x128xf32>
    %236 = math.exp %235 : vector<2x128xf32>
    %cst_62 = arith.constant 1.000000e+00 : f32
    %237 = vector.broadcast %cst_62 : f32 to vector<2x128xf32>
    %238 = arith.addf %237, %236 : vector<2x128xf32>
    %239 = arith.divf %237, %238 : vector<2x128xf32>
    %240 = vector.extract_strided_slice %227 {offsets = [0, 256], sizes = [2, 128], strides = [1, 1]} : vector<2x512xf32> to vector<2x128xf32>
    %241 = math.tanh %240 : vector<2x128xf32>
    %242 = vector.extract_strided_slice %227 {offsets = [0, 384], sizes = [2, 128], strides = [1, 1]} : vector<2x512xf32> to vector<2x128xf32>
    %243 = arith.negf %242 : vector<2x128xf32>
    %244 = math.exp %243 : vector<2x128xf32>
    %cst_63 = arith.constant 1.000000e+00 : f32
    %245 = vector.broadcast %cst_63 : f32 to vector<2x128xf32>
    %246 = arith.addf %245, %244 : vector<2x128xf32>
    %247 = arith.divf %245, %246 : vector<2x128xf32>
    %248 = arith.mulf %239, %192 : vector<2x128xf32>
    %249 = arith.mulf %233, %241 : vector<2x128xf32>
    %250 = arith.addf %248, %249 : vector<2x128xf32>
    %251 = math.tanh %250 : vector<2x128xf32>
    %252 = arith.mulf %247, %251 : vector<2x128xf32>
    %cst_64 = arith.constant dense<0.000000e+00> : vector<2x512xf32>
    %253 = tpu.matmul %252, %163, %cst_64 {dimension_numbers = #tpu.dot_dimension_numbers<[1], [0], [0], [1], [0, 0, 1, 1], [], []>} : vector<2x128xf32>, vector<128x512xf32>, vector<2x512xf32> -> vector<2x512xf32>
    %cst_65 = arith.constant dense<0.000000e+00> : vector<2x512xf32>
    %254 = tpu.matmul %224, %164, %cst_65 {dimension_numbers = #tpu.dot_dimension_numbers<[1], [0], [0], [1], [0, 0, 1, 1], [], []>} : vector<2x128xf32>, vector<128x512xf32>, vector<2x512xf32> -> vector<2x512xf32>
    %255 = arith.addf %253, %254 : vector<2x512xf32>
    %256 = vector.broadcast %165 : vector<1x512xf32> to vector<2x512xf32>
    %257 = arith.addf %255, %256 : vector<2x512xf32>
    %258 = vector.extract_strided_slice %257 {offsets = [0, 0], sizes = [2, 128], strides = [1, 1]} : vector<2x512xf32> to vector<2x128xf32>
    %259 = arith.negf %258 : vector<2x128xf32>
    %260 = math.exp %259 : vector<2x128xf32>
    %cst_66 = arith.constant 1.000000e+00 : f32
    %261 = vector.broadcast %cst_66 : f32 to vector<2x128xf32>
    %262 = arith.addf %261, %260 : vector<2x128xf32>
    %263 = arith.divf %261, %262 : vector<2x128xf32>
    %264 = vector.extract_strided_slice %257 {offsets = [0, 128], sizes = [2, 128], strides = [1, 1]} : vector<2x512xf32> to vector<2x128xf32>
    %265 = arith.negf %264 : vector<2x128xf32>
    %266 = math.exp %265 : vector<2x128xf32>
    %cst_67 = arith.constant 1.000000e+00 : f32
    %267 = vector.broadcast %cst_67 : f32 to vector<2x128xf32>
    %268 = arith.addf %267, %266 : vector<2x128xf32>
    %269 = arith.divf %267, %268 : vector<2x128xf32>
    %270 = vector.extract_strided_slice %257 {offsets = [0, 256], sizes = [2, 128], strides = [1, 1]} : vector<2x512xf32> to vector<2x128xf32>
    %271 = math.tanh %270 : vector<2x128xf32>
    %272 = vector.extract_strided_slice %257 {offsets = [0, 384], sizes = [2, 128], strides = [1, 1]} : vector<2x512xf32> to vector<2x128xf32>
    %273 = arith.negf %272 : vector<2x128xf32>
    %274 = math.exp %273 : vector<2x128xf32>
    %cst_68 = arith.constant 1.000000e+00 : f32
    %275 = vector.broadcast %cst_68 : f32 to vector<2x128xf32>
    %276 = arith.addf %275, %274 : vector<2x128xf32>
    %277 = arith.divf %275, %276 : vector<2x128xf32>
    %278 = arith.mulf %269, %222 : vector<2x128xf32>
    %279 = arith.mulf %263, %271 : vector<2x128xf32>
    %280 = arith.addf %278, %279 : vector<2x128xf32>
    %281 = math.tanh %280 : vector<2x128xf32>
    %282 = arith.mulf %277, %281 : vector<2x128xf32>
    %283 = vector.extract_strided_slice %161 {offsets = [4, 0], sizes = [2, 512], strides = [1, 1]} : vector<6x512xf32> to vector<2x512xf32>
    %cst_69 = arith.constant dense<0.000000e+00> : vector<2x512xf32>
    %284 = tpu.matmul %252, %162, %cst_69 {dimension_numbers = #tpu.dot_dimension_numbers<[1], [0], [0], [1], [0, 0, 1, 1], [], []>} : vector<2x128xf32>, vector<128x512xf32>, vector<2x512xf32> -> vector<2x512xf32>
    %285 = arith.addf %283, %284 : vector<2x512xf32>
    %286 = vector.extract_strided_slice %285 {offsets = [0, 0], sizes = [2, 128], strides = [1, 1]} : vector<2x512xf32> to vector<2x128xf32>
    %287 = arith.negf %286 : vector<2x128xf32>
    %288 = math.exp %287 : vector<2x128xf32>
    %cst_70 = arith.constant 1.000000e+00 : f32
    %289 = vector.broadcast %cst_70 : f32 to vector<2x128xf32>
    %290 = arith.addf %289, %288 : vector<2x128xf32>
    %291 = arith.divf %289, %290 : vector<2x128xf32>
    %292 = vector.extract_strided_slice %285 {offsets = [0, 128], sizes = [2, 128], strides = [1, 1]} : vector<2x512xf32> to vector<2x128xf32>
    %293 = arith.negf %292 : vector<2x128xf32>
    %294 = math.exp %293 : vector<2x128xf32>
    %cst_71 = arith.constant 1.000000e+00 : f32
    %295 = vector.broadcast %cst_71 : f32 to vector<2x128xf32>
    %296 = arith.addf %295, %294 : vector<2x128xf32>
    %297 = arith.divf %295, %296 : vector<2x128xf32>
    %298 = vector.extract_strided_slice %285 {offsets = [0, 256], sizes = [2, 128], strides = [1, 1]} : vector<2x512xf32> to vector<2x128xf32>
    %299 = math.tanh %298 : vector<2x128xf32>
    %300 = vector.extract_strided_slice %285 {offsets = [0, 384], sizes = [2, 128], strides = [1, 1]} : vector<2x512xf32> to vector<2x128xf32>
    %301 = arith.negf %300 : vector<2x128xf32>
    %302 = math.exp %301 : vector<2x128xf32>
    %cst_72 = arith.constant 1.000000e+00 : f32
    %303 = vector.broadcast %cst_72 : f32 to vector<2x128xf32>
    %304 = arith.addf %303, %302 : vector<2x128xf32>
    %305 = arith.divf %303, %304 : vector<2x128xf32>
    %306 = arith.mulf %297, %250 : vector<2x128xf32>
    %307 = arith.mulf %291, %299 : vector<2x128xf32>
    %308 = arith.addf %306, %307 : vector<2x128xf32>
    %309 = math.tanh %308 : vector<2x128xf32>
    %310 = arith.mulf %305, %309 : vector<2x128xf32>
    %cst_73 = arith.constant dense<0.000000e+00> : vector<2x512xf32>
    %311 = tpu.matmul %310, %163, %cst_73 {dimension_numbers = #tpu.dot_dimension_numbers<[1], [0], [0], [1], [0, 0, 1, 1], [], []>} : vector<2x128xf32>, vector<128x512xf32>, vector<2x512xf32> -> vector<2x512xf32>
    %cst_74 = arith.constant dense<0.000000e+00> : vector<2x512xf32>
    %312 = tpu.matmul %282, %164, %cst_74 {dimension_numbers = #tpu.dot_dimension_numbers<[1], [0], [0], [1], [0, 0, 1, 1], [], []>} : vector<2x128xf32>, vector<128x512xf32>, vector<2x512xf32> -> vector<2x512xf32>
    %313 = arith.addf %311, %312 : vector<2x512xf32>
    %314 = vector.broadcast %165 : vector<1x512xf32> to vector<2x512xf32>
    %315 = arith.addf %313, %314 : vector<2x512xf32>
    %316 = vector.extract_strided_slice %315 {offsets = [0, 0], sizes = [2, 128], strides = [1, 1]} : vector<2x512xf32> to vector<2x128xf32>
    %317 = arith.negf %316 : vector<2x128xf32>
    %318 = math.exp %317 : vector<2x128xf32>
    %cst_75 = arith.constant 1.000000e+00 : f32
    %319 = vector.broadcast %cst_75 : f32 to vector<2x128xf32>
    %320 = arith.addf %319, %318 : vector<2x128xf32>
    %321 = arith.divf %319, %320 : vector<2x128xf32>
    %322 = vector.extract_strided_slice %315 {offsets = [0, 128], sizes = [2, 128], strides = [1, 1]} : vector<2x512xf32> to vector<2x128xf32>
    %323 = arith.negf %322 : vector<2x128xf32>
    %324 = math.exp %323 : vector<2x128xf32>
    %cst_76 = arith.constant 1.000000e+00 : f32
    %325 = vector.broadcast %cst_76 : f32 to vector<2x128xf32>
    %326 = arith.addf %325, %324 : vector<2x128xf32>
    %327 = arith.divf %325, %326 : vector<2x128xf32>
    %328 = vector.extract_strided_slice %315 {offsets = [0, 256], sizes = [2, 128], strides = [1, 1]} : vector<2x512xf32> to vector<2x128xf32>
    %329 = math.tanh %328 : vector<2x128xf32>
    %330 = vector.extract_strided_slice %315 {offsets = [0, 384], sizes = [2, 128], strides = [1, 1]} : vector<2x512xf32> to vector<2x128xf32>
    %331 = arith.negf %330 : vector<2x128xf32>
    %332 = math.exp %331 : vector<2x128xf32>
    %cst_77 = arith.constant 1.000000e+00 : f32
    %333 = vector.broadcast %cst_77 : f32 to vector<2x128xf32>
    %334 = arith.addf %333, %332 : vector<2x128xf32>
    %335 = arith.divf %333, %334 : vector<2x128xf32>
    %336 = arith.mulf %327, %280 : vector<2x128xf32>
    %337 = arith.mulf %321, %329 : vector<2x128xf32>
    %338 = arith.addf %336, %337 : vector<2x128xf32>
    %339 = math.tanh %338 : vector<2x128xf32>
    %340 = arith.mulf %335, %339 : vector<2x128xf32>
    %c0_78 = arith.constant 0 : index
    %c0_79 = arith.constant 0 : index
    %341 = vector.load %arg16[%c0_78, %c0_79] : memref<2x128xf32, #tpu.memory_space<vmem>>, vector<2x128xf32>
    tpu.vector_store %arg16[%c0_78, %c0_79], %340 {strides = array<i32>} : memref<2x128xf32, #tpu.memory_space<vmem>>, vector<2x128xf32>,
    %c0_80 = arith.constant 0 : index
    %c0_81 = arith.constant 0 : index
    %342 = vector.load %arg13[%c0_80, %c0_81] : memref<128x1xf32, #tpu.memory_space<vmem>>, vector<128x1xf32>
    %cst_82 = arith.constant dense<0.000000e+00> : vector<2x1xf32>
    %343 = tpu.matmul %340, %342, %cst_82 {dimension_numbers = #tpu.dot_dimension_numbers<[1], [0], [0], [1], [0, 0, 1, 1], [], []>} : vector<2x128xf32>, vector<128x1xf32>, vector<2x1xf32> -> vector<2x1xf32>
    %c0_83 = arith.constant 0 : index
    %c0_84 = arith.constant 0 : index
    %344 = vector.load %arg14[%c0_83, %c0_84] : memref<1x1xf32, #tpu.memory_space<vmem>>, vector<1x1xf32>
    %345 = vector.broadcast %344 : vector<1x1xf32> to vector<2x1xf32>
    %346 = arith.addf %343, %345 : vector<2x1xf32>
    %c0_85 = arith.constant 0 : index
    %c0_86 = arith.constant 0 : index
    %347 = vector.load %arg15[%c0_85, %c0_86] : memref<2x1xf32, #tpu.memory_space<vmem>>, vector<2x1xf32>
    tpu.vector_store %arg15[%c0_85, %c0_86], %346 {strides = array<i32>} : memref<2x1xf32, #tpu.memory_space<vmem>>, vector<2x1xf32>,
    return
  }
}

</mosaic_0001>

<llo_original>
// kernel: tpu_custom_call.1
$region0: #{tpu_custom_call.1}
  #allocation0 [shape = 'u32[]', space=smem, size = 0x4, offset = 0x4, fixed_abs, tag = 'smem constant byte address 0x4 - core index']
  #allocation1 [shape = 'u32[144,128]{1,0:T(1,128)}', space=vmem, size = 0x12000, scoped, tag = 'internal scratch']
  #allocation2 [shape = 'f32[74,32]{1,0:T(8,128)}', space=vmem, size = 0xa000, scoped, tag = 'scratch operand']
  #allocation3 [shape = 'f32[14,64]{1,0:T(8,128)}', space=vmem, size = 0x2000, scoped, tag = 'scratch operand']
  #allocation4 [shape = 'f32[1,1]{1,0:T(1,128)S(1)}', space=vmem, size = 0x200, scoped, tag = 'scoped memory for tpu_custom_call.1']
  %s0 = inlined_call_operand.vmem [shape: f32[2,64,4], index: 0, kind: input, shape index: {}]
  %s1 = inlined_call_operand.vmem [shape: f32[128,32], index: 1, kind: input, shape index: {}]
  %s2 = inlined_call_operand.vmem [shape: f32[1,32], index: 2, kind: input, shape index: {}]
  %s3 = inlined_call_operand.vmem [shape: f32[1,32], index: 3, kind: input, shape index: {}]
  %s4 = inlined_call_operand.vmem [shape: f32[512,64], index: 4, kind: input, shape index: {}]
  %s5 = inlined_call_operand.vmem [shape: f32[1,64], index: 5, kind: input, shape index: {}]
  %s6 = inlined_call_operand.vmem [shape: f32[1,64], index: 6, kind: input, shape index: {}]
  %s7 = inlined_call_operand.hbm [shape: f32[64,512], index: 7, kind: input, shape index: {}]
  %s8 = inlined_call_operand.vmem [shape: f32[128,512], index: 8, kind: input, shape index: {}]
  %s9 = inlined_call_operand.vmem [shape: f32[1,512], index: 9, kind: input, shape index: {}]
  %s10 = inlined_call_operand.vmem [shape: f32[128,512], index: 10, kind: input, shape index: {}]
  %s11 = inlined_call_operand.hbm [shape: f32[128,512], index: 11, kind: input, shape index: {}]
  %s12 = inlined_call_operand.vmem [shape: f32[1,512], index: 12, kind: input, shape index: {}]
  %s13 = inlined_call_operand.vmem [shape: f32[128,1], index: 13, kind: input, shape index: {}]
  %s14 = inlined_call_operand.<no memory space> [shape: f32[1,1], index: 14, kind: input, shape index: {}]
  %s15 = inlined_call_operand.vmem [shape: f32[2,1], index: 15, kind: output, shape index: {0}]
  %s16 = inlined_call_operand.hbm [shape: f32[2,128], index: 16, kind: output, shape index: {1}]
  %17 = xla_tuple %s15, %s16
  %s18 = sld [smem:[#allocation0]]
  $region86: #{tpu_custom_call.1} parent=0
    _
  %s20 = ssub.s32 1, %s18
  %s21 = scalar_select 0, %s20, %s18
  %v22 = vstv %s14
  %23 = vst [vmem:[#allocation4] sm:$0x1] %v22
  $region1: #{tpu_custom_call.1} parent=0
    #allocation5 [shape = 'u8[131072]{0}', space=vmem, size = 0x20000, scoped, tag = 'input window, operand 7, single buffered']
    #allocation6 [shape = 's32[1]{0}', space=sflag, size = 0x4, scoped, tag = 'scoped memory for tpu_custom_call.1']
    #allocation7 [shape = 's32[1]{0}', space=sflag, size = 0x4, scoped, tag = 'scoped memory for tpu_custom_call.1']
    #allocation8 [shape = 'u8[262144]{0}', space=vmem, size = 0x40000, scoped, tag = 'input window, operand 11, single buffered']
    #allocation9 [shape = 's32[1]{0}', space=sflag, size = 0x4, scoped, tag = 'scoped memory for tpu_custom_call.1']
    #allocation10 [shape = 'u8[1024]{0}', space=vmem, size = 0x400, scoped, tag = 'output window, operand 1, single buffered']
    %24 = vsyncpa [#allocation6], 0
    %25 = vsyncpa [#allocation9], 0
    %26 = vsyncpa [#allocation7], 0
    // Predicated region
    $region2: #{tpu_custom_call.1} parent=1 // pred_check
      _
    $region3: #{tpu_custom_call.1} parent=1 // pred_check_branch
      %28 = sbr.rel (0) target = $region5
    $region4: #{tpu_custom_call.1} parent=1 // pred_region
      _
    $region5: #{tpu_custom_call.1} parent=1 // pred_fallthru
      _
    // Predicated region
    $region6: #{tpu_custom_call.1} parent=1 // pred_check
      _
    $region7: #{tpu_custom_call.1} parent=1 // pred_check_branch
      %30 = sbr.rel (0) target = $region9
    $region8: #{tpu_custom_call.1} parent=1 // pred_region
      _
    $region9: #{tpu_custom_call.1} parent=1 // pred_fallthru
      _
    // Predicated region
    $region10: #{tpu_custom_call.1} parent=1 // pred_check
      _
    $region11: #{tpu_custom_call.1} parent=1 // pred_check_branch
      %32 = sbr.rel (0) target = $region13
    $region12: #{tpu_custom_call.1} parent=1 // pred_region
      _
    $region13: #{tpu_custom_call.1} parent=1 // pred_fallthru
      _
    // Predicated region
    $region14: #{tpu_custom_call.1} parent=1 // pred_check
      _
    $region15: #{tpu_custom_call.1} parent=1 // pred_check_branch
      %34 = sbr.rel (0) target = $region17
    $region16: #{tpu_custom_call.1} parent=1 // pred_region
      _
    $region17: #{tpu_custom_call.1} parent=1 // pred_fallthru
      _
    // Predicated region
    $region18: #{tpu_custom_call.1} parent=1 // pred_check
      _
    $region19: #{tpu_custom_call.1} parent=1 // pred_check_branch
      %36 = sbr.rel (0) target = $region21
    $region20: #{tpu_custom_call.1} parent=1 // pred_region
      _
    $region21: #{tpu_custom_call.1} parent=1 // pred_fallthru
      _
    // Predicated region
    $region22: #{tpu_custom_call.1} parent=1 // pred_check
      _
    $region23: #{tpu_custom_call.1} parent=1 // pred_check_branch
      %38 = sbr.rel (0) target = $region25
    $region24: #{tpu_custom_call.1} parent=1 // pred_region
      _
    $region25: #{tpu_custom_call.1} parent=1 // pred_fallthru
      _
    // Predicated region
    $region26: #{tpu_custom_call.1} parent=1 // pred_check
      _
    $region27: #{tpu_custom_call.1} parent=1 // pred_check_branch
      %40 = sbr.rel (0) target = $region29
    $region28: #{tpu_custom_call.1} parent=1 // pred_region
      _
    $region29: #{tpu_custom_call.1} parent=1 // pred_fallthru
      _
    // Predicated region
    $region30: #{tpu_custom_call.1} parent=1 // pred_check
      _
    $region31: #{tpu_custom_call.1} parent=1 // pred_check_branch
      %42 = sbr.rel (0) target = $region33
    $region32: #{tpu_custom_call.1} parent=1 // pred_region
      %s44 = ssub.s32 4096, 4096
      %45 = vsyncadd [#allocation6], %s44
      %s46 = sshll.u32 [#allocation5], 4
      %s47 = int_to_ptr.vmem [resolvable:$true] %s46
      %52 = dma.hbm_to_vmem [thread:$0]  %s7, 4096, %s47, [#allocation6], 512, 512, 32
    $region33: #{tpu_custom_call.1} parent=1 // pred_fallthru
      _
    // Predicated region
    $region34: #{tpu_custom_call.1} parent=1 // pred_check
      _
    $region35: #{tpu_custom_call.1} parent=1 // pred_check_branch
      %54 = sbr.rel (0) target = $region37
    $region36: #{tpu_custom_call.1} parent=1 // pred_region
      _
    $region37: #{tpu_custom_call.1} parent=1 // pred_fallthru
      _
    // Predicated region
    $region38: #{tpu_custom_call.1} parent=1 // pred_check
      _
    $region39: #{tpu_custom_call.1} parent=1 // pred_check_branch
      %56 = sbr.rel (0) target = $region41
    $region40: #{tpu_custom_call.1} parent=1 // pred_region
      _
    $region41: #{tpu_custom_call.1} parent=1 // pred_fallthru
      _
    // Predicated region
    $region42: #{tpu_custom_call.1} parent=1 // pred_check
      _
    $region43: #{tpu_custom_call.1} parent=1 // pred_check_branch
      %58 = sbr.rel (0) target = $region45
    $region44: #{tpu_custom_call.1} parent=1 // pred_region
      _
    $region45: #{tpu_custom_call.1} parent=1 // pred_fallthru
      _
    // Predicated region
    $region46: #{tpu_custom_call.1} parent=1 // pred_check
      _
    $region47: #{tpu_custom_call.1} parent=1 // pred_check_branch
      %60 = sbr.rel (0) target = $region49
    $region48: #{tpu_custom_call.1} parent=1 // pred_region
      %s62 = ssub.s32 8192, 8192
      %63 = vsyncadd [#allocation9], %s62
      %s64 = sshll.u32 [#allocation8], 4
      %s65 = int_to_ptr.vmem [resolvable:$true] %s64
      %70 = dma.hbm_to_vmem [thread:$0]  %s11, 8192, %s65, [#allocation9], 512, 512, 32
    $region49: #{tpu_custom_call.1} parent=1 // pred_fallthru
      _
    // Predicated region
    $region50: #{tpu_custom_call.1} parent=1 // pred_check
      _
    $region51: #{tpu_custom_call.1} parent=1 // pred_check_branch
      %72 = sbr.rel (0) target = $region53
    $region52: #{tpu_custom_call.1} parent=1 // pred_region
      _
    $region53: #{tpu_custom_call.1} parent=1 // pred_fallthru
      _
    // Predicated region
    $region54: #{tpu_custom_call.1} parent=1 // pred_check
      _
    $region55: #{tpu_custom_call.1} parent=1 // pred_check_branch
      %74 = sbr.rel (0) target = $region57
    $region56: #{tpu_custom_call.1} parent=1 // pred_region
      _
    $region57: #{tpu_custom_call.1} parent=1 // pred_fallthru
      _
    // Predicated region
    $region58: #{tpu_custom_call.1} parent=1 // pred_check
      _
    $region59: #{tpu_custom_call.1} parent=1 // pred_check_branch
      %76 = sbr.rel (0) target = $region61
    $region60: #{tpu_custom_call.1} parent=1 // pred_region
      _
    $region61: #{tpu_custom_call.1} parent=1 // pred_fallthru
      _
    // Predicated region
    $region62: #{tpu_custom_call.1} parent=1 // pred_check
      _
    $region63: #{tpu_custom_call.1} parent=1 // pred_check_branch
      %78 = sbr.rel (0) target = $region65
    $region64: #{tpu_custom_call.1} parent=1 // pred_region
      %79 = dma.done [#allocation6], 4096
    $region65: #{tpu_custom_call.1} parent=1 // pred_fallthru
      _
    // Predicated region
    $region66: #{tpu_custom_call.1} parent=1 // pred_check
      _
    $region67: #{tpu_custom_call.1} parent=1 // pred_check_branch
      %81 = sbr.rel (0) target = $region69
    $region68: #{tpu_custom_call.1} parent=1 // pred_region
      %82 = dma.done [#allocation9], 8192
    $region69: #{tpu_custom_call.1} parent=1 // pred_fallthru
      _
    %v83 = vld [vmem:[%s0] sm:$0xff]
    %v84 = vld [vmem:[%s0 + $0x8] sm:$0xff]
    %v85 = vld [vmem:[%s0 + $0x10] sm:$0xff]
    %v86 = vld [vmem:[%s0 + $0x18] sm:$0xff]
    %v87 = vld [vmem:[%s0 + $0x20] sm:$0xff]
    %v88 = vld [vmem:[%s0 + $0x28] sm:$0xff]
    %v89 = vld [vmem:[%s0 + $0x30] sm:$0xff]
    %v90 = vld [vmem:[%s0 + $0x38] sm:$0xff]
    %vm99 = vcmask 1041408
    %v100 = vrot.slane %v83, 6
    %v101 = vrot.slane %v84, 6
    %v102 = vsel %vm99, %v100, %v101
    %v103 = vrot.slane %v85, 6
    %v104 = vsel %vm99, %v101, %v103
    %v105 = vrot.slane %v86, 6
    %v106 = vsel %vm99, %v103, %v105
    %v107 = vrot.slane %v87, 6
    %v108 = vsel %vm99, %v105, %v107
    %v109 = vrot.slane %v88, 6
    %v110 = vsel %vm99, %v107, %v109
    %v111 = vrot.slane %v89, 6
    %v112 = vsel %vm99, %v109, %v111
    %v113 = vrot.slane %v90, 6
    %v114 = vsel %vm99, %v111, %v113
    %v123 = vsel %vm99, 0.0, %v100
    %v124 = vsel %vm99, %v113, 0.0
    %vm126 = vcmask 1046528
    %v127 = vrot.slane %v123, 1
    %v128 = vrot.slane %v102, 1
    %v129 = vsel %vm126, %v127, %v128
    %v130 = vrot.slane %v104, 1
    %v131 = vsel %vm126, %v128, %v130
    %v132 = vrot.slane %v106, 1
    %v133 = vsel %vm126, %v130, %v132
    %v134 = vrot.slane %v108, 1
    %v135 = vsel %vm126, %v132, %v134
    %136 = vrot.lane.b32.xlu0 %v129, 4
    %v137 = vpop.permute.xlu0 %136
    %138 = vrot.lane.b32.xlu0 %v131, 4
    %v139 = vpop.permute.xlu0 %138
    %140 = vrot.lane.b32.xlu0 %v133, 4
    %v141 = vpop.permute.xlu0 %140
    %142 = vrot.lane.b32.xlu0 %v135, 4
    %v143 = vpop.permute.xlu0 %142
    %144 = vrot.lane.b32.xlu0 %v134, 4
    %v145 = vpop.permute.xlu0 %144
    %vm151 = vcmask 1045504
    %v152 = vrot.slane %v123, 2
    %v153 = vrot.slane %v102, 2
    %v154 = vsel %vm151, %v152, %v153
    %v155 = vrot.slane %v104, 2
    %v156 = vsel %vm151, %v153, %v155
    %v157 = vrot.slane %v106, 2
    %v158 = vsel %vm151, %v155, %v157
    %v159 = vrot.slane %v108, 2
    %v160 = vsel %vm151, %v157, %v159
    %161 = vrot.lane.b32.xlu0 %v154, 8
    %v162 = vpop.permute.xlu0 %161
    %163 = vrot.lane.b32.xlu0 %v156, 8
    %v164 = vpop.permute.xlu0 %163
    %165 = vrot.lane.b32.xlu0 %v158, 8
    %v166 = vpop.permute.xlu0 %165
    %167 = vrot.lane.b32.xlu0 %v160, 8
    %v168 = vpop.permute.xlu0 %167
    %169 = vrot.lane.b32.xlu0 %v159, 8
    %v170 = vpop.permute.xlu0 %169
    %vm176 = vcmask 1044480
    %v177 = vrot.slane %v123, 3
    %v178 = vrot.slane %v102, 3
    %v179 = vsel %vm176, %v177, %v178
    %v180 = vrot.slane %v104, 3
    %v181 = vsel %vm176, %v178, %v180
    %v182 = vrot.slane %v106, 3
    %v183 = vsel %vm176, %v180, %v182
    %v184 = vrot.slane %v108, 3
    %v185 = vsel %vm176, %v182, %v184
    %186 = vrot.lane.b32.xlu0 %v179, 12
    %v187 = vpop.permute.xlu0 %186
    %188 = vrot.lane.b32.xlu0 %v181, 12
    %v189 = vpop.permute.xlu0 %188
    %190 = vrot.lane.b32.xlu0 %v183, 12
    %v191 = vpop.permute.xlu0 %190
    %192 = vrot.lane.b32.xlu0 %v185, 12
    %v193 = vpop.permute.xlu0 %192
    %194 = vrot.lane.b32.xlu0 %v184, 12
    %v195 = vpop.permute.xlu0 %194
    %vm201 = vcmask 1043456
    %v202 = vrot.slane %v123, 4
    %v203 = vrot.slane %v102, 4
    %v204 = vsel %vm201, %v202, %v203
    %v205 = vrot.slane %v104, 4
    %v206 = vsel %vm201, %v203, %v205
    %v207 = vrot.slane %v106, 4
    %v208 = vsel %vm201, %v205, %v207
    %v209 = vrot.slane %v108, 4
    %v210 = vsel %vm201, %v207, %v209
    %v211 = vrot.slane %v110, 4
    %v212 = vsel %vm201, %v209, %v211
    %213 = vrot.lane.b32.xlu0 %v204, 16
    %v214 = vpop.permute.xlu0 %213
    %215 = vrot.lane.b32.xlu0 %v206, 16
    %v216 = vpop.permute.xlu0 %215
    %217 = vrot.lane.b32.xlu0 %v208, 16
    %v218 = vpop.permute.xlu0 %217
    %219 = vrot.lane.b32.xlu0 %v210, 16
    %v220 = vpop.permute.xlu0 %219
    %221 = vrot.lane.b32.xlu0 %v212, 16
    %v222 = vpop.permute.xlu0 %221
    %vm228 = vcmask 1042432
    %v229 = vrot.slane %v123, 5
    %v230 = vrot.slane %v102, 5
    %v231 = vsel %vm228, %v229, %v230
    %v232 = vrot.slane %v104, 5
    %v233 = vsel %vm228, %v230, %v232
    %v234 = vrot.slane %v106, 5
    %v235 = vsel %vm228, %v232, %v234
    %v236 = vrot.slane %v108, 5
    %v237 = vsel %vm228, %v234, %v236
    %v238 = vrot.slane %v110, 5
    %v239 = vsel %vm228, %v236, %v238
    %240 = vrot.lane.b32.xlu0 %v231, 20
    %v241 = vpop.permute.xlu0 %240
    %242 = vrot.lane.b32.xlu0 %v233, 20
    %v243 = vpop.permute.xlu0 %242
    %244 = vrot.lane.b32.xlu0 %v235, 20
    %v245 = vpop.permute.xlu0 %244
    %246 = vrot.lane.b32.xlu0 %v237, 20
    %v247 = vpop.permute.xlu0 %246
    %248 = vrot.lane.b32.xlu0 %v239, 20
    %v249 = vpop.permute.xlu0 %248
    %v255 = vrot.slane %v123, 6
    %v256 = vrot.slane %v102, 6
    %v257 = vsel %vm99, %v255, %v256
    %v258 = vrot.slane %v104, 6
    %v259 = vsel %vm99, %v256, %v258
    %v260 = vrot.slane %v106, 6
    %v261 = vsel %vm99, %v258, %v260
    %v262 = vrot.slane %v108, 6
    %v263 = vsel %vm99, %v260, %v262
    %v264 = vrot.slane %v110, 6
    %v265 = vsel %vm99, %v262, %v264
    %266 = vrot.lane.b32.xlu0 %v257, 24
    %v267 = vpop.permute.xlu0 %266
    %268 = vrot.lane.b32.xlu0 %v259, 24
    %v269 = vpop.permute.xlu0 %268
    %270 = vrot.lane.b32.xlu0 %v261, 24
    %v271 = vpop.permute.xlu0 %270
    %272 = vrot.lane.b32.xlu0 %v263, 24
    %v273 = vpop.permute.xlu0 %272
    %274 = vrot.lane.b32.xlu0 %v265, 24
    %v275 = vpop.permute.xlu0 %274
    %vm281 = vcmask 1040384
    %v282 = vrot.slane %v123, 7
    %v283 = vrot.slane %v102, 7
    %v284 = vsel %vm281, %v282, %v283
    %v285 = vrot.slane %v104, 7
    %v286 = vsel %vm281, %v283, %v285
    %v287 = vrot.slane %v106, 7
    %v288 = vsel %vm281, %v285, %v287
    %v289 = vrot.slane %v108, 7
    %v290 = vsel %vm281, %v287, %v289
    %v291 = vrot.slane %v110, 7
    %v292 = vsel %vm281, %v289, %v291
    %293 = vrot.lane.b32.xlu0 %v284, 28
    %v294 = vpop.permute.xlu0 %293
    %295 = vrot.lane.b32.xlu0 %v286, 28
    %v296 = vpop.permute.xlu0 %295
    %297 = vrot.lane.b32.xlu0 %v288, 28
    %v298 = vpop.permute.xlu0 %297
    %299 = vrot.lane.b32.xlu0 %v290, 28
    %v300 = vpop.permute.xlu0 %299
    %301 = vrot.lane.b32.xlu0 %v292, 28
    %v302 = vpop.permute.xlu0 %301
    %308 = vrot.lane.b32.xlu0 %v102, 32
    %v309 = vpop.permute.xlu0 %308
    %310 = vrot.lane.b32.xlu0 %v104, 32
    %v311 = vpop.permute.xlu0 %310
    %312 = vrot.lane.b32.xlu0 %v106, 32
    %v313 = vpop.permute.xlu0 %312
    %314 = vrot.lane.b32.xlu0 %v108, 32
    %v315 = vpop.permute.xlu0 %314
    %316 = vrot.lane.b32.xlu0 %v110, 32
    %v317 = vpop.permute.xlu0 %316
    %v323 = vrot.slane %v110, 1
    %v324 = vsel %vm126, %v134, %v323
    %325 = vrot.lane.b32.xlu0 %v131, 36
    %v326 = vpop.permute.xlu0 %325
    %327 = vrot.lane.b32.xlu0 %v133, 36
    %v328 = vpop.permute.xlu0 %327
    %329 = vrot.lane.b32.xlu0 %v135, 36
    %v330 = vpop.permute.xlu0 %329
    %331 = vrot.lane.b32.xlu0 %v324, 36
    %v332 = vpop.permute.xlu0 %331
    %333 = vrot.lane.b32.xlu0 %v323, 36
    %v334 = vpop.permute.xlu0 %333
    %v340 = vrot.slane %v110, 2
    %v341 = vsel %vm151, %v159, %v340
    %342 = vrot.lane.b32.xlu0 %v156, 40
    %v343 = vpop.permute.xlu0 %342
    %344 = vrot.lane.b32.xlu0 %v158, 40
    %v345 = vpop.permute.xlu0 %344
    %346 = vrot.lane.b32.xlu0 %v160, 40
    %v347 = vpop.permute.xlu0 %346
    %348 = vrot.lane.b32.xlu0 %v341, 40
    %v349 = vpop.permute.xlu0 %348
    %350 = vrot.lane.b32.xlu0 %v340, 40
    %v351 = vpop.permute.xlu0 %350
    %v357 = vrot.slane %v110, 3
    %v358 = vsel %vm176, %v184, %v357
    %359 = vrot.lane.b32.xlu0 %v181, 44
    %v360 = vpop.permute.xlu0 %359
    %361 = vrot.lane.b32.xlu0 %v183, 44
    %v362 = vpop.permute.xlu0 %361
    %363 = vrot.lane.b32.xlu0 %v185, 44
    %v364 = vpop.permute.xlu0 %363
    %365 = vrot.lane.b32.xlu0 %v358, 44
    %v366 = vpop.permute.xlu0 %365
    %367 = vrot.lane.b32.xlu0 %v357, 44
    %v368 = vpop.permute.xlu0 %367
    %v374 = vrot.slane %v112, 4
    %v375 = vsel %vm201, %v211, %v374
    %376 = vrot.lane.b32.xlu0 %v206, 48
    %v377 = vpop.permute.xlu0 %376
    %378 = vrot.lane.b32.xlu0 %v208, 48
    %v379 = vpop.permute.xlu0 %378
    %380 = vrot.lane.b32.xlu0 %v210, 48
    %v381 = vpop.permute.xlu0 %380
    %382 = vrot.lane.b32.xlu0 %v212, 48
    %v383 = vpop.permute.xlu0 %382
    %384 = vrot.lane.b32.xlu0 %v375, 48
    %v385 = vpop.permute.xlu0 %384
    %v391 = vrot.slane %v112, 5
    %v392 = vsel %vm228, %v238, %v391
    %393 = vrot.lane.b32.xlu0 %v233, 52
    %v394 = vpop.permute.xlu0 %393
    %395 = vrot.lane.b32.xlu0 %v235, 52
    %v396 = vpop.permute.xlu0 %395
    %397 = vrot.lane.b32.xlu0 %v237, 52
    %v398 = vpop.permute.xlu0 %397
    %399 = vrot.lane.b32.xlu0 %v239, 52
    %v400 = vpop.permute.xlu0 %399
    %401 = vrot.lane.b32.xlu0 %v392, 52
    %v402 = vpop.permute.xlu0 %401
    %v408 = vrot.slane %v112, 6
    %v409 = vsel %vm99, %v264, %v408
    %410 = vrot.lane.b32.xlu0 %v259, 56
    %v411 = vpop.permute.xlu0 %410
    %412 = vrot.lane.b32.xlu0 %v261, 56
    %v413 = vpop.permute.xlu0 %412
    %414 = vrot.lane.b32.xlu0 %v263, 56
    %v415 = vpop.permute.xlu0 %414
    %416 = vrot.lane.b32.xlu0 %v265, 56
    %v417 = vpop.permute.xlu0 %416
    %418 = vrot.lane.b32.xlu0 %v409, 56
    %v419 = vpop.permute.xlu0 %418
    %v425 = vrot.slane %v112, 7
    %v426 = vsel %vm281, %v291, %v425
    %427 = vrot.lane.b32.xlu0 %v286, 60
    %v428 = vpop.permute.xlu0 %427
    %429 = vrot.lane.b32.xlu0 %v288, 60
    %v430 = vpop.permute.xlu0 %429
    %431 = vrot.lane.b32.xlu0 %v290, 60
    %v432 = vpop.permute.xlu0 %431
    %433 = vrot.lane.b32.xlu0 %v292, 60
    %v434 = vpop.permute.xlu0 %433
    %435 = vrot.lane.b32.xlu0 %v426, 60
    %v436 = vpop.permute.xlu0 %435
    %vm442 = vcmask 31744
    %v443 = vsel %vm442, %v123, %v137
    %v444 = vsel %vm442, %v102, %v139
    %v445 = vsel %vm442, %v104, %v141
    %v446 = vsel %vm442, %v106, %v143
    %v447 = vsel %vm442, %v108, %v145
    %vm448 = vcmask 64512
    %v449 = vsel %vm448, %v443, %v162
    %v450 = vsel %vm448, %v444, %v164
    %v451 = vsel %vm448, %v445, %v166
    %v452 = vsel %vm448, %v446, %v168
    %v453 = vsel %vm448, %v447, %v170
    %vm454 = vcmask 97280
    %v455 = vsel %vm454, %v449, %v187
    %v456 = vsel %vm454, %v450, %v189
    %v457 = vsel %vm454, %v451, %v191
    %v458 = vsel %vm454, %v452, %v193
    %v459 = vsel %vm454, %v453, %v195
    %vm460 = vcmask 130048
    %v461 = vsel %vm460, %v455, %v214
    %v462 = vsel %vm460, %v456, %v216
    %v463 = vsel %vm460, %v457, %v218
    %v464 = vsel %vm460, %v458, %v220
    %v465 = vsel %vm460, %v459, %v222
    %vm466 = vcmask 162816
    %v467 = vsel %vm466, %v461, %v241
    %v468 = vsel %vm466, %v462, %v243
    %v469 = vsel %vm466, %v463, %v245
    %v470 = vsel %vm466, %v464, %v247
    %v471 = vsel %vm466, %v465, %v249
    %vm472 = vcmask 195584
    %v473 = vsel %vm472, %v467, %v267
    %v474 = vsel %vm472, %v468, %v269
    %v475 = vsel %vm472, %v469, %v271
    %v476 = vsel %vm472, %v470, %v273
    %v477 = vsel %vm472, %v471, %v275
    %vm478 = vcmask 228352
    %v479 = vsel %vm478, %v473, %v294
    %v480 = vsel %vm478, %v474, %v296
    %v481 = vsel %vm478, %v475, %v298
    %v482 = vsel %vm478, %v476, %v300
    %v483 = vsel %vm478, %v477, %v302
    %vm484 = vcmask 261120
    %v485 = vsel %vm484, %v479, %v309
    %v486 = vsel %vm484, %v480, %v311
    %v487 = vsel %vm484, %v481, %v313
    %v488 = vsel %vm484, %v482, %v315
    %v489 = vsel %vm484, %v483, %v317
    %vm490 = vcmask 293888
    %v491 = vsel %vm490, %v485, %v326
    %v492 = vsel %vm490, %v486, %v328
    %v493 = vsel %vm490, %v487, %v330
    %v494 = vsel %vm490, %v488, %v332
    %v495 = vsel %vm490, %v489, %v334
    %vm496 = vcmask 326656
    %v497 = vsel %vm496, %v491, %v343
    %v498 = vsel %vm496, %v492, %v345
    %v499 = vsel %vm496, %v493, %v347
    %v500 = vsel %vm496, %v494, %v349
    %v501 = vsel %vm496, %v495, %v351
    %vm502 = vcmask 359424
    %v503 = vsel %vm502, %v497, %v360
    %v504 = vsel %vm502, %v498, %v362
    %v505 = vsel %vm502, %v499, %v364
    %v506 = vsel %vm502, %v500, %v366
    %v507 = vsel %vm502, %v501, %v368
    %vm508 = vcmask 392192
    %v509 = vsel %vm508, %v503, %v377
    %v510 = vsel %vm508, %v504, %v379
    %v511 = vsel %vm508, %v505, %v381
    %v512 = vsel %vm508, %v506, %v383
    %v513 = vsel %vm508, %v507, %v385
    %vm514 = vcmask 424960
    %v515 = vsel %vm514, %v509, %v394
    %v516 = vsel %vm514, %v510, %v396
    %v517 = vsel %vm514, %v511, %v398
    %v518 = vsel %vm514, %v512, %v400
    %v519 = vsel %vm514, %v513, %v402
    %vm520 = vcmask 457728
    %v521 = vsel %vm520, %v515, %v411
    %v522 = vsel %vm520, %v516, %v413
    %v523 = vsel %vm520, %v517, %v415
    %v524 = vsel %vm520, %v518, %v417
    %v525 = vsel %vm520, %v519, %v419
    %vm526 = vcmask 490496
    %v527 = vsel %vm526, %v521, %v428
    %v528 = vsel %vm526, %v522, %v430
    %v529 = vsel %vm526, %v523, %v432
    %v530 = vsel %vm526, %v524, %v434
    %v531 = vsel %vm526, %v525, %v436
    %v532 = vrot.slane %v112, 1
    %v533 = vsel %vm126, %v323, %v532
    %534 = vrot.lane.b32.xlu0 %v324, 4
    %v535 = vpop.permute.xlu0 %534
    %536 = vrot.lane.b32.xlu0 %v533, 4
    %v537 = vpop.permute.xlu0 %536
    %538 = vrot.lane.b32.xlu0 %v532, 4
    %v539 = vpop.permute.xlu0 %538
    %v543 = vrot.slane %v112, 2
    %v544 = vsel %vm151, %v340, %v543
    %545 = vrot.lane.b32.xlu0 %v341, 8
    %v546 = vpop.permute.xlu0 %545
    %547 = vrot.lane.b32.xlu0 %v544, 8
    %v548 = vpop.permute.xlu0 %547
    %549 = vrot.lane.b32.xlu0 %v543, 8
    %v550 = vpop.permute.xlu0 %549
    %v554 = vrot.slane %v112, 3
    %v555 = vsel %vm176, %v357, %v554
    %556 = vrot.lane.b32.xlu0 %v358, 12
    %v557 = vpop.permute.xlu0 %556
    %558 = vrot.lane.b32.xlu0 %v555, 12
    %v559 = vpop.permute.xlu0 %558
    %560 = vrot.lane.b32.xlu0 %v554, 12
    %v561 = vpop.permute.xlu0 %560
    %v565 = vrot.slane %v114, 4
    %v566 = vsel %vm201, %v374, %v565
    %567 = vrot.lane.b32.xlu0 %v375, 16
    %v568 = vpop.permute.xlu0 %567
    %569 = vrot.lane.b32.xlu0 %v566, 16
    %v570 = vpop.permute.xlu0 %569
    %v573 = vrot.slane %v114, 5
    %v574 = vsel %vm228, %v391, %v573
    %575 = vrot.lane.b32.xlu0 %v392, 20
    %v576 = vpop.permute.xlu0 %575
    %577 = vrot.lane.b32.xlu0 %v574, 20
    %v578 = vpop.permute.xlu0 %577
    %v581 = vrot.slane %v114, 6
    %v582 = vsel %vm99, %v408, %v581
    %583 = vrot.lane.b32.xlu0 %v409, 24
    %v584 = vpop.permute.xlu0 %583
    %585 = vrot.lane.b32.xlu0 %v582, 24
    %v586 = vpop.permute.xlu0 %585
    %v589 = vrot.slane %v114, 7
    %v590 = vsel %vm281, %v425, %v589
    %591 = vrot.lane.b32.xlu0 %v426, 28
    %v592 = vpop.permute.xlu0 %591
    %593 = vrot.lane.b32.xlu0 %v590, 28
    %v594 = vpop.permute.xlu0 %593
    %597 = vrot.lane.b32.xlu0 %v112, 32
    %v598 = vpop.permute.xlu0 %597
    %599 = vrot.lane.b32.xlu0 %v114, 32
    %v600 = vpop.permute.xlu0 %599
    %v603 = vrot.slane %v114, 1
    %v604 = vsel %vm126, %v532, %v603
    %605 = vrot.lane.b32.xlu0 %v533, 36
    %v606 = vpop.permute.xlu0 %605
    %607 = vrot.lane.b32.xlu0 %v604, 36
    %v608 = vpop.permute.xlu0 %607
    %609 = vrot.lane.b32.xlu0 %v603, 36
    %v610 = vpop.permute.xlu0 %609
    %v614 = vrot.slane %v114, 2
    %v615 = vsel %vm151, %v543, %v614
    %616 = vrot.lane.b32.xlu0 %v544, 40
    %v617 = vpop.permute.xlu0 %616
    %618 = vrot.lane.b32.xlu0 %v615, 40
    %v619 = vpop.permute.xlu0 %618
    %620 = vrot.lane.b32.xlu0 %v614, 40
    %v621 = vpop.permute.xlu0 %620
    %v625 = vrot.slane %v114, 3
    %v626 = vsel %vm176, %v554, %v625
    %627 = vrot.lane.b32.xlu0 %v555, 44
    %v628 = vpop.permute.xlu0 %627
    %629 = vrot.lane.b32.xlu0 %v626, 44
    %v630 = vpop.permute.xlu0 %629
    %631 = vrot.lane.b32.xlu0 %v625, 44
    %v632 = vpop.permute.xlu0 %631
    %v637 = vrot.slane %v124, 4
    %v638 = vsel %vm201, %v565, %v637
    %639 = vrot.lane.b32.xlu0 %v566, 48
    %v640 = vpop.permute.xlu0 %639
    %641 = vrot.lane.b32.xlu0 %v638, 48
    %v642 = vpop.permute.xlu0 %641
    %v645 = vrot.slane %v124, 5
    %v646 = vsel %vm228, %v573, %v645
    %647 = vrot.lane.b32.xlu0 %v574, 52
    %v648 = vpop.permute.xlu0 %647
    %649 = vrot.lane.b32.xlu0 %v646, 52
    %v650 = vpop.permute.xlu0 %649
    %v653 = vrot.slane %v124, 6
    %v654 = vsel %vm99, %v581, %v653
    %655 = vrot.lane.b32.xlu0 %v582, 56
    %v656 = vpop.permute.xlu0 %655
    %657 = vrot.lane.b32.xlu0 %v654, 56
    %v658 = vpop.permute.xlu0 %657
    %v661 = vrot.slane %v124, 7
    %v662 = vsel %vm281, %v589, %v661
    %663 = vrot.lane.b32.xlu0 %v590, 60
    %v664 = vpop.permute.xlu0 %663
    %665 = vrot.lane.b32.xlu0 %v662, 60
    %v666 = vpop.permute.xlu0 %665
    %v669 = vsel %vm442, %v108, %v535
    %v670 = vsel %vm442, %v110, %v537
    %v671 = vsel %vm442, %v112, %v539
    %v672 = vsel %vm448, %v669, %v546
    %v673 = vsel %vm448, %v670, %v548
    %v674 = vsel %vm448, %v671, %v550
    %v675 = vsel %vm454, %v672, %v557
    %v676 = vsel %vm454, %v673, %v559
    %v677 = vsel %vm454, %v674, %v561
    %v678 = vsel %vm460, %v675, %v222
    %v679 = vsel %vm460, %v676, %v568
    %v680 = vsel %vm460, %v677, %v570
    %v681 = vsel %vm466, %v678, %v249
    %v682 = vsel %vm466, %v679, %v576
    %v683 = vsel %vm466, %v680, %v578
    %v684 = vsel %vm472, %v681, %v275
    %v685 = vsel %vm472, %v682, %v584
    %v686 = vsel %vm472, %v683, %v586
    %v687 = vsel %vm478, %v684, %v302
    %v688 = vsel %vm478, %v685, %v592
    %v689 = vsel %vm478, %v686, %v594
    %v690 = vsel %vm484, %v687, %v317
    %v691 = vsel %vm484, %v688, %v598
    %v692 = vsel %vm484, %v689, %v600
    %v693 = vsel %vm490, %v690, %v606
    %v694 = vsel %vm490, %v691, %v608
    %v695 = vsel %vm490, %v692, %v610
    %v696 = vsel %vm496, %v693, %v617
    %v697 = vsel %vm496, %v694, %v619
    %v698 = vsel %vm496, %v695, %v621
    %v699 = vsel %vm502, %v696, %v628
    %v700 = vsel %vm502, %v697, %v630
    %v701 = vsel %vm502, %v698, %v632
    %v702 = vsel %vm508, %v699, %v385
    %v703 = vsel %vm508, %v700, %v640
    %v704 = vsel %vm508, %v701, %v642
    %v705 = vsel %vm514, %v702, %v402
    %v706 = vsel %vm514, %v703, %v648
    %v707 = vsel %vm514, %v704, %v650
    %v708 = vsel %vm520, %v705, %v419
    %v709 = vsel %vm520, %v706, %v656
    %v710 = vsel %vm520, %v707, %v658
    %v711 = vsel %vm526, %v708, %v436
    %v712 = vsel %vm526, %v709, %v664
    %v713 = vsel %vm526, %v710, %v666
    %719 = vrot.lane.b32.xlu0 %v529, 64
    %v720 = vpop.permute.xlu0 %719
    %721 = vrot.lane.b32.xlu0 %v530, 64
    %v722 = vpop.permute.xlu0 %721
    %723 = vrot.lane.b32.xlu0 %v711, 64
    %v724 = vpop.permute.xlu0 %723
    %725 = vrot.lane.b32.xlu0 %v712, 64
    %v726 = vpop.permute.xlu0 %725
    %727 = vrot.lane.b32.xlu0 %v713, 64
    %v728 = vpop.permute.xlu0 %727
    %vm734 = vcmask 523264
    %v735 = vsel %vm734, %v527, %v720
    %v736 = vsel %vm734, %v528, %v722
    %v737 = vsel %vm734, %v529, %v724
    %v738 = vsel %vm734, %v530, %v726
    %v739 = vsel %vm734, %v531, %v728
    %s740 = scalar_lea.vmem %s0, 64
    %v741 = vld [vmem:[%s740] sm:$0xff]
    %v742 = vld [vmem:[%s740 + $0x8] sm:$0xff]
    %v743 = vld [vmem:[%s740 + $0x10] sm:$0xff]
    %v744 = vld [vmem:[%s740 + $0x18] sm:$0xff]
    %v745 = vld [vmem:[%s740 + $0x20] sm:$0xff]
    %v746 = vld [vmem:[%s740 + $0x28] sm:$0xff]
    %v747 = vld [vmem:[%s740 + $0x30] sm:$0xff]
    %v748 = vld [vmem:[%s740 + $0x38] sm:$0xff]
    %v757 = vrot.slane %v741, 6
    %v758 = vrot.slane %v742, 6
    %v759 = vsel %vm99, %v757, %v758
    %v760 = vrot.slane %v743, 6
    %v761 = vsel %vm99, %v758, %v760
    %v762 = vrot.slane %v744, 6
    %v763 = vsel %vm99, %v760, %v762
    %v764 = vrot.slane %v745, 6
    %v765 = vsel %vm99, %v762, %v764
    %v766 = vrot.slane %v746, 6
    %v767 = vsel %vm99, %v764, %v766
    %v768 = vrot.slane %v747, 6
    %v769 = vsel %vm99, %v766, %v768
    %v770 = vrot.slane %v748, 6
    %v771 = vsel %vm99, %v768, %v770
    %v780 = vsel %vm99, 0.0, %v757
    %v781 = vsel %vm99, %v770, 0.0
    %v783 = vrot.slane %v780, 1
    %v784 = vrot.slane %v759, 1
    %v785 = vsel %vm126, %v783, %v784
    %v786 = vrot.slane %v761, 1
    %v787 = vsel %vm126, %v784, %v786
    %v788 = vrot.slane %v763, 1
    %v789 = vsel %vm126, %v786, %v788
    %v790 = vrot.slane %v765, 1
    %v791 = vsel %vm126, %v788, %v790
    %792 = vrot.lane.b32.xlu0 %v785, 4
    %v793 = vpop.permute.xlu0 %792
    %794 = vrot.lane.b32.xlu0 %v787, 4
    %v795 = vpop.permute.xlu0 %794
    %796 = vrot.lane.b32.xlu0 %v789, 4
    %v797 = vpop.permute.xlu0 %796
    %798 = vrot.lane.b32.xlu0 %v791, 4
    %v799 = vpop.permute.xlu0 %798
    %800 = vrot.lane.b32.xlu0 %v790, 4
    %v801 = vpop.permute.xlu0 %800
    %v807 = vrot.slane %v780, 2
    %v808 = vrot.slane %v759, 2
    %v809 = vsel %vm151, %v807, %v808
    %v810 = vrot.slane %v761, 2
    %v811 = vsel %vm151, %v808, %v810
    %v812 = vrot.slane %v763, 2
    %v813 = vsel %vm151, %v810, %v812
    %v814 = vrot.slane %v765, 2
    %v815 = vsel %vm151, %v812, %v814
    %816 = vrot.lane.b32.xlu0 %v809, 8
    %v817 = vpop.permute.xlu0 %816
    %818 = vrot.lane.b32.xlu0 %v811, 8
    %v819 = vpop.permute.xlu0 %818
    %820 = vrot.lane.b32.xlu0 %v813, 8
    %v821 = vpop.permute.xlu0 %820
    %822 = vrot.lane.b32.xlu0 %v815, 8
    %v823 = vpop.permute.xlu0 %822
    %824 = vrot.lane.b32.xlu0 %v814, 8
    %v825 = vpop.permute.xlu0 %824
    %v831 = vrot.slane %v780, 3
    %v832 = vrot.slane %v759, 3
    %v833 = vsel %vm176, %v831, %v832
    %v834 = vrot.slane %v761, 3
    %v835 = vsel %vm176, %v832, %v834
    %v836 = vrot.slane %v763, 3
    %v837 = vsel %vm176, %v834, %v836
    %v838 = vrot.slane %v765, 3
    %v839 = vsel %vm176, %v836, %v838
    %840 = vrot.lane.b32.xlu0 %v833, 12
    %v841 = vpop.permute.xlu0 %840
    %842 = vrot.lane.b32.xlu0 %v835, 12
    %v843 = vpop.permute.xlu0 %842
    %844 = vrot.lane.b32.xlu0 %v837, 12
    %v845 = vpop.permute.xlu0 %844
    %846 = vrot.lane.b32.xlu0 %v839, 12
    %v847 = vpop.permute.xlu0 %846
    %848 = vrot.lane.b32.xlu0 %v838, 12
    %v849 = vpop.permute.xlu0 %848
    %v855 = vrot.slane %v780, 4
    %v856 = vrot.slane %v759, 4
    %v857 = vsel %vm201, %v855, %v856
    %v858 = vrot.slane %v761, 4
    %v859 = vsel %vm201, %v856, %v858
    %v860 = vrot.slane %v763, 4
    %v861 = vsel %vm201, %v858, %v860
    %v862 = vrot.slane %v765, 4
    %v863 = vsel %vm201, %v860, %v862
    %v864 = vrot.slane %v767, 4
    %v865 = vsel %vm201, %v862, %v864
    %866 = vrot.lane.b32.xlu0 %v857, 16
    %v867 = vpop.permute.xlu0 %866
    %868 = vrot.lane.b32.xlu0 %v859, 16
    %v869 = vpop.permute.xlu0 %868
    %870 = vrot.lane.b32.xlu0 %v861, 16
    %v871 = vpop.permute.xlu0 %870
    %872 = vrot.lane.b32.xlu0 %v863, 16
    %v873 = vpop.permute.xlu0 %872
    %874 = vrot.lane.b32.xlu0 %v865, 16
    %v875 = vpop.permute.xlu0 %874
    %v881 = vrot.slane %v780, 5
    %v882 = vrot.slane %v759, 5
    %v883 = vsel %vm228, %v881, %v882
    %v884 = vrot.slane %v761, 5
    %v885 = vsel %vm228, %v882, %v884
    %v886 = vrot.slane %v763, 5
    %v887 = vsel %vm228, %v884, %v886
    %v888 = vrot.slane %v765, 5
    %v889 = vsel %vm228, %v886, %v888
    %v890 = vrot.slane %v767, 5
    %v891 = vsel %vm228, %v888, %v890
    %892 = vrot.lane.b32.xlu0 %v883, 20
    %v893 = vpop.permute.xlu0 %892
    %894 = vrot.lane.b32.xlu0 %v885, 20
    %v895 = vpop.permute.xlu0 %894
    %896 = vrot.lane.b32.xlu0 %v887, 20
    %v897 = vpop.permute.xlu0 %896
    %898 = vrot.lane.b32.xlu0 %v889, 20
    %v899 = vpop.permute.xlu0 %898
    %900 = vrot.lane.b32.xlu0 %v891, 20
    %v901 = vpop.permute.xlu0 %900
    %v907 = vrot.slane %v780, 6
    %v908 = vrot.slane %v759, 6
    %v909 = vsel %vm99, %v907, %v908
    %v910 = vrot.slane %v761, 6
    %v911 = vsel %vm99, %v908, %v910
    %v912 = vrot.slane %v763, 6
    %v913 = vsel %vm99, %v910, %v912
    %v914 = vrot.slane %v765, 6
    %v915 = vsel %vm99, %v912, %v914
    %v916 = vrot.slane %v767, 6
    %v917 = vsel %vm99, %v914, %v916
    %918 = vrot.lane.b32.xlu0 %v909, 24
    %v919 = vpop.permute.xlu0 %918
    %920 = vrot.lane.b32.xlu0 %v911, 24
    %v921 = vpop.permute.xlu0 %920
    %922 = vrot.lane.b32.xlu0 %v913, 24
    %v923 = vpop.permute.xlu0 %922
    %924 = vrot.lane.b32.xlu0 %v915, 24
    %v925 = vpop.permute.xlu0 %924
    %926 = vrot.lane.b32.xlu0 %v917, 24
    %v927 = vpop.permute.xlu0 %926
    %v933 = vrot.slane %v780, 7
    %v934 = vrot.slane %v759, 7
    %v935 = vsel %vm281, %v933, %v934
    %v936 = vrot.slane %v761, 7
    %v937 = vsel %vm281, %v934, %v936
    %v938 = vrot.slane %v763, 7
    %v939 = vsel %vm281, %v936, %v938
    %v940 = vrot.slane %v765, 7
    %v941 = vsel %vm281, %v938, %v940
    %v942 = vrot.slane %v767, 7
    %v943 = vsel %vm281, %v940, %v942
    %944 = vrot.lane.b32.xlu0 %v935, 28
    %v945 = vpop.permute.xlu0 %944
    %946 = vrot.lane.b32.xlu0 %v937, 28
    %v947 = vpop.permute.xlu0 %946
    %948 = vrot.lane.b32.xlu0 %v939, 28
    %v949 = vpop.permute.xlu0 %948
    %950 = vrot.lane.b32.xlu0 %v941, 28
    %v951 = vpop.permute.xlu0 %950
    %952 = vrot.lane.b32.xlu0 %v943, 28
    %v953 = vpop.permute.xlu0 %952
    %959 = vrot.lane.b32.xlu0 %v759, 32
    %v960 = vpop.permute.xlu0 %959
    %961 = vrot.lane.b32.xlu0 %v761, 32
    %v962 = vpop.permute.xlu0 %961
    %963 = vrot.lane.b32.xlu0 %v763, 32
    %v964 = vpop.permute.xlu0 %963
    %965 = vrot.lane.b32.xlu0 %v765, 32
    %v966 = vpop.permute.xlu0 %965
    %967 = vrot.lane.b32.xlu0 %v767, 32
    %v968 = vpop.permute.xlu0 %967
    %v974 = vrot.slane %v767, 1
    %v975 = vsel %vm126, %v790, %v974
    %976 = vrot.lane.b32.xlu0 %v787, 36
    %v977 = vpop.permute.xlu0 %976
    %978 = vrot.lane.b32.xlu0 %v789, 36
    %v979 = vpop.permute.xlu0 %978
    %980 = vrot.lane.b32.xlu0 %v791, 36
    %v981 = vpop.permute.xlu0 %980
    %982 = vrot.lane.b32.xlu0 %v975, 36
    %v983 = vpop.permute.xlu0 %982
    %984 = vrot.lane.b32.xlu0 %v974, 36
    %v985 = vpop.permute.xlu0 %984
    %v991 = vrot.slane %v767, 2
    %v992 = vsel %vm151, %v814, %v991
    %993 = vrot.lane.b32.xlu0 %v811, 40
    %v994 = vpop.permute.xlu0 %993
    %995 = vrot.lane.b32.xlu0 %v813, 40
    %v996 = vpop.permute.xlu0 %995
    %997 = vrot.lane.b32.xlu0 %v815, 40
    %v998 = vpop.permute.xlu0 %997
    %999 = vrot.lane.b32.xlu0 %v992, 40
    %v1000 = vpop.permute.xlu0 %999
    %1001 = vrot.lane.b32.xlu0 %v991, 40
    %v1002 = vpop.permute.xlu0 %1001
    %v1008 = vrot.slane %v767, 3
    %v1009 = vsel %vm176, %v838, %v1008
    %1010 = vrot.lane.b32.xlu0 %v835, 44
    %v1011 = vpop.permute.xlu0 %1010
    %1012 = vrot.lane.b32.xlu0 %v837, 44
    %v1013 = vpop.permute.xlu0 %1012
    %1014 = vrot.lane.b32.xlu0 %v839, 44
    %v1015 = vpop.permute.xlu0 %1014
    %1016 = vrot.lane.b32.xlu0 %v1009, 44
    %v1017 = vpop.permute.xlu0 %1016
    %1018 = vrot.lane.b32.xlu0 %v1008, 44
    %v1019 = vpop.permute.xlu0 %1018
    %v1025 = vrot.slane %v769, 4
    %v1026 = vsel %vm201, %v864, %v1025
    %1027 = vrot.lane.b32.xlu0 %v859, 48
    %v1028 = vpop.permute.xlu0 %1027
    %1029 = vrot.lane.b32.xlu0 %v861, 48
    %v1030 = vpop.permute.xlu0 %1029
    %1031 = vrot.lane.b32.xlu0 %v863, 48
    %v1032 = vpop.permute.xlu0 %1031
    %1033 = vrot.lane.b32.xlu0 %v865, 48
    %v1034 = vpop.permute.xlu0 %1033
    %1035 = vrot.lane.b32.xlu0 %v1026, 48
    %v1036 = vpop.permute.xlu0 %1035
    %v1042 = vrot.slane %v769, 5
    %v1043 = vsel %vm228, %v890, %v1042
    %1044 = vrot.lane.b32.xlu0 %v885, 52
    %v1045 = vpop.permute.xlu0 %1044
    %1046 = vrot.lane.b32.xlu0 %v887, 52
    %v1047 = vpop.permute.xlu0 %1046
    %1048 = vrot.lane.b32.xlu0 %v889, 52
    %v1049 = vpop.permute.xlu0 %1048
    %1050 = vrot.lane.b32.xlu0 %v891, 52
    %v1051 = vpop.permute.xlu0 %1050
    %1052 = vrot.lane.b32.xlu0 %v1043, 52
    %v1053 = vpop.permute.xlu0 %1052
    %v1059 = vrot.slane %v769, 6
    %v1060 = vsel %vm99, %v916, %v1059
    %1061 = vrot.lane.b32.xlu0 %v911, 56
    %v1062 = vpop.permute.xlu0 %1061
    %1063 = vrot.lane.b32.xlu0 %v913, 56
    %v1064 = vpop.permute.xlu0 %1063
    %1065 = vrot.lane.b32.xlu0 %v915, 56
    %v1066 = vpop.permute.xlu0 %1065
    %1067 = vrot.lane.b32.xlu0 %v917, 56
    %v1068 = vpop.permute.xlu0 %1067
    %1069 = vrot.lane.b32.xlu0 %v1060, 56
    %v1070 = vpop.permute.xlu0 %1069
    %v1076 = vrot.slane %v769, 7
    %v1077 = vsel %vm281, %v942, %v1076
    %1078 = vrot.lane.b32.xlu0 %v937, 60
    %v1079 = vpop.permute.xlu0 %1078
    %1080 = vrot.lane.b32.xlu0 %v939, 60
    %v1081 = vpop.permute.xlu0 %1080
    %1082 = vrot.lane.b32.xlu0 %v941, 60
    %v1083 = vpop.permute.xlu0 %1082
    %1084 = vrot.lane.b32.xlu0 %v943, 60
    %v1085 = vpop.permute.xlu0 %1084
    %1086 = vrot.lane.b32.xlu0 %v1077, 60
    %v1087 = vpop.permute.xlu0 %1086
    %v1093 = vsel %vm442, %v780, %v793
    %v1094 = vsel %vm442, %v759, %v795
    %v1095 = vsel %vm442, %v761, %v797
    %v1096 = vsel %vm442, %v763, %v799
    %v1097 = vsel %vm442, %v765, %v801
    %v1098 = vsel %vm448, %v1093, %v817
    %v1099 = vsel %vm448, %v1094, %v819
    %v1100 = vsel %vm448, %v1095, %v821
    %v1101 = vsel %vm448, %v1096, %v823
    %v1102 = vsel %vm448, %v1097, %v825
    %v1103 = vsel %vm454, %v1098, %v841
    %v1104 = vsel %vm454, %v1099, %v843
    %v1105 = vsel %vm454, %v1100, %v845
    %v1106 = vsel %vm454, %v1101, %v847
    %v1107 = vsel %vm454, %v1102, %v849
    %v1108 = vsel %vm460, %v1103, %v867
    %v1109 = vsel %vm460, %v1104, %v869
    %v1110 = vsel %vm460, %v1105, %v871
    %v1111 = vsel %vm460, %v1106, %v873
    %v1112 = vsel %vm460, %v1107, %v875
    %v1113 = vsel %vm466, %v1108, %v893
    %v1114 = vsel %vm466, %v1109, %v895
    %v1115 = vsel %vm466, %v1110, %v897
    %v1116 = vsel %vm466, %v1111, %v899
    %v1117 = vsel %vm466, %v1112, %v901
    %v1118 = vsel %vm472, %v1113, %v919
    %v1119 = vsel %vm472, %v1114, %v921
    %v1120 = vsel %vm472, %v1115, %v923
    %v1121 = vsel %vm472, %v1116, %v925
    %v1122 = vsel %vm472, %v1117, %v927
    %v1123 = vsel %vm478, %v1118, %v945
    %v1124 = vsel %vm478, %v1119, %v947
    %v1125 = vsel %vm478, %v1120, %v949
    %v1126 = vsel %vm478, %v1121, %v951
    %v1127 = vsel %vm478, %v1122, %v953
    %v1128 = vsel %vm484, %v1123, %v960
    %v1129 = vsel %vm484, %v1124, %v962
    %v1130 = vsel %vm484, %v1125, %v964
    %v1131 = vsel %vm484, %v1126, %v966
    %v1132 = vsel %vm484, %v1127, %v968
    %v1133 = vsel %vm490, %v1128, %v977
    %v1134 = vsel %vm490, %v1129, %v979
    %v1135 = vsel %vm490, %v1130, %v981
    %v1136 = vsel %vm490, %v1131, %v983
    %v1137 = vsel %vm490, %v1132, %v985
    %v1138 = vsel %vm496, %v1133, %v994
    %v1139 = vsel %vm496, %v1134, %v996
    %v1140 = vsel %vm496, %v1135, %v998
    %v1141 = vsel %vm496, %v1136, %v1000
    %v1142 = vsel %vm496, %v1137, %v1002
    %v1143 = vsel %vm502, %v1138, %v1011
    %v1144 = vsel %vm502, %v1139, %v1013
    %v1145 = vsel %vm502, %v1140, %v1015
    %v1146 = vsel %vm502, %v1141, %v1017
    %v1147 = vsel %vm502, %v1142, %v1019
    %v1148 = vsel %vm508, %v1143, %v1028
    %v1149 = vsel %vm508, %v1144, %v1030
    %v1150 = vsel %vm508, %v1145, %v1032
    %v1151 = vsel %vm508, %v1146, %v1034
    %v1152 = vsel %vm508, %v1147, %v1036
    %v1153 = vsel %vm514, %v1148, %v1045
    %v1154 = vsel %vm514, %v1149, %v1047
    %v1155 = vsel %vm514, %v1150, %v1049
    %v1156 = vsel %vm514, %v1151, %v1051
    %v1157 = vsel %vm514, %v1152, %v1053
    %v1158 = vsel %vm520, %v1153, %v1062
    %v1159 = vsel %vm520, %v1154, %v1064
    %v1160 = vsel %vm520, %v1155, %v1066
    %v1161 = vsel %vm520, %v1156, %v1068
    %v1162 = vsel %vm520, %v1157, %v1070
    %v1163 = vsel %vm526, %v1158, %v1079
    %v1164 = vsel %vm526, %v1159, %v1081
    %v1165 = vsel %vm526, %v1160, %v1083
    %v1166 = vsel %vm526, %v1161, %v1085
    %v1167 = vsel %vm526, %v1162, %v1087
    %v1168 = vrot.slane %v769, 1
    %v1169 = vsel %vm126, %v974, %v1168
    %1170 = vrot.lane.b32.xlu0 %v975, 4
    %v1171 = vpop.permute.xlu0 %1170
    %1172 = vrot.lane.b32.xlu0 %v1169, 4
    %v1173 = vpop.permute.xlu0 %1172
    %1174 = vrot.lane.b32.xlu0 %v1168, 4
    %v1175 = vpop.permute.xlu0 %1174
    %v1179 = vrot.slane %v769, 2
    %v1180 = vsel %vm151, %v991, %v1179
    %1181 = vrot.lane.b32.xlu0 %v992, 8
    %v1182 = vpop.permute.xlu0 %1181
    %1183 = vrot.lane.b32.xlu0 %v1180, 8
    %v1184 = vpop.permute.xlu0 %1183
    %1185 = vrot.lane.b32.xlu0 %v1179, 8
    %v1186 = vpop.permute.xlu0 %1185
    %v1190 = vrot.slane %v769, 3
    %v1191 = vsel %vm176, %v1008, %v1190
    %1192 = vrot.lane.b32.xlu0 %v1009, 12
    %v1193 = vpop.permute.xlu0 %1192
    %1194 = vrot.lane.b32.xlu0 %v1191, 12
    %v1195 = vpop.permute.xlu0 %1194
    %1196 = vrot.lane.b32.xlu0 %v1190, 12
    %v1197 = vpop.permute.xlu0 %1196
    %v1201 = vrot.slane %v771, 4
    %v1202 = vsel %vm201, %v1025, %v1201
    %1203 = vrot.lane.b32.xlu0 %v1026, 16
    %v1204 = vpop.permute.xlu0 %1203
    %1205 = vrot.lane.b32.xlu0 %v1202, 16
    %v1206 = vpop.permute.xlu0 %1205
    %v1209 = vrot.slane %v771, 5
    %v1210 = vsel %vm228, %v1042, %v1209
    %1211 = vrot.lane.b32.xlu0 %v1043, 20
    %v1212 = vpop.permute.xlu0 %1211
    %1213 = vrot.lane.b32.xlu0 %v1210, 20
    %v1214 = vpop.permute.xlu0 %1213
    %v1217 = vrot.slane %v771, 6
    %v1218 = vsel %vm99, %v1059, %v1217
    %1219 = vrot.lane.b32.xlu0 %v1060, 24
    %v1220 = vpop.permute.xlu0 %1219
    %1221 = vrot.lane.b32.xlu0 %v1218, 24
    %v1222 = vpop.permute.xlu0 %1221
    %v1225 = vrot.slane %v771, 7
    %v1226 = vsel %vm281, %v1076, %v1225
    %1227 = vrot.lane.b32.xlu0 %v1077, 28
    %v1228 = vpop.permute.xlu0 %1227
    %1229 = vrot.lane.b32.xlu0 %v1226, 28
    %v1230 = vpop.permute.xlu0 %1229
    %1233 = vrot.lane.b32.xlu0 %v769, 32
    %v1234 = vpop.permute.xlu0 %1233
    %1235 = vrot.lane.b32.xlu0 %v771, 32
    %v1236 = vpop.permute.xlu0 %1235
    %v1239 = vrot.slane %v771, 1
    %v1240 = vsel %vm126, %v1168, %v1239
    %1241 = vrot.lane.b32.xlu0 %v1169, 36
    %v1242 = vpop.permute.xlu0 %1241
    %1243 = vrot.lane.b32.xlu0 %v1240, 36
    %v1244 = vpop.permute.xlu0 %1243
    %1245 = vrot.lane.b32.xlu0 %v1239, 36
    %v1246 = vpop.permute.xlu0 %1245
    %v1250 = vrot.slane %v771, 2
    %v1251 = vsel %vm151, %v1179, %v1250
    %1252 = vrot.lane.b32.xlu0 %v1180, 40
    %v1253 = vpop.permute.xlu0 %1252
    %1254 = vrot.lane.b32.xlu0 %v1251, 40
    %v1255 = vpop.permute.xlu0 %1254
    %1256 = vrot.lane.b32.xlu0 %v1250, 40
    %v1257 = vpop.permute.xlu0 %1256
    %v1261 = vrot.slane %v771, 3
    %v1262 = vsel %vm176, %v1190, %v1261
    %1263 = vrot.lane.b32.xlu0 %v1191, 44
    %v1264 = vpop.permute.xlu0 %1263
    %1265 = vrot.lane.b32.xlu0 %v1262, 44
    %v1266 = vpop.permute.xlu0 %1265
    %1267 = vrot.lane.b32.xlu0 %v1261, 44
    %v1268 = vpop.permute.xlu0 %1267
    %v1273 = vrot.slane %v781, 4
    %v1274 = vsel %vm201, %v1201, %v1273
    %1275 = vrot.lane.b32.xlu0 %v1202, 48
    %v1276 = vpop.permute.xlu0 %1275
    %1277 = vrot.lane.b32.xlu0 %v1274, 48
    %v1278 = vpop.permute.xlu0 %1277
    %v1281 = vrot.slane %v781, 5
    %v1282 = vsel %vm228, %v1209, %v1281
    %1283 = vrot.lane.b32.xlu0 %v1210, 52
    %v1284 = vpop.permute.xlu0 %1283
    %1285 = vrot.lane.b32.xlu0 %v1282, 52
    %v1286 = vpop.permute.xlu0 %1285
    %v1289 = vrot.slane %v781, 6
    %v1290 = vsel %vm99, %v1217, %v1289
    %1291 = vrot.lane.b32.xlu0 %v1218, 56
    %v1292 = vpop.permute.xlu0 %1291
    %1293 = vrot.lane.b32.xlu0 %v1290, 56
    %v1294 = vpop.permute.xlu0 %1293
    %v1297 = vrot.slane %v781, 7
    %v1298 = vsel %vm281, %v1225, %v1297
    %1299 = vrot.lane.b32.xlu0 %v1226, 60
    %v1300 = vpop.permute.xlu0 %1299
    %1301 = vrot.lane.b32.xlu0 %v1298, 60
    %v1302 = vpop.permute.xlu0 %1301
    %v1305 = vsel %vm442, %v765, %v1171
    %v1306 = vsel %vm442, %v767, %v1173
    %v1307 = vsel %vm442, %v769, %v1175
    %v1308 = vsel %vm448, %v1305, %v1182
    %v1309 = vsel %vm448, %v1306, %v1184
    %v1310 = vsel %vm448, %v1307, %v1186
    %v1311 = vsel %vm454, %v1308, %v1193
    %v1312 = vsel %vm454, %v1309, %v1195
    %v1313 = vsel %vm454, %v1310, %v1197
    %v1314 = vsel %vm460, %v1311, %v875
    %v1315 = vsel %vm460, %v1312, %v1204
    %v1316 = vsel %vm460, %v1313, %v1206
    %v1317 = vsel %vm466, %v1314, %v901
    %v1318 = vsel %vm466, %v1315, %v1212
    %v1319 = vsel %vm466, %v1316, %v1214
    %v1320 = vsel %vm472, %v1317, %v927
    %v1321 = vsel %vm472, %v1318, %v1220
    %v1322 = vsel %vm472, %v1319, %v1222
    %v1323 = vsel %vm478, %v1320, %v953
    %v1324 = vsel %vm478, %v1321, %v1228
    %v1325 = vsel %vm478, %v1322, %v1230
    %v1326 = vsel %vm484, %v1323, %v968
    %v1327 = vsel %vm484, %v1324, %v1234
    %v1328 = vsel %vm484, %v1325, %v1236
    %v1329 = vsel %vm490, %v1326, %v1242
    %v1330 = vsel %vm490, %v1327, %v1244
    %v1331 = vsel %vm490, %v1328, %v1246
    %v1332 = vsel %vm496, %v1329, %v1253
    %v1333 = vsel %vm496, %v1330, %v1255
    %v1334 = vsel %vm496, %v1331, %v1257
    %v1335 = vsel %vm502, %v1332, %v1264
    %v1336 = vsel %vm502, %v1333, %v1266
    %v1337 = vsel %vm502, %v1334, %v1268
    %v1338 = vsel %vm508, %v1335, %v1036
    %v1339 = vsel %vm508, %v1336, %v1276
    %v1340 = vsel %vm508, %v1337, %v1278
    %v1341 = vsel %vm514, %v1338, %v1053
    %v1342 = vsel %vm514, %v1339, %v1284
    %v1343 = vsel %vm514, %v1340, %v1286
    %v1344 = vsel %vm520, %v1341, %v1070
    %v1345 = vsel %vm520, %v1342, %v1292
    %v1346 = vsel %vm520, %v1343, %v1294
    %v1347 = vsel %vm526, %v1344, %v1087
    %v1348 = vsel %vm526, %v1345, %v1300
    %v1349 = vsel %vm526, %v1346, %v1302
    %1355 = vrot.lane.b32.xlu0 %v1165, 64
    %v1356 = vpop.permute.xlu0 %1355
    %1357 = vrot.lane.b32.xlu0 %v1166, 64
    %v1358 = vpop.permute.xlu0 %1357
    %1359 = vrot.lane.b32.xlu0 %v1347, 64
    %v1360 = vpop.permute.xlu0 %1359
    %1361 = vrot.lane.b32.xlu0 %v1348, 64
    %v1362 = vpop.permute.xlu0 %1361
    %1363 = vrot.lane.b32.xlu0 %v1349, 64
    %v1364 = vpop.permute.xlu0 %1363
    %v1370 = vsel %vm734, %v1163, %v1356
    %v1371 = vsel %vm734, %v1164, %v1358
    %v1372 = vsel %vm734, %v1165, %v1360
    %v1373 = vsel %vm734, %v1166, %v1362
    %v1374 = vsel %vm734, %v1167, %v1364
    %v1380 = vrot.slane %v1370, 3
    %v1381 = vrot.slane %v1371, 3
    %v1382 = vsel %vm176, %v1380, %v1381
    %v1383 = vrot.slane %v1372, 3
    %v1384 = vsel %vm176, %v1381, %v1383
    %v1385 = vrot.slane %v1373, 3
    %v1386 = vsel %vm176, %v1383, %v1385
    %v1387 = vrot.slane %v1374, 3
    %v1388 = vsel %vm176, %v1385, %v1387
    %v1395 = vsel %vm176, %v739, %v1380
    %v1396 = vld [vmem:[%s1] sm:$0xff]
    %v1397 = vld [vmem:[%s1 + $0x8] sm:$0xff]
    %v1398 = vld [vmem:[%s1 + $0x10] sm:$0xff]
    %v1399 = vld [vmem:[%s1 + $0x18] sm:$0xff]
    %v1400 = vld [vmem:[%s1 + $0x20] sm:$0xff]
    %v1401 = vld [vmem:[%s1 + $0x28] sm:$0xff]
    %v1402 = vld [vmem:[%s1 + $0x30] sm:$0xff]
    %v1403 = vld [vmem:[%s1 + $0x38] sm:$0xff]
    %v1404 = vld [vmem:[%s1 + $0x40] sm:$0xff]
    %v1405 = vld [vmem:[%s1 + $0x48] sm:$0xff]
    %v1406 = vld [vmem:[%s1 + $0x50] sm:$0xff]
    %v1407 = vld [vmem:[%s1 + $0x58] sm:$0xff]
    %v1408 = vld [vmem:[%s1 + $0x60] sm:$0xff]
    %v1409 = vld [vmem:[%s1 + $0x68] sm:$0xff]
    %v1410 = vld [vmem:[%s1 + $0x70] sm:$0xff]
    %v1411 = vld [vmem:[%s1 + $0x78] sm:$0xff]
    %1412 = vmatprep.subr.mxu0 0.0
    %1413 = vmatpush1.msra.mxu0 %v1396
    %1414 = vmatprep.subr.mxu0 0.0
    %1415 = vmatpush1.msra.mxu0 %v1397
    %1416 = vmatprep.subr.mxu0 0.0
    %1417 = vmatpush1.msra.mxu0 %v1398
    %1418 = vmatprep.subr.mxu0 0.0
    %1419 = vmatpush1.msra.mxu0 %v1399
    %1420 = vmatprep.subr.mxu0 0.0
    %1421 = vmatpush1.msra.mxu0 %v1400
    %1422 = vmatprep.subr.mxu0 0.0
    %1423 = vmatpush1.msra.mxu0 %v1401
    %1424 = vmatprep.subr.mxu0 0.0
    %1425 = vmatpush1.msra.mxu0 %v1402
    %1426 = vmatprep.subr.mxu0 0.0
    %1427 = vmatpush1.msra.mxu0 %v1403
    %1428 = vmatprep.subr.mxu0 0.0
    %1429 = vmatpush1.msra.mxu0 %v1404
    %1430 = vmatprep.subr.mxu0 0.0
    %1431 = vmatpush1.msra.mxu0 %v1405
    %1432 = vmatprep.subr.mxu0 0.0
    %1433 = vmatpush1.msra.mxu0 %v1406
    %1434 = vmatprep.subr.mxu0 0.0
    %1435 = vmatpush1.msra.mxu0 %v1407
    %1436 = vmatprep.subr.mxu0 0.0
    %1437 = vmatpush1.msra.mxu0 %v1408
    %1438 = vmatprep.subr.mxu0 0.0
    %1439 = vmatpush1.msra.mxu0 %v1409
    %1440 = vmatprep.subr.mxu0 0.0
    %1441 = vmatpush1.msra.mxu0 %v1410
    %1442 = vmatprep.subr.mxu0 0.0
    %1443 = vmatpush1.msra.mxu0 %v1411
    %1444 = vmatprep.subr.mxu0 0.0
    %1445 = vmatpush1.msra.mxu0 0.0
    %1446 = vmatprep.subr.mxu0 0.0
    %1447 = vmatpush1.msra.mxu0 0.0
    %1448 = vmatprep.subr.mxu0 0.0
    %1449 = vmatpush1.msra.mxu0 0.0
    %1450 = vmatprep.subr.mxu0 0.0
    %1451 = vmatpush1.msra.mxu0 0.0
    %1452 = vmatprep.subr.mxu0 0.0
    %1453 = vmatpush1.msra.mxu0 0.0
    %1454 = vmatprep.subr.mxu0 0.0
    %1455 = vmatpush1.msra.mxu0 0.0
    %1456 = vmatprep.subr.mxu0 0.0
    %1457 = vmatpush1.msra.mxu0 0.0
    %1458 = vmatprep.subr.mxu0 0.0
    %1459 = vmatpush1.msra.mxu0 0.0
    %1460 = vmatprep.subr.mxu0 0.0
    %1461 = vmatpush1.msra.mxu0 0.0
    %1462 = vmatprep.subr.mxu0 0.0
    %1463 = vmatpush1.msra.mxu0 0.0
    %1464 = vmatprep.subr.mxu0 0.0
    %1465 = vmatpush1.msra.mxu0 0.0
    %1466 = vmatprep.subr.mxu0 0.0
    %1467 = vmatpush1.msra.mxu0 0.0
    %1468 = vmatprep.subr.mxu0 0.0
    %1469 = vmatpush1.msra.mxu0 0.0
    %1470 = vmatprep.subr.mxu0 0.0
    %1471 = vmatpush1.msra.mxu0 0.0
    %1472 = vmatprep.subr.mxu0 0.0
    %1473 = vmatpush1.msra.mxu0 0.0
    %1474 = vmatprep.subr.mxu0 0.0
    %1475 = vmatpush1.msra.mxu0 0.0
    %1476 = vmatprep.mubr.f32.mxu0 0.0
    %1477 = vmatmul.mubr.f32.gmra.mrb[0].mxu0 %v735
    %v1478 = vpop.f32.mrb[0].mxu0
    %v1479 = vadd.f32 0.0, %v1478
    %v1480 = vpop.f32.mrb[0].mxu0
    %1481 = vmatprep.mubr.f32.mxu0 0.0
    %1482 = vmatmul.mubr.f32.gmra.mrb[0].mxu0 %v736
    %v1483 = vpop.f32.mrb[0].mxu0
    %v1484 = vadd.f32 0.0, %v1483
    %v1485 = vpop.f32.mrb[0].mxu0
    %1486 = vmatprep.mubr.f32.mxu0 0.0
    %1487 = vmatmul.mubr.f32.gmra.mrb[0].mxu0 %v737
    %v1488 = vpop.f32.mrb[0].mxu0
    %v1489 = vadd.f32 0.0, %v1488
    %v1490 = vpop.f32.mrb[0].mxu0
    %1491 = vmatprep.mubr.f32.mxu0 0.0
    %1492 = vmatmul.mubr.f32.gmra.mrb[0].mxu0 %v738
    %v1493 = vpop.f32.mrb[0].mxu0
    %v1494 = vadd.f32 0.0, %v1493
    %v1495 = vpop.f32.mrb[0].mxu0
    %1496 = vmatprep.mubr.f32.mxu0 0.0
    %1497 = vmatmul.mubr.f32.gmra.mrb[0].mxu0 %v1395
    %v1498 = vpop.f32.mrb[0].mxu0
    %v1499 = vadd.f32 0.0, %v1498
    %v1500 = vpop.f32.mrb[0].mxu0
    %1501 = vmatprep.mubr.f32.mxu0 0.0
    %1502 = vmatmul.mubr.f32.gmra.mrb[0].mxu0 %v1382
    %v1503 = vpop.f32.mrb[0].mxu0
    %v1504 = vadd.f32 0.0, %v1503
    %v1505 = vpop.f32.mrb[0].mxu0
    %1506 = vmatprep.mubr.f32.mxu0 0.0
    %1507 = vmatmul.mubr.f32.gmra.mrb[0].mxu0 %v1384
    %v1508 = vpop.f32.mrb[0].mxu0
    %v1509 = vadd.f32 0.0, %v1508
    %v1510 = vpop.f32.mrb[0].mxu0
    %1511 = vmatprep.mubr.f32.mxu0 0.0
    %1512 = vmatmul.mubr.f32.gmra.mrb[0].mxu0 %v1386
    %v1513 = vpop.f32.mrb[0].mxu0
    %v1514 = vadd.f32 0.0, %v1513
    %v1515 = vpop.f32.mrb[0].mxu0
    %1516 = vmatprep.mubr.f32.mxu0 0.0
    %1517 = vmatmul.mubr.f32.gmra.mrb[0].mxu0 %v1388
    %v1518 = vpop.f32.mrb[0].mxu0
    %v1519 = vadd.f32 0.0, %v1518
    %v1520 = vpop.f32.mrb[0].mxu0
    %1521 = vmatprep.mubr.f32.mxu0 0.0
    %1522 = vmatmul.mubr.f32.gmra.mrb[0].mxu0 %v1387
    %v1523 = vpop.f32.mrb[0].mxu0
    %v1524 = vadd.f32 0.0, %v1523
    %v1525 = vpop.f32.mrb[0].mxu0
    %1526 = vdwg.mxu0
    %v1527 = vld [vmem:[%s2] sm:$0x1]
    %v1529 = vlaneseq
    %v1530 = vshrl.u32 %v1529, 7
    %v1531 = vsub.s32 0, %v1530
    %v1532 = vrot.slane %v1527, %v1531
    %v1534 = vmul.f32 %v1479, %v1532
    %v1535 = vmul.f32 %v1484, %v1532
    %v1536 = vmul.f32 %v1489, %v1532
    %v1537 = vmul.f32 %v1494, %v1532
    %v1538 = vmul.f32 %v1499, %v1532
    %v1539 = vmul.f32 %v1504, %v1532
    %v1540 = vmul.f32 %v1509, %v1532
    %v1541 = vmul.f32 %v1514, %v1532
    %v1542 = vmul.f32 %v1519, %v1532
    %v1543 = vmul.f32 %v1524, %v1532
    %v1544 = vld [vmem:[%s3] sm:$0x1]
    %v1546 = vlaneseq
    %v1547 = vshrl.u32 %v1546, 7
    %v1548 = vsub.s32 0, %v1547
    %v1549 = vrot.slane %v1544, %v1548
    %v1551 = vadd.f32 %v1534, %v1549
    %v1552 = vadd.f32 %v1535, %v1549
    %v1553 = vadd.f32 %v1536, %v1549
    %v1554 = vadd.f32 %v1537, %v1549
    %v1555 = vadd.f32 %v1538, %v1549
    %v1556 = vadd.f32 %v1539, %v1549
    %v1557 = vadd.f32 %v1540, %v1549
    %v1558 = vadd.f32 %v1541, %v1549
    %v1559 = vadd.f32 %v1542, %v1549
    %v1560 = vadd.f32 %v1543, %v1549
    %v1561 = vmax.f32 %v1551, 0.0
    %v1562 = vmax.f32 %v1552, 0.0
    %v1563 = vmax.f32 %v1553, 0.0
    %v1564 = vmax.f32 %v1554, 0.0
    %v1565 = vmax.f32 %v1555, 0.0
    %v1566 = vmax.f32 %v1556, 0.0
    %v1567 = vmax.f32 %v1557, 0.0
    %v1568 = vmax.f32 %v1558, 0.0
    %v1569 = vmax.f32 %v1559, 0.0
    %v1570 = vmax.f32 %v1560, 0.0
    %1571 = vst.msk [vmem:[#allocation2] sm:$0xff] %vm484, %v1561
    %1572 = vst.msk [vmem:[#allocation2 + $0x8] sm:$0xff] %vm484, %v1562
    %1573 = vst.msk [vmem:[#allocation2 + $0x10] sm:$0xff] %vm484, %v1563
    %1574 = vst.msk [vmem:[#allocation2 + $0x18] sm:$0xff] %vm484, %v1564
    %1575 = vst.msk [vmem:[#allocation2 + $0x20] sm:$0xff] %vm484, %v1565
    %1576 = vst.msk [vmem:[#allocation2 + $0x28] sm:$0xff] %vm484, %v1566
    %1577 = vst.msk [vmem:[#allocation2 + $0x30] sm:$0xff] %vm484, %v1567
    %1578 = vst.msk [vmem:[#allocation2 + $0x38] sm:$0xff] %vm484, %v1568
    %1579 = vst.msk [vmem:[#allocation2 + $0x40] sm:$0xff] %vm484, %v1569
    %vm1580 = vcmask 254976
    %1581 = vst.msk [vmem:[#allocation2 + $0x48] sm:$0x3] %vm1580, %v1570
    %v1582 = vld [vmem:[#allocation2] ss:$2 sm:$0xff]
    %s1583 = scalar_lea.vmem [#allocation2], 16
    %v1584 = vld [vmem:[%s1583] ss:$2 sm:$0xff]
    %s1585 = scalar_lea.vmem [#allocation2], 32
    %v1586 = vld [vmem:[%s1585] ss:$2 sm:$0x3]
    %s1587 = scalar_lea.vmem [#allocation2], 1
    %v1588 = vld [vmem:[%s1587] ss:$2 sm:$0xff]
    %s1589 = scalar_lea.vmem [#allocation2], 17
    %v1590 = vld [vmem:[%s1589] ss:$2 sm:$0xff]
    %s1591 = scalar_lea.vmem [#allocation2], 33
    %v1592 = vld [vmem:[%s1591] ss:$2 sm:$0x3]
    %v1593 = vmax.f32 %v1582, %v1588
    %v1594 = vmax.f32 %v1584, %v1590
    %v1595 = vmax.f32 %v1586, %v1592
    %v1599 = vrot.slane %v1593, 6
    %v1600 = vrot.slane %v1594, 6
    %v1601 = vsel %vm99, %v1599, %v1600
    %v1602 = vrot.slane %v1595, 6
    %v1603 = vsel %vm99, %v1600, %v1602
    %v1607 = vsel %vm99, 0.0, %v1599
    %v1608 = vsel %vm201, %v1603, 0.0
    %v1610 = vrot.slane %v1607, 1
    %1611 = vrot.lane.b32.xlu0 %v1610, 32
    %v1612 = vpop.permute.xlu0 %1611
    %v1614 = vrot.slane %v1607, 2
    %v1615 = vrot.slane %v1601, 2
    %v1616 = vsel %vm151, %v1614, %v1615
    %1617 = vrot.lane.b32.xlu0 %v1616, 64
    %v1618 = vpop.permute.xlu0 %1617
    %v1620 = vrot.slane %v1607, 3
    %v1621 = vrot.slane %v1601, 3
    %v1622 = vsel %vm176, %v1620, %v1621
    %1623 = vrot.lane.b32.xlu0 %v1622, 96
    %v1624 = vpop.permute.xlu0 %1623
    %v1626 = vrot.slane %v1607, 4
    %v1627 = vrot.slane %v1601, 4
    %v1628 = vsel %vm201, %v1626, %v1627
    %v1630 = vrot.slane %v1607, 5
    %v1631 = vrot.slane %v1601, 5
    %v1632 = vsel %vm228, %v1630, %v1631
    %1633 = vrot.lane.b32.xlu0 %v1632, 32
    %v1634 = vpop.permute.xlu0 %1633
    %v1636 = vrot.slane %v1607, 6
    %v1637 = vrot.slane %v1601, 6
    %v1638 = vsel %vm99, %v1636, %v1637
    %1639 = vrot.lane.b32.xlu0 %v1638, 64
    %v1640 = vpop.permute.xlu0 %1639
    %v1642 = vrot.slane %v1607, 7
    %v1643 = vrot.slane %v1601, 7
    %v1644 = vsel %vm281, %v1642, %v1643
    %1645 = vrot.lane.b32.xlu0 %v1644, 96
    %v1646 = vpop.permute.xlu0 %1645
    %v1648 = vrot.slane %v1601, 1
    %1649 = vrot.lane.b32.xlu0 %v1648, 32
    %v1650 = vpop.permute.xlu0 %1649
    %v1653 = vrot.slane %v1608, 2
    %v1654 = vsel %vm151, %v1615, %v1653
    %1655 = vrot.lane.b32.xlu0 %v1654, 64
    %v1656 = vpop.permute.xlu0 %1655
    %v1658 = vrot.slane %v1608, 3
    %v1659 = vsel %vm176, %v1621, %v1658
    %1660 = vrot.lane.b32.xlu0 %v1659, 96
    %v1661 = vpop.permute.xlu0 %1660
    %v1663 = vrot.slane %v1608, 4
    %v1664 = vsel %vm201, %v1627, %v1663
    %v1666 = vrot.slane %v1608, 5
    %v1667 = vsel %vm228, %v1631, %v1666
    %1668 = vrot.lane.b32.xlu0 %v1667, 32
    %v1669 = vpop.permute.xlu0 %1668
    %v1671 = vrot.slane %v1608, 6
    %v1672 = vsel %vm99, %v1637, %v1671
    %1673 = vrot.lane.b32.xlu0 %v1672, 64
    %v1674 = vpop.permute.xlu0 %1673
    %v1676 = vrot.slane %v1608, 7
    %v1677 = vsel %vm281, %v1643, %v1676
    %1678 = vrot.lane.b32.xlu0 %v1677, 96
    %v1679 = vpop.permute.xlu0 %1678
    %v1681 = vsel %vm484, %v1607, %v1612
    %v1682 = vsel %vm734, %v1681, %v1618
    %vm1683 = vcmask 785408
    %v1684 = vsel %vm1683, %v1682, %v1624
    %v1685 = vsel %vm484, %v1628, %v1634
    %v1686 = vsel %vm734, %v1685, %v1640
    %v1687 = vsel %vm1683, %v1686, %v1646
    %v1688 = vsel %vm484, %v1601, %v1650
    %v1689 = vsel %vm734, %v1688, %v1656
    %v1690 = vsel %vm1683, %v1689, %v1661
    %v1691 = vsel %vm484, %v1664, %v1669
    %v1692 = vsel %vm734, %v1691, %v1674
    %v1693 = vsel %vm1683, %v1692, %v1679
    %s1694 = scalar_lea.vmem [#allocation2], 37
    %v1695 = vld [vmem:[%s1694] ss:$2 sm:$0xff]
    %s1696 = scalar_lea.vmem [#allocation2], 53
    %v1697 = vld [vmem:[%s1696] ss:$2 sm:$0xff]
    %s1698 = scalar_lea.vmem [#allocation2], 69
    %v1699 = vld [vmem:[%s1698] ss:$2 sm:$0x3]
    %s1700 = scalar_lea.vmem [#allocation2], 38
    %v1701 = vld [vmem:[%s1700] ss:$2 sm:$0xff]
    %s1702 = scalar_lea.vmem [#allocation2], 54
    %v1703 = vld [vmem:[%s1702] ss:$2 sm:$0xff]
    %s1704 = scalar_lea.vmem [#allocation2], 70
    %v1705 = vld [vmem:[%s1704] ss:$2 sm:$0x3]
    %v1706 = vmax.f32 %v1695, %v1701
    %v1707 = vmax.f32 %v1697, %v1703
    %v1708 = vmax.f32 %v1699, %v1705
    %v1712 = vrot.slane %v1706, 6
    %v1713 = vrot.slane %v1707, 6
    %v1714 = vsel %vm99, %v1712, %v1713
    %v1715 = vrot.slane %v1708, 6
    %v1716 = vsel %vm99, %v1713, %v1715
    %v1720 = vsel %vm99, 0.0, %v1712
    %v1721 = vsel %vm201, %v1716, 0.0
    %v1723 = vrot.slane %v1720, 1
    %1724 = vrot.lane.b32.xlu0 %v1723, 32
    %v1725 = vpop.permute.xlu0 %1724
    %v1727 = vrot.slane %v1720, 2
    %v1728 = vrot.slane %v1714, 2
    %v1729 = vsel %vm151, %v1727, %v1728
    %1730 = vrot.lane.b32.xlu0 %v1729, 64
    %v1731 = vpop.permute.xlu0 %1730
    %v1733 = vrot.slane %v1720, 3
    %v1734 = vrot.slane %v1714, 3
    %v1735 = vsel %vm176, %v1733, %v1734
    %1736 = vrot.lane.b32.xlu0 %v1735, 96
    %v1737 = vpop.permute.xlu0 %1736
    %v1739 = vrot.slane %v1720, 4
    %v1740 = vrot.slane %v1714, 4
    %v1741 = vsel %vm201, %v1739, %v1740
    %v1743 = vrot.slane %v1720, 5
    %v1744 = vrot.slane %v1714, 5
    %v1745 = vsel %vm228, %v1743, %v1744
    %1746 = vrot.lane.b32.xlu0 %v1745, 32
    %v1747 = vpop.permute.xlu0 %1746
    %v1749 = vrot.slane %v1720, 6
    %v1750 = vrot.slane %v1714, 6
    %v1751 = vsel %vm99, %v1749, %v1750
    %1752 = vrot.lane.b32.xlu0 %v1751, 64
    %v1753 = vpop.permute.xlu0 %1752
    %v1755 = vrot.slane %v1720, 7
    %v1756 = vrot.slane %v1714, 7
    %v1757 = vsel %vm281, %v1755, %v1756
    %1758 = vrot.lane.b32.xlu0 %v1757, 96
    %v1759 = vpop.permute.xlu0 %1758
    %v1761 = vrot.slane %v1714, 1
    %1762 = vrot.lane.b32.xlu0 %v1761, 32
    %v1763 = vpop.permute.xlu0 %1762
    %v1766 = vrot.slane %v1721, 2
    %v1767 = vsel %vm151, %v1728, %v1766
    %1768 = vrot.lane.b32.xlu0 %v1767, 64
    %v1769 = vpop.permute.xlu0 %1768
    %v1771 = vrot.slane %v1721, 3
    %v1772 = vsel %vm176, %v1734, %v1771
    %1773 = vrot.lane.b32.xlu0 %v1772, 96
    %v1774 = vpop.permute.xlu0 %1773
    %v1776 = vrot.slane %v1721, 4
    %v1777 = vsel %vm201, %v1740, %v1776
    %v1779 = vrot.slane %v1721, 5
    %v1780 = vsel %vm228, %v1744, %v1779
    %1781 = vrot.lane.b32.xlu0 %v1780, 32
    %v1782 = vpop.permute.xlu0 %1781
    %v1784 = vrot.slane %v1721, 6
    %v1785 = vsel %vm99, %v1750, %v1784
    %1786 = vrot.lane.b32.xlu0 %v1785, 64
    %v1787 = vpop.permute.xlu0 %1786
    %v1789 = vrot.slane %v1721, 7
    %v1790 = vsel %vm281, %v1756, %v1789
    %1791 = vrot.lane.b32.xlu0 %v1790, 96
    %v1792 = vpop.permute.xlu0 %1791
    %v1794 = vsel %vm484, %v1720, %v1725
    %v1795 = vsel %vm734, %v1794, %v1731
    %v1796 = vsel %vm1683, %v1795, %v1737
    %v1797 = vsel %vm484, %v1741, %v1747
    %v1798 = vsel %vm734, %v1797, %v1753
    %v1799 = vsel %vm1683, %v1798, %v1759
    %v1800 = vsel %vm484, %v1714, %v1763
    %v1801 = vsel %vm734, %v1800, %v1769
    %v1802 = vsel %vm1683, %v1801, %v1774
    %v1803 = vsel %vm484, %v1777, %v1782
    %v1804 = vsel %vm734, %v1803, %v1787
    %v1805 = vsel %vm1683, %v1804, %v1792
    %v1810 = vrot.slane %v1796, 1
    %v1811 = vrot.slane %v1799, 1
    %v1812 = vrot.slane %v1802, 1
    %v1813 = vrot.slane %v1805, 1
    %v1818 = vsel %vm126, %v1684, %v1810
    %v1819 = vsel %vm126, %v1687, %v1811
    %v1820 = vsel %vm126, %v1690, %v1812
    %v1821 = vsel %vm126, %v1693, %v1813
    %v1822 = vld [vmem:[%s4] sm:$0xff]
    %v1823 = vld [vmem:[%s4 + $0x8] sm:$0xff]
    %v1824 = vld [vmem:[%s4 + $0x10] sm:$0xff]
    %v1825 = vld [vmem:[%s4 + $0x18] sm:$0xff]
    %v1826 = vld [vmem:[%s4 + $0x20] sm:$0xff]
    %v1827 = vld [vmem:[%s4 + $0x28] sm:$0xff]
    %v1828 = vld [vmem:[%s4 + $0x30] sm:$0xff]
    %v1829 = vld [vmem:[%s4 + $0x38] sm:$0xff]
    %v1830 = vld [vmem:[%s4 + $0x40] sm:$0xff]
    %v1831 = vld [vmem:[%s4 + $0x48] sm:$0xff]
    %v1832 = vld [vmem:[%s4 + $0x50] sm:$0xff]
    %v1833 = vld [vmem:[%s4 + $0x58] sm:$0xff]
    %v1834 = vld [vmem:[%s4 + $0x60] sm:$0xff]
    %v1835 = vld [vmem:[%s4 + $0x68] sm:$0xff]
    %v1836 = vld [vmem:[%s4 + $0x70] sm:$0xff]
    %v1837 = vld [vmem:[%s4 + $0x78] sm:$0xff]
    %v1838 = vld [vmem:[%s4 + $0x80] sm:$0xff]
    %v1839 = vld [vmem:[%s4 + $0x88] sm:$0xff]
    %v1840 = vld [vmem:[%s4 + $0x90] sm:$0xff]
    %v1841 = vld [vmem:[%s4 + $0x98] sm:$0xff]
    %v1842 = vld [vmem:[%s4 + $0xa0] sm:$0xff]
    %v1843 = vld [vmem:[%s4 + $0xa8] sm:$0xff]
    %v1844 = vld [vmem:[%s4 + $0xb0] sm:$0xff]
    %v1845 = vld [vmem:[%s4 + $0xb8] sm:$0xff]
    %v1846 = vld [vmem:[%s4 + $0xc0] sm:$0xff]
    %v1847 = vld [vmem:[%s4 + $0xc8] sm:$0xff]
    %v1848 = vld [vmem:[%s4 + $0xd0] sm:$0xff]
    %v1849 = vld [vmem:[%s4 + $0xd8] sm:$0xff]
    %v1850 = vld [vmem:[%s4 + $0xe0] sm:$0xff]
    %v1851 = vld [vmem:[%s4 + $0xe8] sm:$0xff]
    %v1852 = vld [vmem:[%s4 + $0xf0] sm:$0xff]
    %v1853 = vld [vmem:[%s4 + $0xf8] sm:$0xff]
    %v1854 = vld [vmem:[%s4 + $0x100] sm:$0xff]
    %v1855 = vld [vmem:[%s4 + $0x108] sm:$0xff]
    %v1856 = vld [vmem:[%s4 + $0x110] sm:$0xff]
    %v1857 = vld [vmem:[%s4 + $0x118] sm:$0xff]
    %v1858 = vld [vmem:[%s4 + $0x120] sm:$0xff]
    %v1859 = vld [vmem:[%s4 + $0x128] sm:$0xff]
    %v1860 = vld [vmem:[%s4 + $0x130] sm:$0xff]
    %v1861 = vld [vmem:[%s4 + $0x138] sm:$0xff]
    %v1862 = vld [vmem:[%s4 + $0x140] sm:$0xff]
    %v1863 = vld [vmem:[%s4 + $0x148] sm:$0xff]
    %v1864 = vld [vmem:[%s4 + $0x150] sm:$0xff]
    %v1865 = vld [vmem:[%s4 + $0x158] sm:$0xff]
    %v1866 = vld [vmem:[%s4 + $0x160] sm:$0xff]
    %v1867 = vld [vmem:[%s4 + $0x168] sm:$0xff]
    %v1868 = vld [vmem:[%s4 + $0x170] sm:$0xff]
    %v1869 = vld [vmem:[%s4 + $0x178] sm:$0xff]
    %v1870 = vld [vmem:[%s4 + $0x180] sm:$0xff]
    %v1871 = vld [vmem:[%s4 + $0x188] sm:$0xff]
    %v1872 = vld [vmem:[%s4 + $0x190] sm:$0xff]
    %v1873 = vld [vmem:[%s4 + $0x198] sm:$0xff]
    %v1874 = vld [vmem:[%s4 + $0x1a0] sm:$0xff]
    %v1875 = vld [vmem:[%s4 + $0x1a8] sm:$0xff]
    %v1876 = vld [vmem:[%s4 + $0x1b0] sm:$0xff]
    %v1877 = vld [vmem:[%s4 + $0x1b8] sm:$0xff]
    %v1878 = vld [vmem:[%s4 + $0x1c0] sm:$0xff]
    %v1879 = vld [vmem:[%s4 + $0x1c8] sm:$0xff]
    %v1880 = vld [vmem:[%s4 + $0x1d0] sm:$0xff]
    %v1881 = vld [vmem:[%s4 + $0x1d8] sm:$0xff]
    %v1882 = vld [vmem:[%s4 + $0x1e0] sm:$0xff]
    %v1883 = vld [vmem:[%s4 + $0x1e8] sm:$0xff]
    %v1884 = vld [vmem:[%s4 + $0x1f0] sm:$0xff]
    %v1885 = vld [vmem:[%s4 + $0x1f8] sm:$0xff]
    %1886 = vmatprep.subr.mxu0 0.0
    %1887 = vmatpush1.msra.mxu0 %v1822
    %1888 = vmatprep.subr.mxu0 0.0
    %1889 = vmatpush1.msra.mxu0 %v1823
    %1890 = vmatprep.subr.mxu0 0.0
    %1891 = vmatpush1.msra.mxu0 %v1824
    %1892 = vmatprep.subr.mxu0 0.0
    %1893 = vmatpush1.msra.mxu0 %v1825
    %1894 = vmatprep.subr.mxu0 0.0
    %1895 = vmatpush1.msra.mxu0 %v1826
    %1896 = vmatprep.subr.mxu0 0.0
    %1897 = vmatpush1.msra.mxu0 %v1827
    %1898 = vmatprep.subr.mxu0 0.0
    %1899 = vmatpush1.msra.mxu0 %v1828
    %1900 = vmatprep.subr.mxu0 0.0
    %1901 = vmatpush1.msra.mxu0 %v1829
    %1902 = vmatprep.subr.mxu0 0.0
    %1903 = vmatpush1.msra.mxu0 %v1830
    %1904 = vmatprep.subr.mxu0 0.0
    %1905 = vmatpush1.msra.mxu0 %v1831
    %1906 = vmatprep.subr.mxu0 0.0
    %1907 = vmatpush1.msra.mxu0 %v1832
    %1908 = vmatprep.subr.mxu0 0.0
    %1909 = vmatpush1.msra.mxu0 %v1833
    %1910 = vmatprep.subr.mxu0 0.0
    %1911 = vmatpush1.msra.mxu0 %v1834
    %1912 = vmatprep.subr.mxu0 0.0
    %1913 = vmatpush1.msra.mxu0 %v1835
    %1914 = vmatprep.subr.mxu0 0.0
    %1915 = vmatpush1.msra.mxu0 %v1836
    %1916 = vmatprep.subr.mxu0 0.0
    %1917 = vmatpush1.msra.mxu0 %v1837
    %1918 = vmatprep.subr.mxu0 0.0
    %1919 = vmatpush1.msra.mxu0 %v1838
    %1920 = vmatprep.subr.mxu0 0.0
    %1921 = vmatpush1.msra.mxu0 %v1839
    %1922 = vmatprep.subr.mxu0 0.0
    %1923 = vmatpush1.msra.mxu0 %v1840
    %1924 = vmatprep.subr.mxu0 0.0
    %1925 = vmatpush1.msra.mxu0 %v1841
    %1926 = vmatprep.subr.mxu0 0.0
    %1927 = vmatpush1.msra.mxu0 %v1842
    %1928 = vmatprep.subr.mxu0 0.0
    %1929 = vmatpush1.msra.mxu0 %v1843
    %1930 = vmatprep.subr.mxu0 0.0
    %1931 = vmatpush1.msra.mxu0 %v1844
    %1932 = vmatprep.subr.mxu0 0.0
    %1933 = vmatpush1.msra.mxu0 %v1845
    %1934 = vmatprep.subr.mxu0 0.0
    %1935 = vmatpush1.msra.mxu0 %v1846
    %1936 = vmatprep.subr.mxu0 0.0
    %1937 = vmatpush1.msra.mxu0 %v1847
    %1938 = vmatprep.subr.mxu0 0.0
    %1939 = vmatpush1.msra.mxu0 %v1848
    %1940 = vmatprep.subr.mxu0 0.0
    %1941 = vmatpush1.msra.mxu0 %v1849
    %1942 = vmatprep.subr.mxu0 0.0
    %1943 = vmatpush1.msra.mxu0 %v1850
    %1944 = vmatprep.subr.mxu0 0.0
    %1945 = vmatpush1.msra.mxu0 %v1851
    %1946 = vmatprep.subr.mxu0 0.0
    %1947 = vmatpush1.msra.mxu0 %v1852
    %1948 = vmatprep.subr.mxu0 0.0
    %1949 = vmatpush1.msra.mxu0 %v1853
    %1950 = vmatprep.mubr.f32.mxu0 %v1819
    %1951 = vmatmul.mubr.f32.gmra.mrb[0].mxu0 %v1818
    %v1952 = vpop.f32.mrb[0].mxu0
    %v1953 = vadd.f32 0.0, %v1952
    %v1954 = vpop.f32.mrb[0].mxu0
    %1955 = vmatprep.mubr.f32.mxu0 %v1811
    %1956 = vmatmul.mubr.f32.gmra.mrb[0].mxu0 %v1810
    %v1957 = vpop.f32.mrb[0].mxu0
    %v1958 = vadd.f32 0.0, %v1957
    %v1959 = vpop.f32.mrb[0].mxu0
    %1960 = vdwg.mxu0
    %1961 = vmatprep.subr.mxu0 0.0
    %1962 = vmatpush1.msra.mxu0 %v1854
    %1963 = vmatprep.subr.mxu0 0.0
    %1964 = vmatpush1.msra.mxu0 %v1855
    %1965 = vmatprep.subr.mxu0 0.0
    %1966 = vmatpush1.msra.mxu0 %v1856
    %1967 = vmatprep.subr.mxu0 0.0
    %1968 = vmatpush1.msra.mxu0 %v1857
    %1969 = vmatprep.subr.mxu0 0.0
    %1970 = vmatpush1.msra.mxu0 %v1858
    %1971 = vmatprep.subr.mxu0 0.0
    %1972 = vmatpush1.msra.mxu0 %v1859
    %1973 = vmatprep.subr.mxu0 0.0
    %1974 = vmatpush1.msra.mxu0 %v1860
    %1975 = vmatprep.subr.mxu0 0.0
    %1976 = vmatpush1.msra.mxu0 %v1861
    %1977 = vmatprep.subr.mxu0 0.0
    %1978 = vmatpush1.msra.mxu0 %v1862
    %1979 = vmatprep.subr.mxu0 0.0
    %1980 = vmatpush1.msra.mxu0 %v1863
    %1981 = vmatprep.subr.mxu0 0.0
    %1982 = vmatpush1.msra.mxu0 %v1864
    %1983 = vmatprep.subr.mxu0 0.0
    %1984 = vmatpush1.msra.mxu0 %v1865
    %1985 = vmatprep.subr.mxu0 0.0
    %1986 = vmatpush1.msra.mxu0 %v1866
    %1987 = vmatprep.subr.mxu0 0.0
    %1988 = vmatpush1.msra.mxu0 %v1867
    %1989 = vmatprep.subr.mxu0 0.0
    %1990 = vmatpush1.msra.mxu0 %v1868
    %1991 = vmatprep.subr.mxu0 0.0
    %1992 = vmatpush1.msra.mxu0 %v1869
    %1993 = vmatprep.subr.mxu0 0.0
    %1994 = vmatpush1.msra.mxu0 %v1870
    %1995 = vmatprep.subr.mxu0 0.0
    %1996 = vmatpush1.msra.mxu0 %v1871
    %1997 = vmatprep.subr.mxu0 0.0
    %1998 = vmatpush1.msra.mxu0 %v1872
    %1999 = vmatprep.subr.mxu0 0.0
    %2000 = vmatpush1.msra.mxu0 %v1873
    %2001 = vmatprep.subr.mxu0 0.0
    %2002 = vmatpush1.msra.mxu0 %v1874
    %2003 = vmatprep.subr.mxu0 0.0
    %2004 = vmatpush1.msra.mxu0 %v1875
    %2005 = vmatprep.subr.mxu0 0.0
    %2006 = vmatpush1.msra.mxu0 %v1876
    %2007 = vmatprep.subr.mxu0 0.0
    %2008 = vmatpush1.msra.mxu0 %v1877
    %2009 = vmatprep.subr.mxu0 0.0
    %2010 = vmatpush1.msra.mxu0 %v1878
    %2011 = vmatprep.subr.mxu0 0.0
    %2012 = vmatpush1.msra.mxu0 %v1879
    %2013 = vmatprep.subr.mxu0 0.0
    %2014 = vmatpush1.msra.mxu0 %v1880
    %2015 = vmatprep.subr.mxu0 0.0
    %2016 = vmatpush1.msra.mxu0 %v1881
    %2017 = vmatprep.subr.mxu0 0.0
    %2018 = vmatpush1.msra.mxu0 %v1882
    %2019 = vmatprep.subr.mxu0 0.0
    %2020 = vmatpush1.msra.mxu0 %v1883
    %2021 = vmatprep.subr.mxu0 0.0
    %2022 = vmatpush1.msra.mxu0 %v1884
    %2023 = vmatprep.subr.mxu0 0.0
    %2024 = vmatpush1.msra.mxu0 %v1885
    %2025 = vmatprep.mubr.f32.mxu0 %v1821
    %2026 = vmatmul.mubr.f32.gmra.mrb[0].mxu0 %v1820
    %v2027 = vpop.f32.mrb[0].mxu0
    %v2028 = vadd.f32 %v1953, %v2027
    %v2029 = vpop.f32.mrb[0].mxu0
    %2030 = vmatprep.mubr.f32.mxu0 %v1813
    %2031 = vmatmul.mubr.f32.gmra.mrb[0].mxu0 %v1812
    %v2032 = vpop.f32.mrb[0].mxu0
    %v2033 = vadd.f32 %v1958, %v2032
    %v2034 = vpop.f32.mrb[0].mxu0
    %2035 = vdwg.mxu0
    %v2036 = vld [vmem:[%s5] sm:$0x1]
    %v2038 = vlaneseq
    %v2039 = vshrl.u32 %v2038, 7
    %v2040 = vsub.s32 0, %v2039
    %v2041 = vrot.slane %v2036, %v2040
    %v2043 = vmul.f32 %v2028, %v2041
    %v2044 = vmul.f32 %v2033, %v2041
    %v2045 = vld [vmem:[%s6] sm:$0x1]
    %v2047 = vlaneseq
    %v2048 = vshrl.u32 %v2047, 7
    %v2049 = vsub.s32 0, %v2048
    %v2050 = vrot.slane %v2045, %v2049
    %v2052 = vadd.f32 %v2043, %v2050
    %v2053 = vadd.f32 %v2044, %v2050
    %v2054 = vmax.f32 %v2052, 0.0
    %v2055 = vmax.f32 %v2053, 0.0
    %2056 = vst.msk [vmem:[#allocation3] sm:$0xff] %vm734, %v2054
    %vm2057 = vcmask 521216
    %2058 = vst.msk [vmem:[#allocation3 + $0x8] sm:$0x3f] %vm2057, %v2055
    %v2059 = vld [vmem:[#allocation3] ss:$2 sm:$0x7]
    %s2060 = scalar_lea.vmem [#allocation3], 1
    %v2061 = vld [vmem:[%s2060] ss:$2 sm:$0x7]
    %v2062 = vmax.f32 %v2059, %v2061
    %s2063 = scalar_lea.vmem [#allocation3], 7
    %v2064 = vld [vmem:[%s2063] ss:$2 sm:$0x7]
    %s2065 = scalar_lea.vmem [#allocation3], 8
    %v2066 = vld [vmem:[%s2065] ss:$2 sm:$0x7]
    %v2067 = vmax.f32 %v2064, %v2066
    %v2069 = vrot.slane %v2067, 7
    %v2072 = vrot.slane %v2062, 7
    %v2074 = vrot.slane %v2067, 6
    %v2076 = vrot.slane %v2062, 6
    %v2078 = vrot.slane %v2067, 5
    %v2080 = vsel %vm281, %v2062, %v2069
    %v2081 = vsel %vm99, %v2080, %v2072
    %v2082 = vsel %vm228, %v2081, %v2074
    %v2083 = vsel %vm201, %v2082, %v2076
    %v2084 = vsel %vm176, %v2083, %v2078
    %v2085 = vld [vmem:[#allocation5] sm:$0xff]
    %v2086 = vld [vmem:[#allocation5 + $0x8] sm:$0xff]
    %v2087 = vld [vmem:[#allocation5 + $0x10] sm:$0xff]
    %v2088 = vld [vmem:[#allocation5 + $0x18] sm:$0xff]
    %v2089 = vld [vmem:[#allocation5 + $0x20] sm:$0xff]
    %v2090 = vld [vmem:[#allocation5 + $0x28] sm:$0xff]
    %v2091 = vld [vmem:[#allocation5 + $0x30] sm:$0xff]
    %v2092 = vld [vmem:[#allocation5 + $0x38] sm:$0xff]
    %v2093 = vld [vmem:[#allocation5 + $0x40] sm:$0xff]
    %v2094 = vld [vmem:[#allocation5 + $0x48] sm:$0xff]
    %v2095 = vld [vmem:[#allocation5 + $0x50] sm:$0xff]
    %v2096 = vld [vmem:[#allocation5 + $0x58] sm:$0xff]
    %v2097 = vld [vmem:[#allocation5 + $0x60] sm:$0xff]
    %v2098 = vld [vmem:[#allocation5 + $0x68] sm:$0xff]
    %v2099 = vld [vmem:[#allocation5 + $0x70] sm:$0xff]
    %v2100 = vld [vmem:[#allocation5 + $0x78] sm:$0xff]
    %v2101 = vld [vmem:[#allocation5 + $0x80] sm:$0xff]
    %v2102 = vld [vmem:[#allocation5 + $0x88] sm:$0xff]
    %v2103 = vld [vmem:[#allocation5 + $0x90] sm:$0xff]
    %v2104 = vld [vmem:[#allocation5 + $0x98] sm:$0xff]
    %v2105 = vld [vmem:[#allocation5 + $0xa0] sm:$0xff]
    %v2106 = vld [vmem:[#allocation5 + $0xa8] sm:$0xff]
    %v2107 = vld [vmem:[#allocation5 + $0xb0] sm:$0xff]
    %v2108 = vld [vmem:[#allocation5 + $0xb8] sm:$0xff]
    %v2109 = vld [vmem:[#allocation5 + $0xc0] sm:$0xff]
    %v2110 = vld [vmem:[#allocation5 + $0xc8] sm:$0xff]
    %v2111 = vld [vmem:[#allocation5 + $0xd0] sm:$0xff]
    %v2112 = vld [vmem:[#allocation5 + $0xd8] sm:$0xff]
    %v2113 = vld [vmem:[#allocation5 + $0xe0] sm:$0xff]
    %v2114 = vld [vmem:[#allocation5 + $0xe8] sm:$0xff]
    %v2115 = vld [vmem:[#allocation5 + $0xf0] sm:$0xff]
    %v2116 = vld [vmem:[#allocation5 + $0xf8] sm:$0xff]
    %v2117 = vld [vmem:[%s9] sm:$0xf]
    %v2119 = vlaneseq
    %v2120 = vshrl.u32 %v2119, 7
    %v2121 = vsub.s32 0, %v2120
    %v2122 = vrot.slane %v2117, %v2121
    %v2123 = vlaneseq
    %v2124 = vshrl.u32 %v2123, 7
    %v2125 = vsub.s32 1, %v2124
    %v2126 = vrot.slane %v2117, %v2125
    %v2127 = vlaneseq
    %v2128 = vshrl.u32 %v2127, 7
    %v2129 = vsub.s32 2, %v2128
    %v2130 = vrot.slane %v2117, %v2129
    %v2131 = vlaneseq
    %v2132 = vshrl.u32 %v2131, 7
    %v2133 = vsub.s32 3, %v2132
    %v2134 = vrot.slane %v2117, %v2133
    %v2140 = vsel %vm734, %v2084, 0
    %2142 = vmatprep.subr.mxu0 %v2086
    %2143 = vmatpush1.msra.mxu0 %v2085
    %2144 = vmatprep.subr.mxu0 %v2090
    %2145 = vmatpush1.msra.mxu0 %v2089
    %2146 = vmatprep.subr.mxu0 %v2094
    %2147 = vmatpush1.msra.mxu0 %v2093
    %2148 = vmatprep.subr.mxu0 %v2098
    %2149 = vmatpush1.msra.mxu0 %v2097
    %2150 = vmatprep.subr.mxu0 %v2102
    %2151 = vmatpush1.msra.mxu0 %v2101
    %2152 = vmatprep.subr.mxu0 %v2106
    %2153 = vmatpush1.msra.mxu0 %v2105
    %2154 = vmatprep.subr.mxu0 %v2110
    %2155 = vmatpush1.msra.mxu0 %v2109
    %2156 = vmatprep.subr.mxu0 %v2114
    %2157 = vmatpush1.msra.mxu0 %v2113
    %2158 = vmatprep.subr.mxu0 0.0
    %2159 = vmatpush1.msra.mxu0 0.0
    %2160 = vmatprep.subr.mxu0 0.0
    %2161 = vmatpush1.msra.mxu0 0.0
    %2162 = vmatprep.subr.mxu0 0.0
    %2163 = vmatpush1.msra.mxu0 0.0
    %2164 = vmatprep.subr.mxu0 0.0
    %2165 = vmatpush1.msra.mxu0 0.0
    %2166 = vmatprep.subr.mxu0 0.0
    %2167 = vmatpush1.msra.mxu0 0.0
    %2168 = vmatprep.subr.mxu0 0.0
    %2169 = vmatpush1.msra.mxu0 0.0
    %2170 = vmatprep.subr.mxu0 0.0
    %2171 = vmatpush1.msra.mxu0 0.0
    %2172 = vmatprep.subr.mxu0 0.0
    %2173 = vmatpush1.msra.mxu0 0.0
    %2174 = vmatprep.subr.mxu0 0.0
    %2175 = vmatpush1.msra.mxu0 0.0
    %2176 = vmatprep.subr.mxu0 0.0
    %2177 = vmatpush1.msra.mxu0 0.0
    %2178 = vmatprep.subr.mxu0 0.0
    %2179 = vmatpush1.msra.mxu0 0.0
    %2180 = vmatprep.subr.mxu0 0.0
    %2181 = vmatpush1.msra.mxu0 0.0
    %2182 = vmatprep.subr.mxu0 0.0
    %2183 = vmatpush1.msra.mxu0 0.0
    %2184 = vmatprep.subr.mxu0 0.0
    %2185 = vmatpush1.msra.mxu0 0.0
    %2186 = vmatprep.subr.mxu0 0.0
    %2187 = vmatpush1.msra.mxu0 0.0
    %2188 = vmatprep.subr.mxu0 0.0
    %2189 = vmatpush1.msra.mxu0 0.0
    %2190 = vmatprep.subr.mxu0 0.0
    %2191 = vmatpush1.msra.mxu0 0.0
    %2192 = vmatprep.subr.mxu0 0.0
    %2193 = vmatpush1.msra.mxu0 0.0
    %2194 = vmatprep.subr.mxu0 0.0
    %2195 = vmatpush1.msra.mxu0 0.0
    %2196 = vmatprep.subr.mxu0 0.0
    %2197 = vmatpush1.msra.mxu0 0.0
    %2198 = vmatprep.subr.mxu0 0.0
    %2199 = vmatpush1.msra.mxu0 0.0
    %2200 = vmatprep.subr.mxu0 0.0
    %2201 = vmatpush1.msra.mxu0 0.0
    %2202 = vmatprep.subr.mxu0 0.0
    %2203 = vmatpush1.msra.mxu0 0.0
    %2204 = vmatprep.subr.mxu0 0.0
    %2205 = vmatpush1.msra.mxu0 0.0
    %2206 = vmatprep.mubr.f32.mxu0 0.0
    %2207 = vmatmul.mubr.f32.gmra.mrb[0].mxu0 %v2140
    %v2208 = vpop.f32.mrb[0].mxu0
    %v2209 = vadd.f32 %v2122, %v2208
    %v2210 = vpop.f32.mrb[0].mxu0
    %v2211 = vadd.f32 %v2126, %v2210
    %2212 = vdwg.mxu0
    %2213 = vmatprep.subr.mxu0 %v2088
    %2214 = vmatpush1.msra.mxu0 %v2087
    %2215 = vmatprep.subr.mxu0 %v2092
    %2216 = vmatpush1.msra.mxu0 %v2091
    %2217 = vmatprep.subr.mxu0 %v2096
    %2218 = vmatpush1.msra.mxu0 %v2095
    %2219 = vmatprep.subr.mxu0 %v2100
    %2220 = vmatpush1.msra.mxu0 %v2099
    %2221 = vmatprep.subr.mxu0 %v2104
    %2222 = vmatpush1.msra.mxu0 %v2103
    %2223 = vmatprep.subr.mxu0 %v2108
    %2224 = vmatpush1.msra.mxu0 %v2107
    %2225 = vmatprep.subr.mxu0 %v2112
    %2226 = vmatpush1.msra.mxu0 %v2111
    %2227 = vmatprep.subr.mxu0 %v2116
    %2228 = vmatpush1.msra.mxu0 %v2115
    %2229 = vmatprep.subr.mxu0 0.0
    %2230 = vmatpush1.msra.mxu0 0.0
    %2231 = vmatprep.subr.mxu0 0.0
    %2232 = vmatpush1.msra.mxu0 0.0
    %2233 = vmatprep.subr.mxu0 0.0
    %2234 = vmatpush1.msra.mxu0 0.0
    %2235 = vmatprep.subr.mxu0 0.0
    %2236 = vmatpush1.msra.mxu0 0.0
    %2237 = vmatprep.subr.mxu0 0.0
    %2238 = vmatpush1.msra.mxu0 0.0
    %2239 = vmatprep.subr.mxu0 0.0
    %2240 = vmatpush1.msra.mxu0 0.0
    %2241 = vmatprep.subr.mxu0 0.0
    %2242 = vmatpush1.msra.mxu0 0.0
    %2243 = vmatprep.subr.mxu0 0.0
    %2244 = vmatpush1.msra.mxu0 0.0
    %2245 = vmatprep.subr.mxu0 0.0
    %2246 = vmatpush1.msra.mxu0 0.0
    %2247 = vmatprep.subr.mxu0 0.0
    %2248 = vmatpush1.msra.mxu0 0.0
    %2249 = vmatprep.subr.mxu0 0.0
    %2250 = vmatpush1.msra.mxu0 0.0
    %2251 = vmatprep.subr.mxu0 0.0
    %2252 = vmatpush1.msra.mxu0 0.0
    %2253 = vmatprep.subr.mxu0 0.0
    %2254 = vmatpush1.msra.mxu0 0.0
    %2255 = vmatprep.subr.mxu0 0.0
    %2256 = vmatpush1.msra.mxu0 0.0
    %2257 = vmatprep.subr.mxu0 0.0
    %2258 = vmatpush1.msra.mxu0 0.0
    %2259 = vmatprep.subr.mxu0 0.0
    %2260 = vmatpush1.msra.mxu0 0.0
    %2261 = vmatprep.subr.mxu0 0.0
    %2262 = vmatpush1.msra.mxu0 0.0
    %2263 = vmatprep.subr.mxu0 0.0
    %2264 = vmatpush1.msra.mxu0 0.0
    %2265 = vmatprep.subr.mxu0 0.0
    %2266 = vmatpush1.msra.mxu0 0.0
    %2267 = vmatprep.subr.mxu0 0.0
    %2268 = vmatpush1.msra.mxu0 0.0
    %2269 = vmatprep.subr.mxu0 0.0
    %2270 = vmatpush1.msra.mxu0 0.0
    %2271 = vmatprep.subr.mxu0 0.0
    %2272 = vmatpush1.msra.mxu0 0.0
    %2273 = vmatprep.subr.mxu0 0.0
    %2274 = vmatpush1.msra.mxu0 0.0
    %2275 = vmatprep.subr.mxu0 0.0
    %2276 = vmatpush1.msra.mxu0 0.0
    %2277 = vmatprep.mubr.f32.mxu0 0.0
    %2278 = vmatmul.mubr.f32.gmra.mrb[0].mxu0 %v2140
    %v2279 = vpop.f32.mrb[0].mxu0
    %v2280 = vadd.f32 %v2130, %v2279
    %v2281 = vpop.f32.mrb[0].mxu0
    %v2282 = vadd.f32 %v2134, %v2281
    %2283 = vdwg.mxu0
    %v2284 = vld [vmem:[%s8] sm:$0xff]
    %v2285 = vld [vmem:[%s8 + $0x8] sm:$0xff]
    %v2286 = vld [vmem:[%s8 + $0x10] sm:$0xff]
    %v2287 = vld [vmem:[%s8 + $0x18] sm:$0xff]
    %v2288 = vld [vmem:[%s8 + $0x20] sm:$0xff]
    %v2289 = vld [vmem:[%s8 + $0x28] sm:$0xff]
    %v2290 = vld [vmem:[%s8 + $0x30] sm:$0xff]
    %v2291 = vld [vmem:[%s8 + $0x38] sm:$0xff]
    %v2292 = vld [vmem:[%s8 + $0x40] sm:$0xff]
    %v2293 = vld [vmem:[%s8 + $0x48] sm:$0xff]
    %v2294 = vld [vmem:[%s8 + $0x50] sm:$0xff]
    %v2295 = vld [vmem:[%s8 + $0x58] sm:$0xff]
    %v2296 = vld [vmem:[%s8 + $0x60] sm:$0xff]
    %v2297 = vld [vmem:[%s8 + $0x68] sm:$0xff]
    %v2298 = vld [vmem:[%s8 + $0x70] sm:$0xff]
    %v2299 = vld [vmem:[%s8 + $0x78] sm:$0xff]
    %v2300 = vld [vmem:[%s8 + $0x80] sm:$0xff]
    %v2301 = vld [vmem:[%s8 + $0x88] sm:$0xff]
    %v2302 = vld [vmem:[%s8 + $0x90] sm:$0xff]
    %v2303 = vld [vmem:[%s8 + $0x98] sm:$0xff]
    %v2304 = vld [vmem:[%s8 + $0xa0] sm:$0xff]
    %v2305 = vld [vmem:[%s8 + $0xa8] sm:$0xff]
    %v2306 = vld [vmem:[%s8 + $0xb0] sm:$0xff]
    %v2307 = vld [vmem:[%s8 + $0xb8] sm:$0xff]
    %v2308 = vld [vmem:[%s8 + $0xc0] sm:$0xff]
    %v2309 = vld [vmem:[%s8 + $0xc8] sm:$0xff]
    %v2310 = vld [vmem:[%s8 + $0xd0] sm:$0xff]
    %v2311 = vld [vmem:[%s8 + $0xd8] sm:$0xff]
    %v2312 = vld [vmem:[%s8 + $0xe0] sm:$0xff]
    %v2313 = vld [vmem:[%s8 + $0xe8] sm:$0xff]
    %v2314 = vld [vmem:[%s8 + $0xf0] sm:$0xff]
    %v2315 = vld [vmem:[%s8 + $0xf8] sm:$0xff]
    %v2316 = vld [vmem:[%s8 + $0x100] sm:$0xff]
    %v2317 = vld [vmem:[%s8 + $0x108] sm:$0xff]
    %v2318 = vld [vmem:[%s8 + $0x110] sm:$0xff]
    %v2319 = vld [vmem:[%s8 + $0x118] sm:$0xff]
    %v2320 = vld [vmem:[%s8 + $0x120] sm:$0xff]
    %v2321 = vld [vmem:[%s8 + $0x128] sm:$0xff]
    %v2322 = vld [vmem:[%s8 + $0x130] sm:$0xff]
    %v2323 = vld [vmem:[%s8 + $0x138] sm:$0xff]
    %v2324 = vld [vmem:[%s8 + $0x140] sm:$0xff]
    %v2325 = vld [vmem:[%s8 + $0x148] sm:$0xff]
    %v2326 = vld [vmem:[%s8 + $0x150] sm:$0xff]
    %v2327 = vld [vmem:[%s8 + $0x158] sm:$0xff]
    %v2328 = vld [vmem:[%s8 + $0x160] sm:$0xff]
    %v2329 = vld [vmem:[%s8 + $0x168] sm:$0xff]
    %v2330 = vld [vmem:[%s8 + $0x170] sm:$0xff]
    %v2331 = vld [vmem:[%s8 + $0x178] sm:$0xff]
    %v2332 = vld [vmem:[%s8 + $0x180] sm:$0xff]
    %v2333 = vld [vmem:[%s8 + $0x188] sm:$0xff]
    %v2334 = vld [vmem:[%s8 + $0x190] sm:$0xff]
    %v2335 = vld [vmem:[%s8 + $0x198] sm:$0xff]
    %v2336 = vld [vmem:[%s8 + $0x1a0] sm:$0xff]
    %v2337 = vld [vmem:[%s8 + $0x1a8] sm:$0xff]
    %v2338 = vld [vmem:[%s8 + $0x1b0] sm:$0xff]
    %v2339 = vld [vmem:[%s8 + $0x1b8] sm:$0xff]
    %v2340 = vld [vmem:[%s8 + $0x1c0] sm:$0xff]
    %v2341 = vld [vmem:[%s8 + $0x1c8] sm:$0xff]
    %v2342 = vld [vmem:[%s8 + $0x1d0] sm:$0xff]
    %v2343 = vld [vmem:[%s8 + $0x1d8] sm:$0xff]
    %v2344 = vld [vmem:[%s8 + $0x1e0] sm:$0xff]
    %v2345 = vld [vmem:[%s8 + $0x1e8] sm:$0xff]
    %v2346 = vld [vmem:[%s8 + $0x1f0] sm:$0xff]
    %v2347 = vld [vmem:[%s8 + $0x1f8] sm:$0xff]
    %v2348 = vld [vmem:[%s10] sm:$0xff]
    %v2349 = vld [vmem:[%s10 + $0x8] sm:$0xff]
    %v2350 = vld [vmem:[%s10 + $0x10] sm:$0xff]
    %v2351 = vld [vmem:[%s10 + $0x18] sm:$0xff]
    %v2352 = vld [vmem:[%s10 + $0x20] sm:$0xff]
    %v2353 = vld [vmem:[%s10 + $0x28] sm:$0xff]
    %v2354 = vld [vmem:[%s10 + $0x30] sm:$0xff]
    %v2355 = vld [vmem:[%s10 + $0x38] sm:$0xff]
    %v2356 = vld [vmem:[%s10 + $0x40] sm:$0xff]
    %v2357 = vld [vmem:[%s10 + $0x48] sm:$0xff]
    %v2358 = vld [vmem:[%s10 + $0x50] sm:$0xff]
    %v2359 = vld [vmem:[%s10 + $0x58] sm:$0xff]
    %v2360 = vld [vmem:[%s10 + $0x60] sm:$0xff]
    %v2361 = vld [vmem:[%s10 + $0x68] sm:$0xff]
    %v2362 = vld [vmem:[%s10 + $0x70] sm:$0xff]
    %v2363 = vld [vmem:[%s10 + $0x78] sm:$0xff]
    %v2364 = vld [vmem:[%s10 + $0x80] sm:$0xff]
    %v2365 = vld [vmem:[%s10 + $0x88] sm:$0xff]
    %v2366 = vld [vmem:[%s10 + $0x90] sm:$0xff]
    %v2367 = vld [vmem:[%s10 + $0x98] sm:$0xff]
    %v2368 = vld [vmem:[%s10 + $0xa0] sm:$0xff]
    %v2369 = vld [vmem:[%s10 + $0xa8] sm:$0xff]
    %v2370 = vld [vmem:[%s10 + $0xb0] sm:$0xff]
    %v2371 = vld [vmem:[%s10 + $0xb8] sm:$0xff]
    %v2372 = vld [vmem:[%s10 + $0xc0] sm:$0xff]
    %v2373 = vld [vmem:[%s10 + $0xc8] sm:$0xff]
    %v2374 = vld [vmem:[%s10 + $0xd0] sm:$0xff]
    %v2375 = vld [vmem:[%s10 + $0xd8] sm:$0xff]
    %v2376 = vld [vmem:[%s10 + $0xe0] sm:$0xff]
    %v2377 = vld [vmem:[%s10 + $0xe8] sm:$0xff]
    %v2378 = vld [vmem:[%s10 + $0xf0] sm:$0xff]
    %v2379 = vld [vmem:[%s10 + $0xf8] sm:$0xff]
    %v2380 = vld [vmem:[%s10 + $0x100] sm:$0xff]
    %v2381 = vld [vmem:[%s10 + $0x108] sm:$0xff]
    %v2382 = vld [vmem:[%s10 + $0x110] sm:$0xff]
    %v2383 = vld [vmem:[%s10 + $0x118] sm:$0xff]
    %v2384 = vld [vmem:[%s10 + $0x120] sm:$0xff]
    %v2385 = vld [vmem:[%s10 + $0x128] sm:$0xff]
    %v2386 = vld [vmem:[%s10 + $0x130] sm:$0xff]
    %v2387 = vld [vmem:[%s10 + $0x138] sm:$0xff]
    %v2388 = vld [vmem:[%s10 + $0x140] sm:$0xff]
    %v2389 = vld [vmem:[%s10 + $0x148] sm:$0xff]
    %v2390 = vld [vmem:[%s10 + $0x150] sm:$0xff]
    %v2391 = vld [vmem:[%s10 + $0x158] sm:$0xff]
    %v2392 = vld [vmem:[%s10 + $0x160] sm:$0xff]
    %v2393 = vld [vmem:[%s10 + $0x168] sm:$0xff]
    %v2394 = vld [vmem:[%s10 + $0x170] sm:$0xff]
    %v2395 = vld [vmem:[%s10 + $0x178] sm:$0xff]
    %v2396 = vld [vmem:[%s10 + $0x180] sm:$0xff]
    %v2397 = vld [vmem:[%s10 + $0x188] sm:$0xff]
    %v2398 = vld [vmem:[%s10 + $0x190] sm:$0xff]
    %v2399 = vld [vmem:[%s10 + $0x198] sm:$0xff]
    %v2400 = vld [vmem:[%s10 + $0x1a0] sm:$0xff]
    %v2401 = vld [vmem:[%s10 + $0x1a8] sm:$0xff]
    %v2402 = vld [vmem:[%s10 + $0x1b0] sm:$0xff]
    %v2403 = vld [vmem:[%s10 + $0x1b8] sm:$0xff]
    %v2404 = vld [vmem:[%s10 + $0x1c0] sm:$0xff]
    %v2405 = vld [vmem:[%s10 + $0x1c8] sm:$0xff]
    %v2406 = vld [vmem:[%s10 + $0x1d0] sm:$0xff]
    %v2407 = vld [vmem:[%s10 + $0x1d8] sm:$0xff]
    %v2408 = vld [vmem:[%s10 + $0x1e0] sm:$0xff]
    %v2409 = vld [vmem:[%s10 + $0x1e8] sm:$0xff]
    %v2410 = vld [vmem:[%s10 + $0x1f0] sm:$0xff]
    %v2411 = vld [vmem:[%s10 + $0x1f8] sm:$0xff]
    %v2412 = vld [vmem:[#allocation8] sm:$0xff]
    %v2413 = vld [vmem:[#allocation8 + $0x8] sm:$0xff]
    %v2414 = vld [vmem:[#allocation8 + $0x10] sm:$0xff]
    %v2415 = vld [vmem:[#allocation8 + $0x18] sm:$0xff]
    %v2416 = vld [vmem:[#allocation8 + $0x20] sm:$0xff]
    %v2417 = vld [vmem:[#allocation8 + $0x28] sm:$0xff]
    %v2418 = vld [vmem:[#allocation8 + $0x30] sm:$0xff]
    %v2419 = vld [vmem:[#allocation8 + $0x38] sm:$0xff]
    %v2420 = vld [vmem:[#allocation8 + $0x40] sm:$0xff]
    %v2421 = vld [vmem:[#allocation8 + $0x48] sm:$0xff]
    %v2422 = vld [vmem:[#allocation8 + $0x50] sm:$0xff]
    %v2423 = vld [vmem:[#allocation8 + $0x58] sm:$0xff]
    %v2424 = vld [vmem:[#allocation8 + $0x60] sm:$0xff]
    %v2425 = vld [vmem:[#allocation8 + $0x68] sm:$0xff]
    %v2426 = vld [vmem:[#allocation8 + $0x70] sm:$0xff]
    %v2427 = vld [vmem:[#allocation8 + $0x78] sm:$0xff]
    %v2428 = vld [vmem:[#allocation8 + $0x80] sm:$0xff]
    %v2429 = vld [vmem:[#allocation8 + $0x88] sm:$0xff]
    %v2430 = vld [vmem:[#allocation8 + $0x90] sm:$0xff]
    %v2431 = vld [vmem:[#allocation8 + $0x98] sm:$0xff]
    %v2432 = vld [vmem:[#allocation8 + $0xa0] sm:$0xff]
    %v2433 = vld [vmem:[#allocation8 + $0xa8] sm:$0xff]
    %v2434 = vld [vmem:[#allocation8 + $0xb0] sm:$0xff]
    %v2435 = vld [vmem:[#allocation8 + $0xb8] sm:$0xff]
    %v2436 = vld [vmem:[#allocation8 + $0xc0] sm:$0xff]
    %v2437 = vld [vmem:[#allocation8 + $0xc8] sm:$0xff]
    %v2438 = vld [vmem:[#allocation8 + $0xd0] sm:$0xff]
    %v2439 = vld [vmem:[#allocation8 + $0xd8] sm:$0xff]
    %v2440 = vld [vmem:[#allocation8 + $0xe0] sm:$0xff]
    %v2441 = vld [vmem:[#allocation8 + $0xe8] sm:$0xff]
    %v2442 = vld [vmem:[#allocation8 + $0xf0] sm:$0xff]
    %v2443 = vld [vmem:[#allocation8 + $0xf8] sm:$0xff]
    %v2444 = vld [vmem:[#allocation8 + $0x100] sm:$0xff]
    %v2445 = vld [vmem:[#allocation8 + $0x108] sm:$0xff]
    %v2446 = vld [vmem:[#allocation8 + $0x110] sm:$0xff]
    %v2447 = vld [vmem:[#allocation8 + $0x118] sm:$0xff]
    %v2448 = vld [vmem:[#allocation8 + $0x120] sm:$0xff]
    %v2449 = vld [vmem:[#allocation8 + $0x128] sm:$0xff]
    %v2450 = vld [vmem:[#allocation8 + $0x130] sm:$0xff]
    %v2451 = vld [vmem:[#allocation8 + $0x138] sm:$0xff]
    %v2452 = vld [vmem:[#allocation8 + $0x140] sm:$0xff]
    %v2453 = vld [vmem:[#allocation8 + $0x148] sm:$0xff]
    %v2454 = vld [vmem:[#allocation8 + $0x150] sm:$0xff]
    %v2455 = vld [vmem:[#allocation8 + $0x158] sm:$0xff]
    %v2456 = vld [vmem:[#allocation8 + $0x160] sm:$0xff]
    %v2457 = vld [vmem:[#allocation8 + $0x168] sm:$0xff]
    %v2458 = vld [vmem:[#allocation8 + $0x170] sm:$0xff]
    %v2459 = vld [vmem:[#allocation8 + $0x178] sm:$0xff]
    %v2460 = vld [vmem:[#allocation8 + $0x180] sm:$0xff]
    %v2461 = vld [vmem:[#allocation8 + $0x188] sm:$0xff]
    %v2462 = vld [vmem:[#allocation8 + $0x190] sm:$0xff]
    %v2463 = vld [vmem:[#allocation8 + $0x198] sm:$0xff]
    %v2464 = vld [vmem:[#allocation8 + $0x1a0] sm:$0xff]
    %v2465 = vld [vmem:[#allocation8 + $0x1a8] sm:$0xff]
    %v2466 = vld [vmem:[#allocation8 + $0x1b0] sm:$0xff]
    %v2467 = vld [vmem:[#allocation8 + $0x1b8] sm:$0xff]
    %v2468 = vld [vmem:[#allocation8 + $0x1c0] sm:$0xff]
    %v2469 = vld [vmem:[#allocation8 + $0x1c8] sm:$0xff]
    %v2470 = vld [vmem:[#allocation8 + $0x1d0] sm:$0xff]
    %v2471 = vld [vmem:[#allocation8 + $0x1d8] sm:$0xff]
    %v2472 = vld [vmem:[#allocation8 + $0x1e0] sm:$0xff]
    %v2473 = vld [vmem:[#allocation8 + $0x1e8] sm:$0xff]
    %v2474 = vld [vmem:[#allocation8 + $0x1f0] sm:$0xff]
    %v2475 = vld [vmem:[#allocation8 + $0x1f8] sm:$0xff]
    %v2476 = vld [vmem:[%s12] sm:$0xf]
    %2477 = vmatprep.subr.mxu0 %v2285
    %2478 = vmatpush1.msra.mxu0 %v2284
    %2479 = vmatprep.subr.mxu0 %v2289
    %2480 = vmatpush1.msra.mxu0 %v2288
    %2481 = vmatprep.subr.mxu0 %v2293
    %2482 = vmatpush1.msra.mxu0 %v2292
    %2483 = vmatprep.subr.mxu0 %v2297
    %2484 = vmatpush1.msra.mxu0 %v2296
    %2485 = vmatprep.subr.mxu0 %v2301
    %2486 = vmatpush1.msra.mxu0 %v2300
    %2487 = vmatprep.subr.mxu0 %v2305
    %2488 = vmatpush1.msra.mxu0 %v2304
    %2489 = vmatprep.subr.mxu0 %v2309
    %2490 = vmatpush1.msra.mxu0 %v2308
    %2491 = vmatprep.subr.mxu0 %v2313
    %2492 = vmatpush1.msra.mxu0 %v2312
    %2493 = vmatprep.subr.mxu0 %v2317
    %2494 = vmatpush1.msra.mxu0 %v2316
    %2495 = vmatprep.subr.mxu0 %v2321
    %2496 = vmatpush1.msra.mxu0 %v2320
    %2497 = vmatprep.subr.mxu0 %v2325
    %2498 = vmatpush1.msra.mxu0 %v2324
    %2499 = vmatprep.subr.mxu0 %v2329
    %2500 = vmatpush1.msra.mxu0 %v2328
    %2501 = vmatprep.subr.mxu0 %v2333
    %2502 = vmatpush1.msra.mxu0 %v2332
    %2503 = vmatprep.subr.mxu0 %v2337
    %2504 = vmatpush1.msra.mxu0 %v2336
    %2505 = vmatprep.subr.mxu0 %v2341
    %2506 = vmatpush1.msra.mxu0 %v2340
    %2507 = vmatprep.subr.mxu0 %v2345
    %2508 = vmatpush1.msra.mxu0 %v2344
    %2509 = vmatprep.subr.mxu0 0.0
    %2510 = vmatpush1.msra.mxu0 0.0
    %2511 = vmatprep.subr.mxu0 0.0
    %2512 = vmatpush1.msra.mxu0 0.0
    %2513 = vmatprep.subr.mxu0 0.0
    %2514 = vmatpush1.msra.mxu0 0.0
    %2515 = vmatprep.subr.mxu0 0.0
    %2516 = vmatpush1.msra.mxu0 0.0
    %2517 = vmatprep.subr.mxu0 0.0
    %2518 = vmatpush1.msra.mxu0 0.0
    %2519 = vmatprep.subr.mxu0 0.0
    %2520 = vmatpush1.msra.mxu0 0.0
    %2521 = vmatprep.subr.mxu0 0.0
    %2522 = vmatpush1.msra.mxu0 0.0
    %2523 = vmatprep.subr.mxu0 0.0
    %2524 = vmatpush1.msra.mxu0 0.0
    %2525 = vmatprep.subr.mxu0 0.0
    %2526 = vmatpush1.msra.mxu0 0.0
    %2527 = vmatprep.subr.mxu0 0.0
    %2528 = vmatpush1.msra.mxu0 0.0
    %2529 = vmatprep.subr.mxu0 0.0
    %2530 = vmatpush1.msra.mxu0 0.0
    %2531 = vmatprep.subr.mxu0 0.0
    %2532 = vmatpush1.msra.mxu0 0.0
    %2533 = vmatprep.subr.mxu0 0.0
    %2534 = vmatpush1.msra.mxu0 0.0
    %2535 = vmatprep.subr.mxu0 0.0
    %2536 = vmatpush1.msra.mxu0 0.0
    %2537 = vmatprep.subr.mxu0 0.0
    %2538 = vmatpush1.msra.mxu0 0.0
    %2539 = vmatprep.subr.mxu0 0.0
    %2540 = vmatpush1.msra.mxu0 0.0
    %2541 = vmatprep.mubr.f32.mxu0 0.0
    %2542 = vmatmul.mubr.f32.gmra.mrb[0].mxu0 0.0
    %v2543 = vpop.f32.mrb[0].mxu0
    %v2544 = vadd.f32 0.0, %v2543
    %v2545 = vpop.f32.mrb[0].mxu0
    %v2546 = vadd.f32 0.0, %v2545
    %2547 = vdwg.mxu0
    %2548 = vmatprep.subr.mxu0 %v2287
    %2549 = vmatpush1.msra.mxu0 %v2286
    %2550 = vmatprep.subr.mxu0 %v2291
    %2551 = vmatpush1.msra.mxu0 %v2290
    %2552 = vmatprep.subr.mxu0 %v2295
    %2553 = vmatpush1.msra.mxu0 %v2294
    %2554 = vmatprep.subr.mxu0 %v2299
    %2555 = vmatpush1.msra.mxu0 %v2298
    %2556 = vmatprep.subr.mxu0 %v2303
    %2557 = vmatpush1.msra.mxu0 %v2302
    %2558 = vmatprep.subr.mxu0 %v2307
    %2559 = vmatpush1.msra.mxu0 %v2306
    %2560 = vmatprep.subr.mxu0 %v2311
    %2561 = vmatpush1.msra.mxu0 %v2310
    %2562 = vmatprep.subr.mxu0 %v2315
    %2563 = vmatpush1.msra.mxu0 %v2314
    %2564 = vmatprep.subr.mxu0 %v2319
    %2565 = vmatpush1.msra.mxu0 %v2318
    %2566 = vmatprep.subr.mxu0 %v2323
    %2567 = vmatpush1.msra.mxu0 %v2322
    %2568 = vmatprep.subr.mxu0 %v2327
    %2569 = vmatpush1.msra.mxu0 %v2326
    %2570 = vmatprep.subr.mxu0 %v2331
    %2571 = vmatpush1.msra.mxu0 %v2330
    %2572 = vmatprep.subr.mxu0 %v2335
    %2573 = vmatpush1.msra.mxu0 %v2334
    %2574 = vmatprep.subr.mxu0 %v2339
    %2575 = vmatpush1.msra.mxu0 %v2338
    %2576 = vmatprep.subr.mxu0 %v2343
    %2577 = vmatpush1.msra.mxu0 %v2342
    %2578 = vmatprep.subr.mxu0 %v2347
    %2579 = vmatpush1.msra.mxu0 %v2346
    %2580 = vmatprep.subr.mxu0 0.0
    %2581 = vmatpush1.msra.mxu0 0.0
    %2582 = vmatprep.subr.mxu0 0.0
    %2583 = vmatpush1.msra.mxu0 0.0
    %2584 = vmatprep.subr.mxu0 0.0
    %2585 = vmatpush1.msra.mxu0 0.0
    %2586 = vmatprep.subr.mxu0 0.0
    %2587 = vmatpush1.msra.mxu0 0.0
    %2588 = vmatprep.subr.mxu0 0.0
    %2589 = vmatpush1.msra.mxu0 0.0
    %2590 = vmatprep.subr.mxu0 0.0
    %2591 = vmatpush1.msra.mxu0 0.0
    %2592 = vmatprep.subr.mxu0 0.0
    %2593 = vmatpush1.msra.mxu0 0.0
    %2594 = vmatprep.subr.mxu0 0.0
    %2595 = vmatpush1.msra.mxu0 0.0
    %2596 = vmatprep.subr.mxu0 0.0
    %2597 = vmatpush1.msra.mxu0 0.0
    %2598 = vmatprep.subr.mxu0 0.0
    %2599 = vmatpush1.msra.mxu0 0.0
    %2600 = vmatprep.subr.mxu0 0.0
    %2601 = vmatpush1.msra.mxu0 0.0
    %2602 = vmatprep.subr.mxu0 0.0
    %2603 = vmatpush1.msra.mxu0 0.0
    %2604 = vmatprep.subr.mxu0 0.0
    %2605 = vmatpush1.msra.mxu0 0.0
    %2606 = vmatprep.subr.mxu0 0.0
    %2607 = vmatpush1.msra.mxu0 0.0
    %2608 = vmatprep.subr.mxu0 0.0
    %2609 = vmatpush1.msra.mxu0 0.0
    %2610 = vmatprep.subr.mxu0 0.0
    %2611 = vmatpush1.msra.mxu0 0.0
    %2612 = vmatprep.mubr.f32.mxu0 0.0
    %2613 = vmatmul.mubr.f32.gmra.mrb[0].mxu0 0.0
    %v2614 = vpop.f32.mrb[0].mxu0
    %v2615 = vadd.f32 0.0, %v2614
    %v2616 = vpop.f32.mrb[0].mxu0
    %v2617 = vadd.f32 0.0, %v2616
    %2618 = vdwg.mxu0
    %v2619 = vadd.f32 %v2209, %v2544
    %v2620 = vadd.f32 %v2211, %v2546
    %v2621 = vadd.f32 %v2280, %v2615
    %v2622 = vadd.f32 %v2282, %v2617
    %v2623 = vxor.u32 %v2619, 2147483648
    %v2624 = vmul.f32 %v2623, 1.442695
    %v2625 = vpow.pop %v2624
    %v2626 = vadd.f32 %v2625, 1.0
    %v2627 = vrcp.pop %v2626
    %v2628 = vmul.f32 1.0, %v2627
    %v2629 = vxor.u32 %v2620, 2147483648
    %v2630 = vmul.f32 %v2629, 1.442695
    %v2631 = vpow.pop %v2630
    %v2632 = vadd.f32 %v2631, 1.0
    %v2633 = vrcp.pop %v2632
    %v2634 = vmul.f32 1.0, %v2633
    %v2635 = vtanh.pop %v2621
    %v2636 = vxor.u32 %v2622, 2147483648
    %v2637 = vmul.f32 %v2636, 1.442695
    %v2638 = vpow.pop %v2637
    %v2639 = vadd.f32 %v2638, 1.0
    %v2640 = vrcp.pop %v2639
    %v2641 = vmul.f32 1.0, %v2640
    %v2642 = vmul.f32 %v2634, 0.0
    %v2643 = vmul.f32 %v2628, %v2635
    %v2644 = vadd.f32 %v2642, %v2643
    %v2645 = vtanh.pop %v2644
    %v2646 = vmul.f32 %v2641, %v2645
    %2647 = vmatprep.subr.mxu0 %v2413
    %2648 = vmatpush1.msra.mxu0 %v2412
    %2649 = vmatprep.subr.mxu0 %v2417
    %2650 = vmatpush1.msra.mxu0 %v2416
    %2651 = vmatprep.subr.mxu0 %v2421
    %2652 = vmatpush1.msra.mxu0 %v2420
    %2653 = vmatprep.subr.mxu0 %v2425
    %2654 = vmatpush1.msra.mxu0 %v2424
    %2655 = vmatprep.subr.mxu0 %v2429
    %2656 = vmatpush1.msra.mxu0 %v2428
    %2657 = vmatprep.subr.mxu0 %v2433
    %2658 = vmatpush1.msra.mxu0 %v2432
    %2659 = vmatprep.subr.mxu0 %v2437
    %2660 = vmatpush1.msra.mxu0 %v2436
    %2661 = vmatprep.subr.mxu0 %v2441
    %2662 = vmatpush1.msra.mxu0 %v2440
    %2663 = vmatprep.subr.mxu0 %v2445
    %2664 = vmatpush1.msra.mxu0 %v2444
    %2665 = vmatprep.subr.mxu0 %v2449
    %2666 = vmatpush1.msra.mxu0 %v2448
    %2667 = vmatprep.subr.mxu0 %v2453
    %2668 = vmatpush1.msra.mxu0 %v2452
    %2669 = vmatprep.subr.mxu0 %v2457
    %2670 = vmatpush1.msra.mxu0 %v2456
    %2671 = vmatprep.subr.mxu0 %v2461
    %2672 = vmatpush1.msra.mxu0 %v2460
    %2673 = vmatprep.subr.mxu0 %v2465
    %2674 = vmatpush1.msra.mxu0 %v2464
    %2675 = vmatprep.subr.mxu0 %v2469
    %2676 = vmatpush1.msra.mxu0 %v2468
    %2677 = vmatprep.subr.mxu0 %v2473
    %2678 = vmatpush1.msra.mxu0 %v2472
    %2679 = vmatprep.subr.mxu0 0.0
    %2680 = vmatpush1.msra.mxu0 0.0
    %2681 = vmatprep.subr.mxu0 0.0
    %2682 = vmatpush1.msra.mxu0 0.0
    %2683 = vmatprep.subr.mxu0 0.0
    %2684 = vmatpush1.msra.mxu0 0.0
    %2685 = vmatprep.subr.mxu0 0.0
    %2686 = vmatpush1.msra.mxu0 0.0
    %2687 = vmatprep.subr.mxu0 0.0
    %2688 = vmatpush1.msra.mxu0 0.0
    %2689 = vmatprep.subr.mxu0 0.0
    %2690 = vmatpush1.msra.mxu0 0.0
    %2691 = vmatprep.subr.mxu0 0.0
    %2692 = vmatpush1.msra.mxu0 0.0
    %2693 = vmatprep.subr.mxu0 0.0
    %2694 = vmatpush1.msra.mxu0 0.0
    %2695 = vmatprep.subr.mxu0 0.0
    %2696 = vmatpush1.msra.mxu0 0.0
    %2697 = vmatprep.subr.mxu0 0.0
    %2698 = vmatpush1.msra.mxu0 0.0
    %2699 = vmatprep.subr.mxu0 0.0
    %2700 = vmatpush1.msra.mxu0 0.0
    %2701 = vmatprep.subr.mxu0 0.0
    %2702 = vmatpush1.msra.mxu0 0.0
    %2703 = vmatprep.subr.mxu0 0.0
    %2704 = vmatpush1.msra.mxu0 0.0
    %2705 = vmatprep.subr.mxu0 0.0
    %2706 = vmatpush1.msra.mxu0 0.0
    %2707 = vmatprep.subr.mxu0 0.0
    %2708 = vmatpush1.msra.mxu0 0.0
    %2709 = vmatprep.subr.mxu0 0.0
    %2710 = vmatpush1.msra.mxu0 0.0
    %2711 = vmatprep.mubr.f32.mxu0 0.0
    %2712 = vmatmul.mubr.f32.gmra.mrb[0].mxu0 0.0
    %v2713 = vpop.f32.mrb[0].mxu0
    %v2714 = vadd.f32 0.0, %v2713
    %v2715 = vpop.f32.mrb[0].mxu0
    %v2716 = vadd.f32 0.0, %v2715
    %2717 = vdwg.mxu0
    %2718 = vmatprep.subr.mxu0 %v2415
    %2719 = vmatpush1.msra.mxu0 %v2414
    %2720 = vmatprep.subr.mxu0 %v2419
    %2721 = vmatpush1.msra.mxu0 %v2418
    %2722 = vmatprep.subr.mxu0 %v2423
    %2723 = vmatpush1.msra.mxu0 %v2422
    %2724 = vmatprep.subr.mxu0 %v2427
    %2725 = vmatpush1.msra.mxu0 %v2426
    %2726 = vmatprep.subr.mxu0 %v2431
    %2727 = vmatpush1.msra.mxu0 %v2430
    %2728 = vmatprep.subr.mxu0 %v2435
    %2729 = vmatpush1.msra.mxu0 %v2434
    %2730 = vmatprep.subr.mxu0 %v2439
    %2731 = vmatpush1.msra.mxu0 %v2438
    %2732 = vmatprep.subr.mxu0 %v2443
    %2733 = vmatpush1.msra.mxu0 %v2442
    %2734 = vmatprep.subr.mxu0 %v2447
    %2735 = vmatpush1.msra.mxu0 %v2446
    %2736 = vmatprep.subr.mxu0 %v2451
    %2737 = vmatpush1.msra.mxu0 %v2450
    %2738 = vmatprep.subr.mxu0 %v2455
    %2739 = vmatpush1.msra.mxu0 %v2454
    %2740 = vmatprep.subr.mxu0 %v2459
    %2741 = vmatpush1.msra.mxu0 %v2458
    %2742 = vmatprep.subr.mxu0 %v2463
    %2743 = vmatpush1.msra.mxu0 %v2462
    %2744 = vmatprep.subr.mxu0 %v2467
    %2745 = vmatpush1.msra.mxu0 %v2466
    %2746 = vmatprep.subr.mxu0 %v2471
    %2747 = vmatpush1.msra.mxu0 %v2470
    %2748 = vmatprep.subr.mxu0 %v2475
    %2749 = vmatpush1.msra.mxu0 %v2474
    %2750 = vmatprep.subr.mxu0 0.0
    %2751 = vmatpush1.msra.mxu0 0.0
    %2752 = vmatprep.subr.mxu0 0.0
    %2753 = vmatpush1.msra.mxu0 0.0
    %2754 = vmatprep.subr.mxu0 0.0
    %2755 = vmatpush1.msra.mxu0 0.0
    %2756 = vmatprep.subr.mxu0 0.0
    %2757 = vmatpush1.msra.mxu0 0.0
    %2758 = vmatprep.subr.mxu0 0.0
    %2759 = vmatpush1.msra.mxu0 0.0
    %2760 = vmatprep.subr.mxu0 0.0
    %2761 = vmatpush1.msra.mxu0 0.0
    %2762 = vmatprep.subr.mxu0 0.0
    %2763 = vmatpush1.msra.mxu0 0.0
    %2764 = vmatprep.subr.mxu0 0.0
    %2765 = vmatpush1.msra.mxu0 0.0
    %2766 = vmatprep.subr.mxu0 0.0
    %2767 = vmatpush1.msra.mxu0 0.0
    %2768 = vmatprep.subr.mxu0 0.0
    %2769 = vmatpush1.msra.mxu0 0.0
    %2770 = vmatprep.subr.mxu0 0.0
    %2771 = vmatpush1.msra.mxu0 0.0
    %2772 = vmatprep.subr.mxu0 0.0
    %2773 = vmatpush1.msra.mxu0 0.0
    %2774 = vmatprep.subr.mxu0 0.0
    %2775 = vmatpush1.msra.mxu0 0.0
    %2776 = vmatprep.subr.mxu0 0.0
    %2777 = vmatpush1.msra.mxu0 0.0
    %2778 = vmatprep.subr.mxu0 0.0
    %2779 = vmatpush1.msra.mxu0 0.0
    %2780 = vmatprep.subr.mxu0 0.0
    %2781 = vmatpush1.msra.mxu0 0.0
    %2782 = vmatprep.mubr.f32.mxu0 0.0
    %2783 = vmatmul.mubr.f32.gmra.mrb[0].mxu0 0.0
    %v2784 = vpop.f32.mrb[0].mxu0
    %v2785 = vadd.f32 0.0, %v2784
    %v2786 = vpop.f32.mrb[0].mxu0
    %v2787 = vadd.f32 0.0, %v2786
    %2788 = vdwg.mxu0
    %2789 = vmatprep.subr.mxu0 %v2349
    %2790 = vmatpush1.msra.mxu0 %v2348
    %2791 = vmatprep.subr.mxu0 %v2353
    %2792 = vmatpush1.msra.mxu0 %v2352
    %2793 = vmatprep.subr.mxu0 %v2357
    %2794 = vmatpush1.msra.mxu0 %v2356
    %2795 = vmatprep.subr.mxu0 %v2361
    %2796 = vmatpush1.msra.mxu0 %v2360
    %2797 = vmatprep.subr.mxu0 %v2365
    %2798 = vmatpush1.msra.mxu0 %v2364
    %2799 = vmatprep.subr.mxu0 %v2369
    %2800 = vmatpush1.msra.mxu0 %v2368
    %2801 = vmatprep.subr.mxu0 %v2373
    %2802 = vmatpush1.msra.mxu0 %v2372
    %2803 = vmatprep.subr.mxu0 %v2377
    %2804 = vmatpush1.msra.mxu0 %v2376
    %2805 = vmatprep.subr.mxu0 %v2381
    %2806 = vmatpush1.msra.mxu0 %v2380
    %2807 = vmatprep.subr.mxu0 %v2385
    %2808 = vmatpush1.msra.mxu0 %v2384
    %2809 = vmatprep.subr.mxu0 %v2389
    %2810 = vmatpush1.msra.mxu0 %v2388
    %2811 = vmatprep.subr.mxu0 %v2393
    %2812 = vmatpush1.msra.mxu0 %v2392
    %2813 = vmatprep.subr.mxu0 %v2397
    %2814 = vmatpush1.msra.mxu0 %v2396
    %2815 = vmatprep.subr.mxu0 %v2401
    %2816 = vmatpush1.msra.mxu0 %v2400
    %2817 = vmatprep.subr.mxu0 %v2405
    %2818 = vmatpush1.msra.mxu0 %v2404
    %2819 = vmatprep.subr.mxu0 %v2409
    %2820 = vmatpush1.msra.mxu0 %v2408
    %2821 = vmatprep.subr.mxu0 0.0
    %2822 = vmatpush1.msra.mxu0 0.0
    %2823 = vmatprep.subr.mxu0 0.0
    %2824 = vmatpush1.msra.mxu0 0.0
    %2825 = vmatprep.subr.mxu0 0.0
    %2826 = vmatpush1.msra.mxu0 0.0
    %2827 = vmatprep.subr.mxu0 0.0
    %2828 = vmatpush1.msra.mxu0 0.0
    %2829 = vmatprep.subr.mxu0 0.0
    %2830 = vmatpush1.msra.mxu0 0.0
    %2831 = vmatprep.subr.mxu0 0.0
    %2832 = vmatpush1.msra.mxu0 0.0
    %2833 = vmatprep.subr.mxu0 0.0
    %2834 = vmatpush1.msra.mxu0 0.0
    %2835 = vmatprep.subr.mxu0 0.0
    %2836 = vmatpush1.msra.mxu0 0.0
    %2837 = vmatprep.subr.mxu0 0.0
    %2838 = vmatpush1.msra.mxu0 0.0
    %2839 = vmatprep.subr.mxu0 0.0
    %2840 = vmatpush1.msra.mxu0 0.0
    %2841 = vmatprep.subr.mxu0 0.0
    %2842 = vmatpush1.msra.mxu0 0.0
    %2843 = vmatprep.subr.mxu0 0.0
    %2844 = vmatpush1.msra.mxu0 0.0
    %2845 = vmatprep.subr.mxu0 0.0
    %2846 = vmatpush1.msra.mxu0 0.0
    %2847 = vmatprep.subr.mxu0 0.0
    %2848 = vmatpush1.msra.mxu0 0.0
    %2849 = vmatprep.subr.mxu0 0.0
    %2850 = vmatpush1.msra.mxu0 0.0
    %2851 = vmatprep.subr.mxu0 0.0
    %2852 = vmatpush1.msra.mxu0 0.0
    %2853 = vmatprep.mubr.f32.mxu0 0.0
    %2854 = vmatmul.mubr.f32.gmra.mrb[0].mxu0 %v2646
    %v2855 = vpop.f32.mrb[0].mxu0
    %v2856 = vadd.f32 %v2714, %v2855
    %v2857 = vpop.f32.mrb[0].mxu0
    %v2858 = vadd.f32 %v2716, %v2857
    %2859 = vdwg.mxu0
    %2860 = vmatprep.subr.mxu0 %v2351
    %2861 = vmatpush1.msra.mxu0 %v2350
    %2862 = vmatprep.subr.mxu0 %v2355
    %2863 = vmatpush1.msra.mxu0 %v2354
    %2864 = vmatprep.subr.mxu0 %v2359
    %2865 = vmatpush1.msra.mxu0 %v2358
    %2866 = vmatprep.subr.mxu0 %v2363
    %2867 = vmatpush1.msra.mxu0 %v2362
    %2868 = vmatprep.subr.mxu0 %v2367
    %2869 = vmatpush1.msra.mxu0 %v2366
    %2870 = vmatprep.subr.mxu0 %v2371
    %2871 = vmatpush1.msra.mxu0 %v2370
    %2872 = vmatprep.subr.mxu0 %v2375
    %2873 = vmatpush1.msra.mxu0 %v2374
    %2874 = vmatprep.subr.mxu0 %v2379
    %2875 = vmatpush1.msra.mxu0 %v2378
    %2876 = vmatprep.subr.mxu0 %v2383
    %2877 = vmatpush1.msra.mxu0 %v2382
    %2878 = vmatprep.subr.mxu0 %v2387
    %2879 = vmatpush1.msra.mxu0 %v2386
    %2880 = vmatprep.subr.mxu0 %v2391
    %2881 = vmatpush1.msra.mxu0 %v2390
    %2882 = vmatprep.subr.mxu0 %v2395
    %2883 = vmatpush1.msra.mxu0 %v2394
    %2884 = vmatprep.subr.mxu0 %v2399
    %2885 = vmatpush1.msra.mxu0 %v2398
    %2886 = vmatprep.subr.mxu0 %v2403
    %2887 = vmatpush1.msra.mxu0 %v2402
    %2888 = vmatprep.subr.mxu0 %v2407
    %2889 = vmatpush1.msra.mxu0 %v2406
    %2890 = vmatprep.subr.mxu0 %v2411
    %2891 = vmatpush1.msra.mxu0 %v2410
    %2892 = vmatprep.subr.mxu0 0.0
    %2893 = vmatpush1.msra.mxu0 0.0
    %2894 = vmatprep.subr.mxu0 0.0
    %2895 = vmatpush1.msra.mxu0 0.0
    %2896 = vmatprep.subr.mxu0 0.0
    %2897 = vmatpush1.msra.mxu0 0.0
    %2898 = vmatprep.subr.mxu0 0.0
    %2899 = vmatpush1.msra.mxu0 0.0
    %2900 = vmatprep.subr.mxu0 0.0
    %2901 = vmatpush1.msra.mxu0 0.0
    %2902 = vmatprep.subr.mxu0 0.0
    %2903 = vmatpush1.msra.mxu0 0.0
    %2904 = vmatprep.subr.mxu0 0.0
    %2905 = vmatpush1.msra.mxu0 0.0
    %2906 = vmatprep.subr.mxu0 0.0
    %2907 = vmatpush1.msra.mxu0 0.0
    %2908 = vmatprep.subr.mxu0 0.0
    %2909 = vmatpush1.msra.mxu0 0.0
    %2910 = vmatprep.subr.mxu0 0.0
    %2911 = vmatpush1.msra.mxu0 0.0
    %2912 = vmatprep.subr.mxu0 0.0
    %2913 = vmatpush1.msra.mxu0 0.0
    %2914 = vmatprep.subr.mxu0 0.0
    %2915 = vmatpush1.msra.mxu0 0.0
    %2916 = vmatprep.subr.mxu0 0.0
    %2917 = vmatpush1.msra.mxu0 0.0
    %2918 = vmatprep.subr.mxu0 0.0
    %2919 = vmatpush1.msra.mxu0 0.0
    %2920 = vmatprep.subr.mxu0 0.0
    %2921 = vmatpush1.msra.mxu0 0.0
    %2922 = vmatprep.subr.mxu0 0.0
    %2923 = vmatpush1.msra.mxu0 0.0
    %2924 = vmatprep.mubr.f32.mxu0 0.0
    %2925 = vmatmul.mubr.f32.gmra.mrb[0].mxu0 %v2646
    %v2926 = vpop.f32.mrb[0].mxu0
    %v2927 = vadd.f32 %v2785, %v2926
    %v2928 = vpop.f32.mrb[0].mxu0
    %v2929 = vadd.f32 %v2787, %v2928
    %2930 = vdwg.mxu0
    %v2932 = vlaneseq
    %v2933 = vshrl.u32 %v2932, 7
    %v2934 = vsub.s32 0, %v2933
    %v2935 = vrot.slane %v2476, %v2934
    %v2936 = vlaneseq
    %v2937 = vshrl.u32 %v2936, 7
    %v2938 = vsub.s32 1, %v2937
    %v2939 = vrot.slane %v2476, %v2938
    %v2940 = vlaneseq
    %v2941 = vshrl.u32 %v2940, 7
    %v2942 = vsub.s32 2, %v2941
    %v2943 = vrot.slane %v2476, %v2942
    %v2944 = vlaneseq
    %v2945 = vshrl.u32 %v2944, 7
    %v2946 = vsub.s32 3, %v2945
    %v2947 = vrot.slane %v2476, %v2946
    %v2952 = vadd.f32 %v2856, %v2935
    %v2953 = vadd.f32 %v2858, %v2939
    %v2954 = vadd.f32 %v2927, %v2943
    %v2955 = vadd.f32 %v2929, %v2947
    %v2956 = vxor.u32 %v2952, 2147483648
    %v2957 = vmul.f32 %v2956, 1.442695
    %v2958 = vpow.pop %v2957
    %v2959 = vadd.f32 %v2958, 1.0
    %v2960 = vrcp.pop %v2959
    %v2961 = vmul.f32 1.0, %v2960
    %v2962 = vxor.u32 %v2953, 2147483648
    %v2963 = vmul.f32 %v2962, 1.442695
    %v2964 = vpow.pop %v2963
    %v2965 = vadd.f32 %v2964, 1.0
    %v2966 = vrcp.pop %v2965
    %v2967 = vmul.f32 1.0, %v2966
    %v2968 = vtanh.pop %v2954
    %v2969 = vxor.u32 %v2955, 2147483648
    %v2970 = vmul.f32 %v2969, 1.442695
    %v2971 = vpow.pop %v2970
    %v2972 = vadd.f32 %v2971, 1.0
    %v2973 = vrcp.pop %v2972
    %v2974 = vmul.f32 1.0, %v2973
    %v2975 = vmul.f32 %v2967, 0.0
    %v2976 = vmul.f32 %v2961, %v2968
    %v2977 = vadd.f32 %v2975, %v2976
    %v2978 = vtanh.pop %v2977
    %v2979 = vmul.f32 %v2974, %v2978
    %2980 = vmatprep.subr.mxu0 %v2285
    %2981 = vmatpush1.msra.mxu0 %v2284
    %2982 = vmatprep.subr.mxu0 %v2289
    %2983 = vmatpush1.msra.mxu0 %v2288
    %2984 = vmatprep.subr.mxu0 %v2293
    %2985 = vmatpush1.msra.mxu0 %v2292
    %2986 = vmatprep.subr.mxu0 %v2297
    %2987 = vmatpush1.msra.mxu0 %v2296
    %2988 = vmatprep.subr.mxu0 %v2301
    %2989 = vmatpush1.msra.mxu0 %v2300
    %2990 = vmatprep.subr.mxu0 %v2305
    %2991 = vmatpush1.msra.mxu0 %v2304
    %2992 = vmatprep.subr.mxu0 %v2309
    %2993 = vmatpush1.msra.mxu0 %v2308
    %2994 = vmatprep.subr.mxu0 %v2313
    %2995 = vmatpush1.msra.mxu0 %v2312
    %2996 = vmatprep.subr.mxu0 %v2317
    %2997 = vmatpush1.msra.mxu0 %v2316
    %2998 = vmatprep.subr.mxu0 %v2321
    %2999 = vmatpush1.msra.mxu0 %v2320
    %3000 = vmatprep.subr.mxu0 %v2325
    %3001 = vmatpush1.msra.mxu0 %v2324
    %3002 = vmatprep.subr.mxu0 %v2329
    %3003 = vmatpush1.msra.mxu0 %v2328
    %3004 = vmatprep.subr.mxu0 %v2333
    %3005 = vmatpush1.msra.mxu0 %v2332
    %3006 = vmatprep.subr.mxu0 %v2337
    %3007 = vmatpush1.msra.mxu0 %v2336
    %3008 = vmatprep.subr.mxu0 %v2341
    %3009 = vmatpush1.msra.mxu0 %v2340
    %3010 = vmatprep.subr.mxu0 %v2345
    %3011 = vmatpush1.msra.mxu0 %v2344
    %3012 = vmatprep.subr.mxu0 0.0
    %3013 = vmatpush1.msra.mxu0 0.0
    %3014 = vmatprep.subr.mxu0 0.0
    %3015 = vmatpush1.msra.mxu0 0.0
    %3016 = vmatprep.subr.mxu0 0.0
    %3017 = vmatpush1.msra.mxu0 0.0
    %3018 = vmatprep.subr.mxu0 0.0
    %3019 = vmatpush1.msra.mxu0 0.0
    %3020 = vmatprep.subr.mxu0 0.0
    %3021 = vmatpush1.msra.mxu0 0.0
    %3022 = vmatprep.subr.mxu0 0.0
    %3023 = vmatpush1.msra.mxu0 0.0
    %3024 = vmatprep.subr.mxu0 0.0
    %3025 = vmatpush1.msra.mxu0 0.0
    %3026 = vmatprep.subr.mxu0 0.0
    %3027 = vmatpush1.msra.mxu0 0.0
    %3028 = vmatprep.subr.mxu0 0.0
    %3029 = vmatpush1.msra.mxu0 0.0
    %3030 = vmatprep.subr.mxu0 0.0
    %3031 = vmatpush1.msra.mxu0 0.0
    %3032 = vmatprep.subr.mxu0 0.0
    %3033 = vmatpush1.msra.mxu0 0.0
    %3034 = vmatprep.subr.mxu0 0.0
    %3035 = vmatpush1.msra.mxu0 0.0
    %3036 = vmatprep.subr.mxu0 0.0
    %3037 = vmatpush1.msra.mxu0 0.0
    %3038 = vmatprep.subr.mxu0 0.0
    %3039 = vmatpush1.msra.mxu0 0.0
    %3040 = vmatprep.subr.mxu0 0.0
    %3041 = vmatpush1.msra.mxu0 0.0
    %3042 = vmatprep.subr.mxu0 0.0
    %3043 = vmatpush1.msra.mxu0 0.0
    %3044 = vmatprep.mubr.f32.mxu0 0.0
    %3045 = vmatmul.mubr.f32.gmra.mrb[0].mxu0 %v2646
    %v3046 = vpop.f32.mrb[0].mxu0
    %v3047 = vadd.f32 0.0, %v3046
    %v3048 = vpop.f32.mrb[0].mxu0
    %v3049 = vadd.f32 0.0, %v3048
    %3050 = vdwg.mxu0
    %3051 = vmatprep.subr.mxu0 %v2287
    %3052 = vmatpush1.msra.mxu0 %v2286
    %3053 = vmatprep.subr.mxu0 %v2291
    %3054 = vmatpush1.msra.mxu0 %v2290
    %3055 = vmatprep.subr.mxu0 %v2295
    %3056 = vmatpush1.msra.mxu0 %v2294
    %3057 = vmatprep.subr.mxu0 %v2299
    %3058 = vmatpush1.msra.mxu0 %v2298
    %3059 = vmatprep.subr.mxu0 %v2303
    %3060 = vmatpush1.msra.mxu0 %v2302
    %3061 = vmatprep.subr.mxu0 %v2307
    %3062 = vmatpush1.msra.mxu0 %v2306
    %3063 = vmatprep.subr.mxu0 %v2311
    %3064 = vmatpush1.msra.mxu0 %v2310
    %3065 = vmatprep.subr.mxu0 %v2315
    %3066 = vmatpush1.msra.mxu0 %v2314
    %3067 = vmatprep.subr.mxu0 %v2319
    %3068 = vmatpush1.msra.mxu0 %v2318
    %3069 = vmatprep.subr.mxu0 %v2323
    %3070 = vmatpush1.msra.mxu0 %v2322
    %3071 = vmatprep.subr.mxu0 %v2327
    %3072 = vmatpush1.msra.mxu0 %v2326
    %3073 = vmatprep.subr.mxu0 %v2331
    %3074 = vmatpush1.msra.mxu0 %v2330
    %3075 = vmatprep.subr.mxu0 %v2335
    %3076 = vmatpush1.msra.mxu0 %v2334
    %3077 = vmatprep.subr.mxu0 %v2339
    %3078 = vmatpush1.msra.mxu0 %v2338
    %3079 = vmatprep.subr.mxu0 %v2343
    %3080 = vmatpush1.msra.mxu0 %v2342
    %3081 = vmatprep.subr.mxu0 %v2347
    %3082 = vmatpush1.msra.mxu0 %v2346
    %3083 = vmatprep.subr.mxu0 0.0
    %3084 = vmatpush1.msra.mxu0 0.0
    %3085 = vmatprep.subr.mxu0 0.0
    %3086 = vmatpush1.msra.mxu0 0.0
    %3087 = vmatprep.subr.mxu0 0.0
    %3088 = vmatpush1.msra.mxu0 0.0
    %3089 = vmatprep.subr.mxu0 0.0
    %3090 = vmatpush1.msra.mxu0 0.0
    %3091 = vmatprep.subr.mxu0 0.0
    %3092 = vmatpush1.msra.mxu0 0.0
    %3093 = vmatprep.subr.mxu0 0.0
    %3094 = vmatpush1.msra.mxu0 0.0
    %3095 = vmatprep.subr.mxu0 0.0
    %3096 = vmatpush1.msra.mxu0 0.0
    %3097 = vmatprep.subr.mxu0 0.0
    %3098 = vmatpush1.msra.mxu0 0.0
    %3099 = vmatprep.subr.mxu0 0.0
    %3100 = vmatpush1.msra.mxu0 0.0
    %3101 = vmatprep.subr.mxu0 0.0
    %3102 = vmatpush1.msra.mxu0 0.0
    %3103 = vmatprep.subr.mxu0 0.0
    %3104 = vmatpush1.msra.mxu0 0.0
    %3105 = vmatprep.subr.mxu0 0.0
    %3106 = vmatpush1.msra.mxu0 0.0
    %3107 = vmatprep.subr.mxu0 0.0
    %3108 = vmatpush1.msra.mxu0 0.0
    %3109 = vmatprep.subr.mxu0 0.0
    %3110 = vmatpush1.msra.mxu0 0.0
    %3111 = vmatprep.subr.mxu0 0.0
    %3112 = vmatpush1.msra.mxu0 0.0
    %3113 = vmatprep.subr.mxu0 0.0
    %3114 = vmatpush1.msra.mxu0 0.0
    %3115 = vmatprep.mubr.f32.mxu0 0.0
    %3116 = vmatmul.mubr.f32.gmra.mrb[0].mxu0 %v2646
    %v3117 = vpop.f32.mrb[0].mxu0
    %v3118 = vadd.f32 0.0, %v3117
    %v3119 = vpop.f32.mrb[0].mxu0
    %v3120 = vadd.f32 0.0, %v3119
    %3121 = vdwg.mxu0
    %v3126 = vrot.slane %v3047, 6
    %v3127 = vrot.slane %v3049, 6
    %v3128 = vrot.slane %v3118, 6
    %v3129 = vrot.slane %v3120, 6
    %v3134 = vadd.f32 %v2209, %v3126
    %v3135 = vadd.f32 %v2211, %v3127
    %v3136 = vadd.f32 %v2280, %v3128
    %v3137 = vadd.f32 %v2282, %v3129
    %v3138 = vxor.u32 %v3134, 2147483648
    %v3139 = vmul.f32 %v3138, 1.442695
    %v3140 = vpow.pop %v3139
    %v3141 = vadd.f32 %v3140, 1.0
    %v3142 = vrcp.pop %v3141
    %v3143 = vmul.f32 1.0, %v3142
    %v3144 = vxor.u32 %v3135, 2147483648
    %v3145 = vmul.f32 %v3144, 1.442695
    %v3146 = vpow.pop %v3145
    %v3147 = vadd.f32 %v3146, 1.0
    %v3148 = vrcp.pop %v3147
    %v3149 = vmul.f32 1.0, %v3148
    %v3150 = vtanh.pop %v3136
    %v3151 = vxor.u32 %v3137, 2147483648
    %v3152 = vmul.f32 %v3151, 1.442695
    %v3153 = vpow.pop %v3152
    %v3154 = vadd.f32 %v3153, 1.0
    %v3155 = vrcp.pop %v3154
    %v3156 = vmul.f32 1.0, %v3155
    %v3158 = vrot.slane %v2644, 6
    %v3160 = vmul.f32 %v3149, %v3158
    %v3161 = vmul.f32 %v3143, %v3150
    %v3162 = vadd.f32 %v3160, %v3161
    %v3163 = vtanh.pop %v3162
    %v3164 = vmul.f32 %v3156, %v3163
    %3165 = vmatprep.subr.mxu0 %v2413
    %3166 = vmatpush1.msra.mxu0 %v2412
    %3167 = vmatprep.subr.mxu0 %v2417
    %3168 = vmatpush1.msra.mxu0 %v2416
    %3169 = vmatprep.subr.mxu0 %v2421
    %3170 = vmatpush1.msra.mxu0 %v2420
    %3171 = vmatprep.subr.mxu0 %v2425
    %3172 = vmatpush1.msra.mxu0 %v2424
    %3173 = vmatprep.subr.mxu0 %v2429
    %3174 = vmatpush1.msra.mxu0 %v2428
    %3175 = vmatprep.subr.mxu0 %v2433
    %3176 = vmatpush1.msra.mxu0 %v2432
    %3177 = vmatprep.subr.mxu0 %v2437
    %3178 = vmatpush1.msra.mxu0 %v2436
    %3179 = vmatprep.subr.mxu0 %v2441
    %3180 = vmatpush1.msra.mxu0 %v2440
    %3181 = vmatprep.subr.mxu0 %v2445
    %3182 = vmatpush1.msra.mxu0 %v2444
    %3183 = vmatprep.subr.mxu0 %v2449
    %3184 = vmatpush1.msra.mxu0 %v2448
    %3185 = vmatprep.subr.mxu0 %v2453
    %3186 = vmatpush1.msra.mxu0 %v2452
    %3187 = vmatprep.subr.mxu0 %v2457
    %3188 = vmatpush1.msra.mxu0 %v2456
    %3189 = vmatprep.subr.mxu0 %v2461
    %3190 = vmatpush1.msra.mxu0 %v2460
    %3191 = vmatprep.subr.mxu0 %v2465
    %3192 = vmatpush1.msra.mxu0 %v2464
    %3193 = vmatprep.subr.mxu0 %v2469
    %3194 = vmatpush1.msra.mxu0 %v2468
    %3195 = vmatprep.subr.mxu0 %v2473
    %3196 = vmatpush1.msra.mxu0 %v2472
    %3197 = vmatprep.subr.mxu0 0.0
    %3198 = vmatpush1.msra.mxu0 0.0
    %3199 = vmatprep.subr.mxu0 0.0
    %3200 = vmatpush1.msra.mxu0 0.0
    %3201 = vmatprep.subr.mxu0 0.0
    %3202 = vmatpush1.msra.mxu0 0.0
    %3203 = vmatprep.subr.mxu0 0.0
    %3204 = vmatpush1.msra.mxu0 0.0
    %3205 = vmatprep.subr.mxu0 0.0
    %3206 = vmatpush1.msra.mxu0 0.0
    %3207 = vmatprep.subr.mxu0 0.0
    %3208 = vmatpush1.msra.mxu0 0.0
    %3209 = vmatprep.subr.mxu0 0.0
    %3210 = vmatpush1.msra.mxu0 0.0
    %3211 = vmatprep.subr.mxu0 0.0
    %3212 = vmatpush1.msra.mxu0 0.0
    %3213 = vmatprep.subr.mxu0 0.0
    %3214 = vmatpush1.msra.mxu0 0.0
    %3215 = vmatprep.subr.mxu0 0.0
    %3216 = vmatpush1.msra.mxu0 0.0
    %3217 = vmatprep.subr.mxu0 0.0
    %3218 = vmatpush1.msra.mxu0 0.0
    %3219 = vmatprep.subr.mxu0 0.0
    %3220 = vmatpush1.msra.mxu0 0.0
    %3221 = vmatprep.subr.mxu0 0.0
    %3222 = vmatpush1.msra.mxu0 0.0
    %3223 = vmatprep.subr.mxu0 0.0
    %3224 = vmatpush1.msra.mxu0 0.0
    %3225 = vmatprep.subr.mxu0 0.0
    %3226 = vmatpush1.msra.mxu0 0.0
    %3227 = vmatprep.subr.mxu0 0.0
    %3228 = vmatpush1.msra.mxu0 0.0
    %3229 = vmatprep.mubr.f32.mxu0 0.0
    %3230 = vmatmul.mubr.f32.gmra.mrb[0].mxu0 %v2979
    %v3231 = vpop.f32.mrb[0].mxu0
    %v3232 = vadd.f32 0.0, %v3231
    %v3233 = vpop.f32.mrb[0].mxu0
    %v3234 = vadd.f32 0.0, %v3233
    %3235 = vdwg.mxu0
    %3236 = vmatprep.subr.mxu0 %v2415
    %3237 = vmatpush1.msra.mxu0 %v2414
    %3238 = vmatprep.subr.mxu0 %v2419
    %3239 = vmatpush1.msra.mxu0 %v2418
    %3240 = vmatprep.subr.mxu0 %v2423
    %3241 = vmatpush1.msra.mxu0 %v2422
    %3242 = vmatprep.subr.mxu0 %v2427
    %3243 = vmatpush1.msra.mxu0 %v2426
    %3244 = vmatprep.subr.mxu0 %v2431
    %3245 = vmatpush1.msra.mxu0 %v2430
    %3246 = vmatprep.subr.mxu0 %v2435
    %3247 = vmatpush1.msra.mxu0 %v2434
    %3248 = vmatprep.subr.mxu0 %v2439
    %3249 = vmatpush1.msra.mxu0 %v2438
    %3250 = vmatprep.subr.mxu0 %v2443
    %3251 = vmatpush1.msra.mxu0 %v2442
    %3252 = vmatprep.subr.mxu0 %v2447
    %3253 = vmatpush1.msra.mxu0 %v2446
    %3254 = vmatprep.subr.mxu0 %v2451
    %3255 = vmatpush1.msra.mxu0 %v2450
    %3256 = vmatprep.subr.mxu0 %v2455
    %3257 = vmatpush1.msra.mxu0 %v2454
    %3258 = vmatprep.subr.mxu0 %v2459
    %3259 = vmatpush1.msra.mxu0 %v2458
    %3260 = vmatprep.subr.mxu0 %v2463
    %3261 = vmatpush1.msra.mxu0 %v2462
    %3262 = vmatprep.subr.mxu0 %v2467
    %3263 = vmatpush1.msra.mxu0 %v2466
    %3264 = vmatprep.subr.mxu0 %v2471
    %3265 = vmatpush1.msra.mxu0 %v2470
    %3266 = vmatprep.subr.mxu0 %v2475
    %3267 = vmatpush1.msra.mxu0 %v2474
    %3268 = vmatprep.subr.mxu0 0.0
    %3269 = vmatpush1.msra.mxu0 0.0
    %3270 = vmatprep.subr.mxu0 0.0
    %3271 = vmatpush1.msra.mxu0 0.0
    %3272 = vmatprep.subr.mxu0 0.0
    %3273 = vmatpush1.msra.mxu0 0.0
    %3274 = vmatprep.subr.mxu0 0.0
    %3275 = vmatpush1.msra.mxu0 0.0
    %3276 = vmatprep.subr.mxu0 0.0
    %3277 = vmatpush1.msra.mxu0 0.0
    %3278 = vmatprep.subr.mxu0 0.0
    %3279 = vmatpush1.msra.mxu0 0.0
    %3280 = vmatprep.subr.mxu0 0.0
    %3281 = vmatpush1.msra.mxu0 0.0
    %3282 = vmatprep.subr.mxu0 0.0
    %3283 = vmatpush1.msra.mxu0 0.0
    %3284 = vmatprep.subr.mxu0 0.0
    %3285 = vmatpush1.msra.mxu0 0.0
    %3286 = vmatprep.subr.mxu0 0.0
    %3287 = vmatpush1.msra.mxu0 0.0
    %3288 = vmatprep.subr.mxu0 0.0
    %3289 = vmatpush1.msra.mxu0 0.0
    %3290 = vmatprep.subr.mxu0 0.0
    %3291 = vmatpush1.msra.mxu0 0.0
    %3292 = vmatprep.subr.mxu0 0.0
    %3293 = vmatpush1.msra.mxu0 0.0
    %3294 = vmatprep.subr.mxu0 0.0
    %3295 = vmatpush1.msra.mxu0 0.0
    %3296 = vmatprep.subr.mxu0 0.0
    %3297 = vmatpush1.msra.mxu0 0.0
    %3298 = vmatprep.subr.mxu0 0.0
    %3299 = vmatpush1.msra.mxu0 0.0
    %3300 = vmatprep.mubr.f32.mxu0 0.0
    %3301 = vmatmul.mubr.f32.gmra.mrb[0].mxu0 %v2979
    %v3302 = vpop.f32.mrb[0].mxu0
    %v3303 = vadd.f32 0.0, %v3302
    %v3304 = vpop.f32.mrb[0].mxu0
    %v3305 = vadd.f32 0.0, %v3304
    %3306 = vdwg.mxu0
    %v3308 = vrot.slane %v3164, 2
    %3310 = vmatprep.subr.mxu0 %v2349
    %3311 = vmatpush1.msra.mxu0 %v2348
    %3312 = vmatprep.subr.mxu0 %v2353
    %3313 = vmatpush1.msra.mxu0 %v2352
    %3314 = vmatprep.subr.mxu0 %v2357
    %3315 = vmatpush1.msra.mxu0 %v2356
    %3316 = vmatprep.subr.mxu0 %v2361
    %3317 = vmatpush1.msra.mxu0 %v2360
    %3318 = vmatprep.subr.mxu0 %v2365
    %3319 = vmatpush1.msra.mxu0 %v2364
    %3320 = vmatprep.subr.mxu0 %v2369
    %3321 = vmatpush1.msra.mxu0 %v2368
    %3322 = vmatprep.subr.mxu0 %v2373
    %3323 = vmatpush1.msra.mxu0 %v2372
    %3324 = vmatprep.subr.mxu0 %v2377
    %3325 = vmatpush1.msra.mxu0 %v2376
    %3326 = vmatprep.subr.mxu0 %v2381
    %3327 = vmatpush1.msra.mxu0 %v2380
    %3328 = vmatprep.subr.mxu0 %v2385
    %3329 = vmatpush1.msra.mxu0 %v2384
    %3330 = vmatprep.subr.mxu0 %v2389
    %3331 = vmatpush1.msra.mxu0 %v2388
    %3332 = vmatprep.subr.mxu0 %v2393
    %3333 = vmatpush1.msra.mxu0 %v2392
    %3334 = vmatprep.subr.mxu0 %v2397
    %3335 = vmatpush1.msra.mxu0 %v2396
    %3336 = vmatprep.subr.mxu0 %v2401
    %3337 = vmatpush1.msra.mxu0 %v2400
    %3338 = vmatprep.subr.mxu0 %v2405
    %3339 = vmatpush1.msra.mxu0 %v2404
    %3340 = vmatprep.subr.mxu0 %v2409
    %3341 = vmatpush1.msra.mxu0 %v2408
    %3342 = vmatprep.subr.mxu0 0.0
    %3343 = vmatpush1.msra.mxu0 0.0
    %3344 = vmatprep.subr.mxu0 0.0
    %3345 = vmatpush1.msra.mxu0 0.0
    %3346 = vmatprep.subr.mxu0 0.0
    %3347 = vmatpush1.msra.mxu0 0.0
    %3348 = vmatprep.subr.mxu0 0.0
    %3349 = vmatpush1.msra.mxu0 0.0
    %3350 = vmatprep.subr.mxu0 0.0
    %3351 = vmatpush1.msra.mxu0 0.0
    %3352 = vmatprep.subr.mxu0 0.0
    %3353 = vmatpush1.msra.mxu0 0.0
    %3354 = vmatprep.subr.mxu0 0.0
    %3355 = vmatpush1.msra.mxu0 0.0
    %3356 = vmatprep.subr.mxu0 0.0
    %3357 = vmatpush1.msra.mxu0 0.0
    %3358 = vmatprep.subr.mxu0 0.0
    %3359 = vmatpush1.msra.mxu0 0.0
    %3360 = vmatprep.subr.mxu0 0.0
    %3361 = vmatpush1.msra.mxu0 0.0
    %3362 = vmatprep.subr.mxu0 0.0
    %3363 = vmatpush1.msra.mxu0 0.0
    %3364 = vmatprep.subr.mxu0 0.0
    %3365 = vmatpush1.msra.mxu0 0.0
    %3366 = vmatprep.subr.mxu0 0.0
    %3367 = vmatpush1.msra.mxu0 0.0
    %3368 = vmatprep.subr.mxu0 0.0
    %3369 = vmatpush1.msra.mxu0 0.0
    %3370 = vmatprep.subr.mxu0 0.0
    %3371 = vmatpush1.msra.mxu0 0.0
    %3372 = vmatprep.subr.mxu0 0.0
    %3373 = vmatpush1.msra.mxu0 0.0
    %3374 = vmatprep.mubr.f32.mxu0 0.0
    %3375 = vmatmul.mubr.f32.gmra.mrb[0].mxu0 %v3308
    %v3376 = vpop.f32.mrb[0].mxu0
    %v3377 = vadd.f32 %v3232, %v3376
    %v3378 = vpop.f32.mrb[0].mxu0
    %v3379 = vadd.f32 %v3234, %v3378
    %3380 = vdwg.mxu0
    %3381 = vmatprep.subr.mxu0 %v2351
    %3382 = vmatpush1.msra.mxu0 %v2350
    %3383 = vmatprep.subr.mxu0 %v2355
    %3384 = vmatpush1.msra.mxu0 %v2354
    %3385 = vmatprep.subr.mxu0 %v2359
    %3386 = vmatpush1.msra.mxu0 %v2358
    %3387 = vmatprep.subr.mxu0 %v2363
    %3388 = vmatpush1.msra.mxu0 %v2362
    %3389 = vmatprep.subr.mxu0 %v2367
    %3390 = vmatpush1.msra.mxu0 %v2366
    %3391 = vmatprep.subr.mxu0 %v2371
    %3392 = vmatpush1.msra.mxu0 %v2370
    %3393 = vmatprep.subr.mxu0 %v2375
    %3394 = vmatpush1.msra.mxu0 %v2374
    %3395 = vmatprep.subr.mxu0 %v2379
    %3396 = vmatpush1.msra.mxu0 %v2378
    %3397 = vmatprep.subr.mxu0 %v2383
    %3398 = vmatpush1.msra.mxu0 %v2382
    %3399 = vmatprep.subr.mxu0 %v2387
    %3400 = vmatpush1.msra.mxu0 %v2386
    %3401 = vmatprep.subr.mxu0 %v2391
    %3402 = vmatpush1.msra.mxu0 %v2390
    %3403 = vmatprep.subr.mxu0 %v2395
    %3404 = vmatpush1.msra.mxu0 %v2394
    %3405 = vmatprep.subr.mxu0 %v2399
    %3406 = vmatpush1.msra.mxu0 %v2398
    %3407 = vmatprep.subr.mxu0 %v2403
    %3408 = vmatpush1.msra.mxu0 %v2402
    %3409 = vmatprep.subr.mxu0 %v2407
    %3410 = vmatpush1.msra.mxu0 %v2406
    %3411 = vmatprep.subr.mxu0 %v2411
    %3412 = vmatpush1.msra.mxu0 %v2410
    %3413 = vmatprep.subr.mxu0 0.0
    %3414 = vmatpush1.msra.mxu0 0.0
    %3415 = vmatprep.subr.mxu0 0.0
    %3416 = vmatpush1.msra.mxu0 0.0
    %3417 = vmatprep.subr.mxu0 0.0
    %3418 = vmatpush1.msra.mxu0 0.0
    %3419 = vmatprep.subr.mxu0 0.0
    %3420 = vmatpush1.msra.mxu0 0.0
    %3421 = vmatprep.subr.mxu0 0.0
    %3422 = vmatpush1.msra.mxu0 0.0
    %3423 = vmatprep.subr.mxu0 0.0
    %3424 = vmatpush1.msra.mxu0 0.0
    %3425 = vmatprep.subr.mxu0 0.0
    %3426 = vmatpush1.msra.mxu0 0.0
    %3427 = vmatprep.subr.mxu0 0.0
    %3428 = vmatpush1.msra.mxu0 0.0
    %3429 = vmatprep.subr.mxu0 0.0
    %3430 = vmatpush1.msra.mxu0 0.0
    %3431 = vmatprep.subr.mxu0 0.0
    %3432 = vmatpush1.msra.mxu0 0.0
    %3433 = vmatprep.subr.mxu0 0.0
    %3434 = vmatpush1.msra.mxu0 0.0
    %3435 = vmatprep.subr.mxu0 0.0
    %3436 = vmatpush1.msra.mxu0 0.0
    %3437 = vmatprep.subr.mxu0 0.0
    %3438 = vmatpush1.msra.mxu0 0.0
    %3439 = vmatprep.subr.mxu0 0.0
    %3440 = vmatpush1.msra.mxu0 0.0
    %3441 = vmatprep.subr.mxu0 0.0
    %3442 = vmatpush1.msra.mxu0 0.0
    %3443 = vmatprep.subr.mxu0 0.0
    %3444 = vmatpush1.msra.mxu0 0.0
    %3445 = vmatprep.mubr.f32.mxu0 0.0
    %3446 = vmatmul.mubr.f32.gmra.mrb[0].mxu0 %v3308
    %v3447 = vpop.f32.mrb[0].mxu0
    %v3448 = vadd.f32 %v3303, %v3447
    %v3449 = vpop.f32.mrb[0].mxu0
    %v3450 = vadd.f32 %v3305, %v3449
    %3451 = vdwg.mxu0
    %v3452 = vadd.f32 %v3377, %v2935
    %v3453 = vadd.f32 %v3379, %v2939
    %v3454 = vadd.f32 %v3448, %v2943
    %v3455 = vadd.f32 %v3450, %v2947
    %v3456 = vxor.u32 %v3452, 2147483648
    %v3457 = vmul.f32 %v3456, 1.442695
    %v3458 = vpow.pop %v3457
    %v3459 = vadd.f32 %v3458, 1.0
    %v3460 = vrcp.pop %v3459
    %v3461 = vmul.f32 1.0, %v3460
    %v3462 = vxor.u32 %v3453, 2147483648
    %v3463 = vmul.f32 %v3462, 1.442695
    %v3464 = vpow.pop %v3463
    %v3465 = vadd.f32 %v3464, 1.0
    %v3466 = vrcp.pop %v3465
    %v3467 = vmul.f32 1.0, %v3466
    %v3468 = vtanh.pop %v3454
    %v3469 = vxor.u32 %v3455, 2147483648
    %v3470 = vmul.f32 %v3469, 1.442695
    %v3471 = vpow.pop %v3470
    %v3472 = vadd.f32 %v3471, 1.0
    %v3473 = vrcp.pop %v3472
    %v3474 = vmul.f32 1.0, %v3473
    %v3475 = vmul.f32 %v3467, %v2977
    %v3476 = vmul.f32 %v3461, %v3468
    %v3477 = vadd.f32 %v3475, %v3476
    %v3478 = vtanh.pop %v3477
    %v3479 = vmul.f32 %v3474, %v3478
    %3480 = vmatprep.subr.mxu0 %v2285
    %3481 = vmatpush1.msra.mxu0 %v2284
    %3482 = vmatprep.subr.mxu0 %v2289
    %3483 = vmatpush1.msra.mxu0 %v2288
    %3484 = vmatprep.subr.mxu0 %v2293
    %3485 = vmatpush1.msra.mxu0 %v2292
    %3486 = vmatprep.subr.mxu0 %v2297
    %3487 = vmatpush1.msra.mxu0 %v2296
    %3488 = vmatprep.subr.mxu0 %v2301
    %3489 = vmatpush1.msra.mxu0 %v2300
    %3490 = vmatprep.subr.mxu0 %v2305
    %3491 = vmatpush1.msra.mxu0 %v2304
    %3492 = vmatprep.subr.mxu0 %v2309
    %3493 = vmatpush1.msra.mxu0 %v2308
    %3494 = vmatprep.subr.mxu0 %v2313
    %3495 = vmatpush1.msra.mxu0 %v2312
    %3496 = vmatprep.subr.mxu0 %v2317
    %3497 = vmatpush1.msra.mxu0 %v2316
    %3498 = vmatprep.subr.mxu0 %v2321
    %3499 = vmatpush1.msra.mxu0 %v2320
    %3500 = vmatprep.subr.mxu0 %v2325
    %3501 = vmatpush1.msra.mxu0 %v2324
    %3502 = vmatprep.subr.mxu0 %v2329
    %3503 = vmatpush1.msra.mxu0 %v2328
    %3504 = vmatprep.subr.mxu0 %v2333
    %3505 = vmatpush1.msra.mxu0 %v2332
    %3506 = vmatprep.subr.mxu0 %v2337
    %3507 = vmatpush1.msra.mxu0 %v2336
    %3508 = vmatprep.subr.mxu0 %v2341
    %3509 = vmatpush1.msra.mxu0 %v2340
    %3510 = vmatprep.subr.mxu0 %v2345
    %3511 = vmatpush1.msra.mxu0 %v2344
    %3512 = vmatprep.subr.mxu0 0.0
    %3513 = vmatpush1.msra.mxu0 0.0
    %3514 = vmatprep.subr.mxu0 0.0
    %3515 = vmatpush1.msra.mxu0 0.0
    %3516 = vmatprep.subr.mxu0 0.0
    %3517 = vmatpush1.msra.mxu0 0.0
    %3518 = vmatprep.subr.mxu0 0.0
    %3519 = vmatpush1.msra.mxu0 0.0
    %3520 = vmatprep.subr.mxu0 0.0
    %3521 = vmatpush1.msra.mxu0 0.0
    %3522 = vmatprep.subr.mxu0 0.0
    %3523 = vmatpush1.msra.mxu0 0.0
    %3524 = vmatprep.subr.mxu0 0.0
    %3525 = vmatpush1.msra.mxu0 0.0
    %3526 = vmatprep.subr.mxu0 0.0
    %3527 = vmatpush1.msra.mxu0 0.0
    %3528 = vmatprep.subr.mxu0 0.0
    %3529 = vmatpush1.msra.mxu0 0.0
    %3530 = vmatprep.subr.mxu0 0.0
    %3531 = vmatpush1.msra.mxu0 0.0
    %3532 = vmatprep.subr.mxu0 0.0
    %3533 = vmatpush1.msra.mxu0 0.0
    %3534 = vmatprep.subr.mxu0 0.0
    %3535 = vmatpush1.msra.mxu0 0.0
    %3536 = vmatprep.subr.mxu0 0.0
    %3537 = vmatpush1.msra.mxu0 0.0
    %3538 = vmatprep.subr.mxu0 0.0
    %3539 = vmatpush1.msra.mxu0 0.0
    %3540 = vmatprep.subr.mxu0 0.0
    %3541 = vmatpush1.msra.mxu0 0.0
    %3542 = vmatprep.subr.mxu0 0.0
    %3543 = vmatpush1.msra.mxu0 0.0
    %3544 = vmatprep.mubr.f32.mxu0 0.0
    %3545 = vmatmul.mubr.f32.gmra.mrb[0].mxu0 %v3308
    %v3546 = vpop.f32.mrb[0].mxu0
    %v3547 = vadd.f32 0.0, %v3546
    %v3548 = vpop.f32.mrb[0].mxu0
    %v3549 = vadd.f32 0.0, %v3548
    %3550 = vdwg.mxu0
    %3551 = vmatprep.subr.mxu0 %v2287
    %3552 = vmatpush1.msra.mxu0 %v2286
    %3553 = vmatprep.subr.mxu0 %v2291
    %3554 = vmatpush1.msra.mxu0 %v2290
    %3555 = vmatprep.subr.mxu0 %v2295
    %3556 = vmatpush1.msra.mxu0 %v2294
    %3557 = vmatprep.subr.mxu0 %v2299
    %3558 = vmatpush1.msra.mxu0 %v2298
    %3559 = vmatprep.subr.mxu0 %v2303
    %3560 = vmatpush1.msra.mxu0 %v2302
    %3561 = vmatprep.subr.mxu0 %v2307
    %3562 = vmatpush1.msra.mxu0 %v2306
    %3563 = vmatprep.subr.mxu0 %v2311
    %3564 = vmatpush1.msra.mxu0 %v2310
    %3565 = vmatprep.subr.mxu0 %v2315
    %3566 = vmatpush1.msra.mxu0 %v2314
    %3567 = vmatprep.subr.mxu0 %v2319
    %3568 = vmatpush1.msra.mxu0 %v2318
    %3569 = vmatprep.subr.mxu0 %v2323
    %3570 = vmatpush1.msra.mxu0 %v2322
    %3571 = vmatprep.subr.mxu0 %v2327
    %3572 = vmatpush1.msra.mxu0 %v2326
    %3573 = vmatprep.subr.mxu0 %v2331
    %3574 = vmatpush1.msra.mxu0 %v2330
    %3575 = vmatprep.subr.mxu0 %v2335
    %3576 = vmatpush1.msra.mxu0 %v2334
    %3577 = vmatprep.subr.mxu0 %v2339
    %3578 = vmatpush1.msra.mxu0 %v2338
    %3579 = vmatprep.subr.mxu0 %v2343
    %3580 = vmatpush1.msra.mxu0 %v2342
    %3581 = vmatprep.subr.mxu0 %v2347
    %3582 = vmatpush1.msra.mxu0 %v2346
    %3583 = vmatprep.subr.mxu0 0.0
    %3584 = vmatpush1.msra.mxu0 0.0
    %3585 = vmatprep.subr.mxu0 0.0
    %3586 = vmatpush1.msra.mxu0 0.0
    %3587 = vmatprep.subr.mxu0 0.0
    %3588 = vmatpush1.msra.mxu0 0.0
    %3589 = vmatprep.subr.mxu0 0.0
    %3590 = vmatpush1.msra.mxu0 0.0
    %3591 = vmatprep.subr.mxu0 0.0
    %3592 = vmatpush1.msra.mxu0 0.0
    %3593 = vmatprep.subr.mxu0 0.0
    %3594 = vmatpush1.msra.mxu0 0.0
    %3595 = vmatprep.subr.mxu0 0.0
    %3596 = vmatpush1.msra.mxu0 0.0
    %3597 = vmatprep.subr.mxu0 0.0
    %3598 = vmatpush1.msra.mxu0 0.0
    %3599 = vmatprep.subr.mxu0 0.0
    %3600 = vmatpush1.msra.mxu0 0.0
    %3601 = vmatprep.subr.mxu0 0.0
    %3602 = vmatpush1.msra.mxu0 0.0
    %3603 = vmatprep.subr.mxu0 0.0
    %3604 = vmatpush1.msra.mxu0 0.0
    %3605 = vmatprep.subr.mxu0 0.0
    %3606 = vmatpush1.msra.mxu0 0.0
    %3607 = vmatprep.subr.mxu0 0.0
    %3608 = vmatpush1.msra.mxu0 0.0
    %3609 = vmatprep.subr.mxu0 0.0
    %3610 = vmatpush1.msra.mxu0 0.0
    %3611 = vmatprep.subr.mxu0 0.0
    %3612 = vmatpush1.msra.mxu0 0.0
    %3613 = vmatprep.subr.mxu0 0.0
    %3614 = vmatpush1.msra.mxu0 0.0
    %3615 = vmatprep.mubr.f32.mxu0 0.0
    %3616 = vmatmul.mubr.f32.gmra.mrb[0].mxu0 %v3308
    %v3617 = vpop.f32.mrb[0].mxu0
    %v3618 = vadd.f32 0.0, %v3617
    %v3619 = vpop.f32.mrb[0].mxu0
    %v3620 = vadd.f32 0.0, %v3619
    %3621 = vdwg.mxu0
    %v3626 = vrot.slane %v3547, 4
    %v3627 = vrot.slane %v3549, 4
    %v3628 = vrot.slane %v3618, 4
    %v3629 = vrot.slane %v3620, 4
    %v3634 = vadd.f32 %v2209, %v3626
    %v3635 = vadd.f32 %v2211, %v3627
    %v3636 = vadd.f32 %v2280, %v3628
    %v3637 = vadd.f32 %v2282, %v3629
    %v3638 = vxor.u32 %v3634, 2147483648
    %v3639 = vmul.f32 %v3638, 1.442695
    %v3640 = vpow.pop %v3639
    %v3641 = vadd.f32 %v3640, 1.0
    %v3642 = vrcp.pop %v3641
    %v3643 = vmul.f32 1.0, %v3642
    %v3644 = vxor.u32 %v3635, 2147483648
    %v3645 = vmul.f32 %v3644, 1.442695
    %v3646 = vpow.pop %v3645
    %v3647 = vadd.f32 %v3646, 1.0
    %v3648 = vrcp.pop %v3647
    %v3649 = vmul.f32 1.0, %v3648
    %v3650 = vtanh.pop %v3636
    %v3651 = vxor.u32 %v3637, 2147483648
    %v3652 = vmul.f32 %v3651, 1.442695
    %v3653 = vpow.pop %v3652
    %v3654 = vadd.f32 %v3653, 1.0
    %v3655 = vrcp.pop %v3654
    %v3656 = vmul.f32 1.0, %v3655
    %v3658 = vrot.slane %v3162, 6
    %v3660 = vmul.f32 %v3649, %v3658
    %v3661 = vmul.f32 %v3643, %v3650
    %v3662 = vadd.f32 %v3660, %v3661
    %v3663 = vtanh.pop %v3662
    %v3664 = vmul.f32 %v3656, %v3663
    %3665 = vmatprep.subr.mxu0 %v2413
    %3666 = vmatpush1.msra.mxu0 %v2412
    %3667 = vmatprep.subr.mxu0 %v2417
    %3668 = vmatpush1.msra.mxu0 %v2416
    %3669 = vmatprep.subr.mxu0 %v2421
    %3670 = vmatpush1.msra.mxu0 %v2420
    %3671 = vmatprep.subr.mxu0 %v2425
    %3672 = vmatpush1.msra.mxu0 %v2424
    %3673 = vmatprep.subr.mxu0 %v2429
    %3674 = vmatpush1.msra.mxu0 %v2428
    %3675 = vmatprep.subr.mxu0 %v2433
    %3676 = vmatpush1.msra.mxu0 %v2432
    %3677 = vmatprep.subr.mxu0 %v2437
    %3678 = vmatpush1.msra.mxu0 %v2436
    %3679 = vmatprep.subr.mxu0 %v2441
    %3680 = vmatpush1.msra.mxu0 %v2440
    %3681 = vmatprep.subr.mxu0 %v2445
    %3682 = vmatpush1.msra.mxu0 %v2444
    %3683 = vmatprep.subr.mxu0 %v2449
    %3684 = vmatpush1.msra.mxu0 %v2448
    %3685 = vmatprep.subr.mxu0 %v2453
    %3686 = vmatpush1.msra.mxu0 %v2452
    %3687 = vmatprep.subr.mxu0 %v2457
    %3688 = vmatpush1.msra.mxu0 %v2456
    %3689 = vmatprep.subr.mxu0 %v2461
    %3690 = vmatpush1.msra.mxu0 %v2460
    %3691 = vmatprep.subr.mxu0 %v2465
    %3692 = vmatpush1.msra.mxu0 %v2464
    %3693 = vmatprep.subr.mxu0 %v2469
    %3694 = vmatpush1.msra.mxu0 %v2468
    %3695 = vmatprep.subr.mxu0 %v2473
    %3696 = vmatpush1.msra.mxu0 %v2472
    %3697 = vmatprep.subr.mxu0 0.0
    %3698 = vmatpush1.msra.mxu0 0.0
    %3699 = vmatprep.subr.mxu0 0.0
    %3700 = vmatpush1.msra.mxu0 0.0
    %3701 = vmatprep.subr.mxu0 0.0
    %3702 = vmatpush1.msra.mxu0 0.0
    %3703 = vmatprep.subr.mxu0 0.0
    %3704 = vmatpush1.msra.mxu0 0.0
    %3705 = vmatprep.subr.mxu0 0.0
    %3706 = vmatpush1.msra.mxu0 0.0
    %3707 = vmatprep.subr.mxu0 0.0
    %3708 = vmatpush1.msra.mxu0 0.0
    %3709 = vmatprep.subr.mxu0 0.0
    %3710 = vmatpush1.msra.mxu0 0.0
    %3711 = vmatprep.subr.mxu0 0.0
    %3712 = vmatpush1.msra.mxu0 0.0
    %3713 = vmatprep.subr.mxu0 0.0
    %3714 = vmatpush1.msra.mxu0 0.0
    %3715 = vmatprep.subr.mxu0 0.0
    %3716 = vmatpush1.msra.mxu0 0.0
    %3717 = vmatprep.subr.mxu0 0.0
    %3718 = vmatpush1.msra.mxu0 0.0
    %3719 = vmatprep.subr.mxu0 0.0
    %3720 = vmatpush1.msra.mxu0 0.0
    %3721 = vmatprep.subr.mxu0 0.0
    %3722 = vmatpush1.msra.mxu0 0.0
    %3723 = vmatprep.subr.mxu0 0.0
    %3724 = vmatpush1.msra.mxu0 0.0
    %3725 = vmatprep.subr.mxu0 0.0
    %3726 = vmatpush1.msra.mxu0 0.0
    %3727 = vmatprep.subr.mxu0 0.0
    %3728 = vmatpush1.msra.mxu0 0.0
    %3729 = vmatprep.mubr.f32.mxu0 0.0
    %3730 = vmatmul.mubr.f32.gmra.mrb[0].mxu0 %v3479
    %v3731 = vpop.f32.mrb[0].mxu0
    %v3732 = vadd.f32 0.0, %v3731
    %v3733 = vpop.f32.mrb[0].mxu0
    %v3734 = vadd.f32 0.0, %v3733
    %3735 = vdwg.mxu0
    %3736 = vmatprep.subr.mxu0 %v2415
    %3737 = vmatpush1.msra.mxu0 %v2414
    %3738 = vmatprep.subr.mxu0 %v2419
    %3739 = vmatpush1.msra.mxu0 %v2418
    %3740 = vmatprep.subr.mxu0 %v2423
    %3741 = vmatpush1.msra.mxu0 %v2422
    %3742 = vmatprep.subr.mxu0 %v2427
    %3743 = vmatpush1.msra.mxu0 %v2426
    %3744 = vmatprep.subr.mxu0 %v2431
    %3745 = vmatpush1.msra.mxu0 %v2430
    %3746 = vmatprep.subr.mxu0 %v2435
    %3747 = vmatpush1.msra.mxu0 %v2434
    %3748 = vmatprep.subr.mxu0 %v2439
    %3749 = vmatpush1.msra.mxu0 %v2438
    %3750 = vmatprep.subr.mxu0 %v2443
    %3751 = vmatpush1.msra.mxu0 %v2442
    %3752 = vmatprep.subr.mxu0 %v2447
    %3753 = vmatpush1.msra.mxu0 %v2446
    %3754 = vmatprep.subr.mxu0 %v2451
    %3755 = vmatpush1.msra.mxu0 %v2450
    %3756 = vmatprep.subr.mxu0 %v2455
    %3757 = vmatpush1.msra.mxu0 %v2454
    %3758 = vmatprep.subr.mxu0 %v2459
    %3759 = vmatpush1.msra.mxu0 %v2458
    %3760 = vmatprep.subr.mxu0 %v2463
    %3761 = vmatpush1.msra.mxu0 %v2462
    %3762 = vmatprep.subr.mxu0 %v2467
    %3763 = vmatpush1.msra.mxu0 %v2466
    %3764 = vmatprep.subr.mxu0 %v2471
    %3765 = vmatpush1.msra.mxu0 %v2470
    %3766 = vmatprep.subr.mxu0 %v2475
    %3767 = vmatpush1.msra.mxu0 %v2474
    %3768 = vmatprep.subr.mxu0 0.0
    %3769 = vmatpush1.msra.mxu0 0.0
    %3770 = vmatprep.subr.mxu0 0.0
    %3771 = vmatpush1.msra.mxu0 0.0
    %3772 = vmatprep.subr.mxu0 0.0
    %3773 = vmatpush1.msra.mxu0 0.0
    %3774 = vmatprep.subr.mxu0 0.0
    %3775 = vmatpush1.msra.mxu0 0.0
    %3776 = vmatprep.subr.mxu0 0.0
    %3777 = vmatpush1.msra.mxu0 0.0
    %3778 = vmatprep.subr.mxu0 0.0
    %3779 = vmatpush1.msra.mxu0 0.0
    %3780 = vmatprep.subr.mxu0 0.0
    %3781 = vmatpush1.msra.mxu0 0.0
    %3782 = vmatprep.subr.mxu0 0.0
    %3783 = vmatpush1.msra.mxu0 0.0
    %3784 = vmatprep.subr.mxu0 0.0
    %3785 = vmatpush1.msra.mxu0 0.0
    %3786 = vmatprep.subr.mxu0 0.0
    %3787 = vmatpush1.msra.mxu0 0.0
    %3788 = vmatprep.subr.mxu0 0.0
    %3789 = vmatpush1.msra.mxu0 0.0
    %3790 = vmatprep.subr.mxu0 0.0
    %3791 = vmatpush1.msra.mxu0 0.0
    %3792 = vmatprep.subr.mxu0 0.0
    %3793 = vmatpush1.msra.mxu0 0.0
    %3794 = vmatprep.subr.mxu0 0.0
    %3795 = vmatpush1.msra.mxu0 0.0
    %3796 = vmatprep.subr.mxu0 0.0
    %3797 = vmatpush1.msra.mxu0 0.0
    %3798 = vmatprep.subr.mxu0 0.0
    %3799 = vmatpush1.msra.mxu0 0.0
    %3800 = vmatprep.mubr.f32.mxu0 0.0
    %3801 = vmatmul.mubr.f32.gmra.mrb[0].mxu0 %v3479
    %v3802 = vpop.f32.mrb[0].mxu0
    %v3803 = vadd.f32 0.0, %v3802
    %v3804 = vpop.f32.mrb[0].mxu0
    %v3805 = vadd.f32 0.0, %v3804
    %3806 = vdwg.mxu0
    %v3808 = vrot.slane %v3664, 4
    %3810 = vmatprep.subr.mxu0 %v2349
    %3811 = vmatpush1.msra.mxu0 %v2348
    %3812 = vmatprep.subr.mxu0 %v2353
    %3813 = vmatpush1.msra.mxu0 %v2352
    %3814 = vmatprep.subr.mxu0 %v2357
    %3815 = vmatpush1.msra.mxu0 %v2356
    %3816 = vmatprep.subr.mxu0 %v2361
    %3817 = vmatpush1.msra.mxu0 %v2360
    %3818 = vmatprep.subr.mxu0 %v2365
    %3819 = vmatpush1.msra.mxu0 %v2364
    %3820 = vmatprep.subr.mxu0 %v2369
    %3821 = vmatpush1.msra.mxu0 %v2368
    %3822 = vmatprep.subr.mxu0 %v2373
    %3823 = vmatpush1.msra.mxu0 %v2372
    %3824 = vmatprep.subr.mxu0 %v2377
    %3825 = vmatpush1.msra.mxu0 %v2376
    %3826 = vmatprep.subr.mxu0 %v2381
    %3827 = vmatpush1.msra.mxu0 %v2380
    %3828 = vmatprep.subr.mxu0 %v2385
    %3829 = vmatpush1.msra.mxu0 %v2384
    %3830 = vmatprep.subr.mxu0 %v2389
    %3831 = vmatpush1.msra.mxu0 %v2388
    %3832 = vmatprep.subr.mxu0 %v2393
    %3833 = vmatpush1.msra.mxu0 %v2392
    %3834 = vmatprep.subr.mxu0 %v2397
    %3835 = vmatpush1.msra.mxu0 %v2396
    %3836 = vmatprep.subr.mxu0 %v2401
    %3837 = vmatpush1.msra.mxu0 %v2400
    %3838 = vmatprep.subr.mxu0 %v2405
    %3839 = vmatpush1.msra.mxu0 %v2404
    %3840 = vmatprep.subr.mxu0 %v2409
    %3841 = vmatpush1.msra.mxu0 %v2408
    %3842 = vmatprep.subr.mxu0 0.0
    %3843 = vmatpush1.msra.mxu0 0.0
    %3844 = vmatprep.subr.mxu0 0.0
    %3845 = vmatpush1.msra.mxu0 0.0
    %3846 = vmatprep.subr.mxu0 0.0
    %3847 = vmatpush1.msra.mxu0 0.0
    %3848 = vmatprep.subr.mxu0 0.0
    %3849 = vmatpush1.msra.mxu0 0.0
    %3850 = vmatprep.subr.mxu0 0.0
    %3851 = vmatpush1.msra.mxu0 0.0
    %3852 = vmatprep.subr.mxu0 0.0
    %3853 = vmatpush1.msra.mxu0 0.0
    %3854 = vmatprep.subr.mxu0 0.0
    %3855 = vmatpush1.msra.mxu0 0.0
    %3856 = vmatprep.subr.mxu0 0.0
    %3857 = vmatpush1.msra.mxu0 0.0
    %3858 = vmatprep.subr.mxu0 0.0
    %3859 = vmatpush1.msra.mxu0 0.0
    %3860 = vmatprep.subr.mxu0 0.0
    %3861 = vmatpush1.msra.mxu0 0.0
    %3862 = vmatprep.subr.mxu0 0.0
    %3863 = vmatpush1.msra.mxu0 0.0
    %3864 = vmatprep.subr.mxu0 0.0
    %3865 = vmatpush1.msra.mxu0 0.0
    %3866 = vmatprep.subr.mxu0 0.0
    %3867 = vmatpush1.msra.mxu0 0.0
    %3868 = vmatprep.subr.mxu0 0.0
    %3869 = vmatpush1.msra.mxu0 0.0
    %3870 = vmatprep.subr.mxu0 0.0
    %3871 = vmatpush1.msra.mxu0 0.0
    %3872 = vmatprep.subr.mxu0 0.0
    %3873 = vmatpush1.msra.mxu0 0.0
    %3874 = vmatprep.mubr.f32.mxu0 0.0
    %3875 = vmatmul.mubr.f32.gmra.mrb[0].mxu0 %v3808
    %v3876 = vpop.f32.mrb[0].mxu0
    %v3877 = vadd.f32 %v3732, %v3876
    %v3878 = vpop.f32.mrb[0].mxu0
    %v3879 = vadd.f32 %v3734, %v3878
    %3880 = vdwg.mxu0
    %3881 = vmatprep.subr.mxu0 %v2351
    %3882 = vmatpush1.msra.mxu0 %v2350
    %3883 = vmatprep.subr.mxu0 %v2355
    %3884 = vmatpush1.msra.mxu0 %v2354
    %3885 = vmatprep.subr.mxu0 %v2359
    %3886 = vmatpush1.msra.mxu0 %v2358
    %3887 = vmatprep.subr.mxu0 %v2363
    %3888 = vmatpush1.msra.mxu0 %v2362
    %3889 = vmatprep.subr.mxu0 %v2367
    %3890 = vmatpush1.msra.mxu0 %v2366
    %3891 = vmatprep.subr.mxu0 %v2371
    %3892 = vmatpush1.msra.mxu0 %v2370
    %3893 = vmatprep.subr.mxu0 %v2375
    %3894 = vmatpush1.msra.mxu0 %v2374
    %3895 = vmatprep.subr.mxu0 %v2379
    %3896 = vmatpush1.msra.mxu0 %v2378
    %3897 = vmatprep.subr.mxu0 %v2383
    %3898 = vmatpush1.msra.mxu0 %v2382
    %3899 = vmatprep.subr.mxu0 %v2387
    %3900 = vmatpush1.msra.mxu0 %v2386
    %3901 = vmatprep.subr.mxu0 %v2391
    %3902 = vmatpush1.msra.mxu0 %v2390
    %3903 = vmatprep.subr.mxu0 %v2395
    %3904 = vmatpush1.msra.mxu0 %v2394
    %3905 = vmatprep.subr.mxu0 %v2399
    %3906 = vmatpush1.msra.mxu0 %v2398
    %3907 = vmatprep.subr.mxu0 %v2403
    %3908 = vmatpush1.msra.mxu0 %v2402
    %3909 = vmatprep.subr.mxu0 %v2407
    %3910 = vmatpush1.msra.mxu0 %v2406
    %3911 = vmatprep.subr.mxu0 %v2411
    %3912 = vmatpush1.msra.mxu0 %v2410
    %3913 = vmatprep.subr.mxu0 0.0
    %3914 = vmatpush1.msra.mxu0 0.0
    %3915 = vmatprep.subr.mxu0 0.0
    %3916 = vmatpush1.msra.mxu0 0.0
    %3917 = vmatprep.subr.mxu0 0.0
    %3918 = vmatpush1.msra.mxu0 0.0
    %3919 = vmatprep.subr.mxu0 0.0
    %3920 = vmatpush1.msra.mxu0 0.0
    %3921 = vmatprep.subr.mxu0 0.0
    %3922 = vmatpush1.msra.mxu0 0.0
    %3923 = vmatprep.subr.mxu0 0.0
    %3924 = vmatpush1.msra.mxu0 0.0
    %3925 = vmatprep.subr.mxu0 0.0
    %3926 = vmatpush1.msra.mxu0 0.0
    %3927 = vmatprep.subr.mxu0 0.0
    %3928 = vmatpush1.msra.mxu0 0.0
    %3929 = vmatprep.subr.mxu0 0.0
    %3930 = vmatpush1.msra.mxu0 0.0
    %3931 = vmatprep.subr.mxu0 0.0
    %3932 = vmatpush1.msra.mxu0 0.0
    %3933 = vmatprep.subr.mxu0 0.0
    %3934 = vmatpush1.msra.mxu0 0.0
    %3935 = vmatprep.subr.mxu0 0.0
    %3936 = vmatpush1.msra.mxu0 0.0
    %3937 = vmatprep.subr.mxu0 0.0
    %3938 = vmatpush1.msra.mxu0 0.0
    %3939 = vmatprep.subr.mxu0 0.0
    %3940 = vmatpush1.msra.mxu0 0.0
    %3941 = vmatprep.subr.mxu0 0.0
    %3942 = vmatpush1.msra.mxu0 0.0
    %3943 = vmatprep.subr.mxu0 0.0
    %3944 = vmatpush1.msra.mxu0 0.0
    %3945 = vmatprep.mubr.f32.mxu0 0.0
    %3946 = vmatmul.mubr.f32.gmra.mrb[0].mxu0 %v3808
    %v3947 = vpop.f32.mrb[0].mxu0
    %v3948 = vadd.f32 %v3803, %v3947
    %v3949 = vpop.f32.mrb[0].mxu0
    %v3950 = vadd.f32 %v3805, %v3949
    %3951 = vdwg.mxu0
    %v3952 = vadd.f32 %v3877, %v2935
    %v3953 = vadd.f32 %v3879, %v2939
    %v3954 = vadd.f32 %v3948, %v2943
    %v3955 = vadd.f32 %v3950, %v2947
    %v3956 = vxor.u32 %v3952, 2147483648
    %v3957 = vmul.f32 %v3956, 1.442695
    %v3958 = vpow.pop %v3957
    %v3959 = vadd.f32 %v3958, 1.0
    %v3960 = vrcp.pop %v3959
    %v3961 = vmul.f32 1.0, %v3960
    %v3962 = vxor.u32 %v3953, 2147483648
    %v3963 = vmul.f32 %v3962, 1.442695
    %v3964 = vpow.pop %v3963
    %v3965 = vadd.f32 %v3964, 1.0
    %v3966 = vrcp.pop %v3965
    %v3967 = vmul.f32 1.0, %v3966
    %v3968 = vtanh.pop %v3954
    %v3969 = vxor.u32 %v3955, 2147483648
    %v3970 = vmul.f32 %v3969, 1.442695
    %v3971 = vpow.pop %v3970
    %v3972 = vadd.f32 %v3971, 1.0
    %v3973 = vrcp.pop %v3972
    %v3974 = vmul.f32 1.0, %v3973
    %v3975 = vmul.f32 %v3967, %v3477
    %v3976 = vmul.f32 %v3961, %v3968
    %v3977 = vadd.f32 %v3975, %v3976
    %v3978 = vtanh.pop %v3977
    %v3979 = vmul.f32 %v3974, %v3978
    %3980 = vst [vmem:[#allocation10] sm:$0x3] %v3979
    %v3981 = vld [vmem:[%s13] sm:$0xff]
    %v3982 = vld [vmem:[%s13 + $0x8] sm:$0xff]
    %v3983 = vld [vmem:[%s13 + $0x10] sm:$0xff]
    %v3984 = vld [vmem:[%s13 + $0x18] sm:$0xff]
    %v3985 = vld [vmem:[%s13 + $0x20] sm:$0xff]
    %v3986 = vld [vmem:[%s13 + $0x28] sm:$0xff]
    %v3987 = vld [vmem:[%s13 + $0x30] sm:$0xff]
    %v3988 = vld [vmem:[%s13 + $0x38] sm:$0xff]
    %v3989 = vld [vmem:[%s13 + $0x40] sm:$0xff]
    %v3990 = vld [vmem:[%s13 + $0x48] sm:$0xff]
    %v3991 = vld [vmem:[%s13 + $0x50] sm:$0xff]
    %v3992 = vld [vmem:[%s13 + $0x58] sm:$0xff]
    %v3993 = vld [vmem:[%s13 + $0x60] sm:$0xff]
    %v3994 = vld [vmem:[%s13 + $0x68] sm:$0xff]
    %v3995 = vld [vmem:[%s13 + $0x70] sm:$0xff]
    %v3996 = vld [vmem:[%s13 + $0x78] sm:$0xff]
    %v3997 = vld [vmem:[#allocation4] sm:$0x1]
    %v3999 = vlaneseq
    %v4000 = vshrl.u32 %v3999, 7
    %v4001 = vsub.s32 0, %v4000
    %v4002 = vrot.slane %v3997, %v4001
    %4004 = vmatprep.subr.mxu0 0.0
    %4005 = vmatpush1.msra.mxu0 %v3981
    %4006 = vmatprep.subr.mxu0 0.0
    %4007 = vmatpush1.msra.mxu0 %v3982
    %4008 = vmatprep.subr.mxu0 0.0
    %4009 = vmatpush1.msra.mxu0 %v3983
    %4010 = vmatprep.subr.mxu0 0.0
    %4011 = vmatpush1.msra.mxu0 %v3984
    %4012 = vmatprep.subr.mxu0 0.0
    %4013 = vmatpush1.msra.mxu0 %v3985
    %4014 = vmatprep.subr.mxu0 0.0
    %4015 = vmatpush1.msra.mxu0 %v3986
    %4016 = vmatprep.subr.mxu0 0.0
    %4017 = vmatpush1.msra.mxu0 %v3987
    %4018 = vmatprep.subr.mxu0 0.0
    %4019 = vmatpush1.msra.mxu0 %v3988
    %4020 = vmatprep.subr.mxu0 0.0
    %4021 = vmatpush1.msra.mxu0 %v3989
    %4022 = vmatprep.subr.mxu0 0.0
    %4023 = vmatpush1.msra.mxu0 %v3990
    %4024 = vmatprep.subr.mxu0 0.0
    %4025 = vmatpush1.msra.mxu0 %v3991
    %4026 = vmatprep.subr.mxu0 0.0
    %4027 = vmatpush1.msra.mxu0 %v3992
    %4028 = vmatprep.subr.mxu0 0.0
    %4029 = vmatpush1.msra.mxu0 %v3993
    %4030 = vmatprep.subr.mxu0 0.0
    %4031 = vmatpush1.msra.mxu0 %v3994
    %4032 = vmatprep.subr.mxu0 0.0
    %4033 = vmatpush1.msra.mxu0 %v3995
    %4034 = vmatprep.subr.mxu0 0.0
    %4035 = vmatpush1.msra.mxu0 %v3996
    %4036 = vmatprep.subr.mxu0 0.0
    %4037 = vmatpush1.msra.mxu0 0.0
    %4038 = vmatprep.subr.mxu0 0.0
    %4039 = vmatpush1.msra.mxu0 0.0
    %4040 = vmatprep.subr.mxu0 0.0
    %4041 = vmatpush1.msra.mxu0 0.0
    %4042 = vmatprep.subr.mxu0 0.0
    %4043 = vmatpush1.msra.mxu0 0.0
    %4044 = vmatprep.subr.mxu0 0.0
    %4045 = vmatpush1.msra.mxu0 0.0
    %4046 = vmatprep.subr.mxu0 0.0
    %4047 = vmatpush1.msra.mxu0 0.0
    %4048 = vmatprep.subr.mxu0 0.0
    %4049 = vmatpush1.msra.mxu0 0.0
    %4050 = vmatprep.subr.mxu0 0.0
    %4051 = vmatpush1.msra.mxu0 0.0
    %4052 = vmatprep.subr.mxu0 0.0
    %4053 = vmatpush1.msra.mxu0 0.0
    %4054 = vmatprep.subr.mxu0 0.0
    %4055 = vmatpush1.msra.mxu0 0.0
    %4056 = vmatprep.subr.mxu0 0.0
    %4057 = vmatpush1.msra.mxu0 0.0
    %4058 = vmatprep.subr.mxu0 0.0
    %4059 = vmatpush1.msra.mxu0 0.0
    %4060 = vmatprep.subr.mxu0 0.0
    %4061 = vmatpush1.msra.mxu0 0.0
    %4062 = vmatprep.subr.mxu0 0.0
    %4063 = vmatpush1.msra.mxu0 0.0
    %4064 = vmatprep.subr.mxu0 0.0
    %4065 = vmatpush1.msra.mxu0 0.0
    %4066 = vmatprep.subr.mxu0 0.0
    %4067 = vmatpush1.msra.mxu0 0.0
    %4068 = vmatprep.mubr.f32.mxu0 0.0
    %4069 = vmatmul.mubr.f32.gmra.mrb[0].mxu0 %v3979
    %v4070 = vpop.f32.mrb[0].mxu0
    %v4071 = vadd.f32 %v4002, %v4070
    %v4072 = vpop.f32.mrb[0].mxu0
    %4073 = vdwg.mxu0
    %vm4074 = vcmask 1024
    %4075 = vst.msk [vmem:[%s15] sm:$0x3] %vm4074, %v4071
    // Predicated region
    $region70: #{tpu_custom_call.1} parent=1 // pred_check
      _
    $region71: #{tpu_custom_call.1} parent=1 // pred_check_branch
      %4077 = sbr.rel (0) target = $region73
    $region72: #{tpu_custom_call.1} parent=1 // pred_region
      _
    $region73: #{tpu_custom_call.1} parent=1 // pred_fallthru
      _
    // Predicated region
    $region74: #{tpu_custom_call.1} parent=1 // pred_check
      _
    $region75: #{tpu_custom_call.1} parent=1 // pred_check_branch
      %4079 = sbr.rel (0) target = $region77
    $region76: #{tpu_custom_call.1} parent=1 // pred_region
      %s4081 = ssub.s32 32, 32
      %4082 = vsyncadd [#allocation7], %s4081
      %s4084 = sshll.u32 [#allocation10], 4
      %s4085 = int_to_ptr.vmem [resolvable:$true] %s4084
      %4087 = dma.vmem_to_hbm [thread:$0]  %s4085, 32, %s16, [#allocation7]
    $region77: #{tpu_custom_call.1} parent=1 // pred_fallthru
      _
    // Predicated region
    $region78: #{tpu_custom_call.1} parent=1 // pred_check
      _
    $region79: #{tpu_custom_call.1} parent=1 // pred_check_branch
      %4089 = sbr.rel (0) target = $region81
    $region80: #{tpu_custom_call.1} parent=1 // pred_region
      _
    $region81: #{tpu_custom_call.1} parent=1 // pred_fallthru
      _
    // Predicated region
    $region82: #{tpu_custom_call.1} parent=1 // pred_check
      _
    $region83: #{tpu_custom_call.1} parent=1 // pred_check_branch
      %4091 = sbr.rel (0) target = $region85
    $region84: #{tpu_custom_call.1} parent=1 // pred_region
      %4092 = dma.done [#allocation7], 32
    $region85: #{tpu_custom_call.1} parent=1 // pred_fallthru
      _
    %4093 = vsyncpa [#allocation6], 1
    %4094 = vsyncpa [#allocation9], 1
    %4095 = vsyncpa [#allocation7], 1

</llo_original>
